<compile_context>
chip_gen: v7x
topology: tpu7x:2x2x1
jax: 0.10.0
libtpu: 0.0.40
codegen_flags: <defaults>
</compile_context>

<pallas_src>
import numpy as np
import jax
import jax.numpy as jnp
from jax.experimental import pallas as pl
from jax.experimental.pallas import tpu as pltpu

FILTER_LENGTH = 800
HOP_LENGTH = 200
WIN_LENGTH = 800
CUTOFF = FILTER_LENGTH // 2 + 1      # 401
N_MELS = 80
MEL_STEP_SIZE = 16

K_PAD = 896        # reduction dim: 800 -> multiple of 128 (kept 896, not 1024: v5e)
C_PAD = 512        # STFT bins:     401 -> multiple of 128 (and 256)
MEL_PAD = 128      # mel channels:   80 -> lane-dense 128

# 20*log10(S)-20 followed by 8*((x+100)/100)-4 collapses to 1.6*log10(S)+2.4
_LOG_SCALE = np.float32(1.6 / np.log(10.0))
_LOG_BIAS = np.float32(2.4)
_MIN_LEVEL = np.float32(9.9999e-06)   # exact reference constant


def _round_up(x, m):
    return ((x + m - 1) // m) * m


def _cdiv(a, b):
    return -(-a // b)


# ----------------------------------------------------------------------------
# Deterministic parameter construction (equivalent to STFT.__init__ buffers and
# torchaudio.functional.melscale_fbanks(..., norm='slaney', mel_scale='htk')),
# padded to MXU/lane-friendly shapes on the host.
# ----------------------------------------------------------------------------
def make_fused_stft_basis():
    """Returns (K_PAD, 2*C_PAD): [:, :C_PAD] = real basis, [:, C_PAD:] = imag."""
    fourier_basis = np.fft.fft(np.eye(FILTER_LENGTH))
    basis_r = np.real(fourier_basis[:CUTOFF, :])          # (401, 800)
    basis_i = np.imag(fourier_basis[:CUTOFF, :])          # (401, 800)
    n = np.arange(WIN_LENGTH)
    # torch.hann_window(periodic=True)
    hann = 0.5 - 0.5 * np.cos(2.0 * np.pi * n / WIN_LENGTH)
    basis_r = (basis_r * hann[None, :]).T                 # (800, 401)
    basis_i = (basis_i * hann[None, :]).T                 # (800, 401)
    fused = np.zeros((K_PAD, 2 * C_PAD), dtype=np.float32)
    fused[:FILTER_LENGTH, :CUTOFF] = basis_r
    fused[:FILTER_LENGTH, C_PAD:C_PAD + CUTOFF] = basis_i
    return fused


def _hz_to_mel(f):
    return 2595.0 * np.log10(1.0 + f / 700.0)


def _mel_to_hz(m):
    return 700.0 * (10.0 ** (m / 2595.0) - 1.0)


def make_mel_fbanks_padded(n_freqs=CUTOFF, n_mels=N_MELS, f_min=55.0,
                           f_max=7600.0, sr=16000):
    all_freqs = np.linspace(0.0, sr / 2.0, n_freqs)
    m_pts = np.linspace(_hz_to_mel(f_min), _hz_to_mel(f_max), n_mels + 2)
    f_pts = _mel_to_hz(m_pts)
    f_diff = f_pts[1:] - f_pts[:-1]                        # (n_mels+1,)
    slopes = f_pts[None, :] - all_freqs[:, None]           # (n_freqs, n_mels+2)
    down = -slopes[:, :-2] / f_diff[:-1]
    up = slopes[:, 2:] / f_diff[1:]
    fb = np.maximum(0.0, np.minimum(down, up))
    enorm = 2.0 / (f_pts[2:n_mels + 2] - f_pts[:n_mels])   # slaney norm
    fb = fb * enorm[None, :]                               # (401, 80)
    out = np.zeros((C_PAD, MEL_PAD), dtype=np.float32)
    out[:CUTOFF, :N_MELS] = fb
    return out


# Module-level device constants: uploaded once, baked into the jitted executable.
_BASIS_BF16 = jnp.asarray(make_fused_stft_basis(), dtype=jnp.bfloat16)    # (896, 1024)
_MEL_FB_BF16 = jnp.asarray(make_mel_fbanks_padded(), dtype=jnp.bfloat16)  # (512, 128)


# ----------------------------------------------------------------------------
# Fused Pallas kernel per T-tile:
#   frames(bf16) @ fused_basis(bf16) -> (tt, 1024) f32   [one MXU pass]
#   split real/imag at lane-aligned 512, magnitude
#   mag(bf16) @ melfb(bf16) -> (tt, 128) f32              [lane-dense output]
#   clamp, folded log10 scaling, clip
# ----------------------------------------------------------------------------
def mel_spectrogram_kernel(frames_ref, basis_ref, melfb_ref, out_ref):
    frames = frames_ref[...]                                               # (tt, 896) bf16
    ri = jnp.dot(frames, basis_ref[...],
                 preferred_element_type=jnp.float32)                       # (tt, 1024) f32
    real = ri[:, :C_PAD]
    imag = ri[:, C_PAD:]
    mag = jnp.sqrt(real * real + imag * imag)                              # (tt, 512) f32
    s = jnp.dot(mag.astype(jnp.bfloat16), melfb_ref[...],
                preferred_element_type=jnp.float32)                        # (tt, 128) f32
    s = jnp.maximum(s, _MIN_LEVEL)
    s = jnp.log(s) * _LOG_SCALE + _LOG_BIAS
    out_ref[...] = jnp.clip(s, -4.0, 4.0)


def _mel_pallas(frames_bf16, basis_bf16, melfb_bf16, tile_t):
    t_pad = frames_bf16.shape[0]
    n_tiles = t_pad // tile_t
    cost = pl.CostEstimate(
        flops=2 * t_pad * (K_PAD * 2 * C_PAD + C_PAD * MEL_PAD),
        transcendentals=t_pad * (C_PAD + MEL_PAD),
        bytes_accessed=(t_pad * K_PAD * 2 + t_pad * MEL_PAD * 4
                        + (K_PAD * 2 * C_PAD + C_PAD * MEL_PAD) * 2),
    )
    return pl.pallas_call(
        mel_spectrogram_kernel,
        out_shape=jax.ShapeDtypeStruct((t_pad, MEL_PAD), jnp.float32),
        grid_spec=pltpu.PrefetchScalarGridSpec(
            num_scalar_prefetch=0,
            grid=(n_tiles,),
            in_specs=[
                pl.BlockSpec((tile_t, K_PAD), lambda i: (i, 0)),        # frames: streamed
                pl.BlockSpec((K_PAD, 2 * C_PAD), lambda i: (0, 0)),     # basis: resident
                pl.BlockSpec((C_PAD, MEL_PAD), lambda i: (0, 0)),       # melfb: resident
            ],
            out_specs=pl.BlockSpec((tile_t, MEL_PAD), lambda i: (i, 0)),
        ),
        compiler_params=pltpu.CompilerParams(
            dimension_semantics=("parallel",),
            vmem_limit_bytes=32 * 1024 * 1024,
        ),
        cost_estimate=cost,
    )(frames_bf16, basis_bf16, melfb_bf16)


def _choose_tiling(T):
    """Balanced tiles, >= 2 grid programs (v7x megacore), cap ~512 rows/tile."""
    n_tiles = max(2, _cdiv(T, 512))
    tile_t = _round_up(_cdiv(T, n_tiles), 16)
    return tile_t, tile_t * n_tiles


# ----------------------------------------------------------------------------
# SADModel.get_mel_spectrogram — jitted JAX glue (preemphasis, reflect pad,
# dedup framing without a gather, window extraction) around the Pallas hot path.
# ----------------------------------------------------------------------------
def _get_mel_spectrogram_impl(wav):
    """wav: (B, S) float32, B = num video frames."""
    B = wav.shape[0]
    # torchaudio.functional.preemphasis(wav, 0.97): y[0]=x[0], y[n]=x[n]-0.97*x[n-1]
    # (applied per-row of (B, S) before reshape(1, -1), matching the reference)
    w = wav - 0.97 * jnp.concatenate([jnp.zeros_like(wav[:, :1]), wav[:, :-1]], axis=1)
    sig = w.reshape(-1)
    # F.pad(..., (L/2, L/2), mode='reflect')
    sig = jnp.pad(sig, (FILTER_LENGTH // 2, FILTER_LENGTH // 2), mode='reflect')
    n = sig.shape[0]
    T = (n - FILTER_LENGTH) // HOP_LENGTH + 1

    # Cast to bf16 *before* building the 4x-duplicated frames array: halves the
    # framing HBM traffic, identical values reach the MXU.
    sig = sig.astype(jnp.bfloat16)

    # Deduplicated framing: hop=200, win=800 -> frame t = rows[t] ++ rows[t+1]
    # ++ rows[t+2] ++ rows[t+3] of the (T+3, 200) row view. No XLA gather.
    rows = sig[: (T + 3) * HOP_LENGTH].reshape(T + 3, HOP_LENGTH)
    frames = jnp.concatenate(
        [rows[0:T], rows[1:T + 1], rows[2:T + 2], rows[3:T + 3]], axis=1)  # (T, 800) bf16

    tile_t, t_pad = _choose_tiling(T)
    frames = jnp.pad(frames, ((0, t_pad - T), (0, K_PAD - FILTER_LENGTH)))

    out = _mel_pallas(frames, _BASIS_BF16, _MEL_FB_BF16, tile_t)   # (t_pad, 128) f32

    # Per-video-frame mel windows. Indices are static at trace time; gather from
    # the lane-dense (t_pad, 128) slab, then slice to the 80 real mel channels.
    starts = [int(80.0 * ((i - 2) / 25.0)) for i in range(B)]
    idx = np.asarray(starts, dtype=np.int64)[:, None] + np.arange(MEL_STEP_SIZE)[None, :]
    idx = np.clip(idx, 0, T - 1).astype(np.int32)                  # (B, 16)
    m = jnp.take(out, jnp.asarray(idx), axis=0)                    # (B, 16, 128)
    mels = jnp.transpose(m[..., :N_MELS], (0, 2, 1))[None]         # (1, B, 80, 16)
    return mels


get_mel_spectrogram = jax.jit(_get_mel_spectrogram_impl)


# ----------------------------------------------------------------------------
# Helper functions from the reference (pure indexing / host-side, plain JAX).
# ----------------------------------------------------------------------------
def get_image_3dmm(image_exp_pose, semantic_radius: int = 13):
    coeff = jnp.concatenate([image_exp_pose] * (semantic_radius * 2 + 1), axis=0)
    return coeff.T


def get_audio_3dmm(audio_exp_pose, frame_index: int, semantic_radius: int = 13):
    num_frames = audio_exp_pose.shape[0]
    seq = range(frame_index - semantic_radius, frame_index + semantic_radius + 1)
    index = np.array([min(max(item, 0), num_frames - 1) for item in seq], dtype=np.int32)
    return audio_exp_pose[jnp.asarray(index), :].T


def get_blink_seq_randomly(num_frames: int, seed: int = 0):
    ratio = np.zeros((num_frames, 1), dtype=np.float32)
    if num_frames <= 20:
        return jnp.asarray(ratio)
    rng = np.random.default_rng(seed)
    frame_id = 0
    for frame_id in range(num_frames):
        start = int(rng.integers(min(10, num_frames), min(int(num_frames / 2), 70)))
        if frame_id + start + 5 <= num_frames - 1:
            ratio[frame_id + start:frame_id + start + 5, 0] = np.array(
                [0.5, 0.9, 1.0, 0.9, 0.5], dtype=np.float32)
            frame_id = frame_id + start + 5
        else:
            break
    return jnp.asarray(ratio)


# TODO(synk): Image2Coeff / Audio2Coeff / SADKernel / KeypointDetector / MappingNet
# are referenced by SADModel.forward but their definitions are not provided in the
# source, so the full per-frame rendering loop cannot be translated faithfully.


if __name__ == "__main__":
    key = jax.random.PRNGKey(0)
    k_audio, k_pose = jax.random.split(key)

    B, S = 2, 1600                    # 2 video frames, 0.1 s of 16 kHz audio each
    audio = 0.1 * jax.random.normal(k_audio, (B, S), dtype=jnp.float32)

    mels = get_mel_spectrogram(audio)
    mels = jax.block_until_ready(mels)
    assert mels.shape == (1, B, 80, MEL_STEP_SIZE), mels.shape
    assert bool(jnp.all(jnp.isfinite(mels)))
    assert bool(jnp.all(mels >= -4.0)) and bool(jnp.all(mels <= 4.0))

    # exercise the indexing helpers used by forward()
    image_exp_pose = jax.random.normal(k_pose, (1, 70), dtype=jnp.float32)
    img3dmm = get_image_3dmm(image_exp_pose)          # (70, 27)
    assert img3dmm.shape == (70, 27)
    audio_exp_pose = jnp.tile(image_exp_pose, (B, 1))
    aud3dmm = get_audio_3dmm(audio_exp_pose, 0)       # (70, 27)
    assert aud3dmm.shape == (70, 27)
    ratio = jax.block_until_ready(get_blink_seq_randomly(B))
    assert ratio.shape == (B, 1)

    print("KERNEL_OK")
</pallas_src>

<mosaic_0001>
module attributes {stable_mosaic.version = 11 : i64} {
  func.func @mel_spectrogram_kernel(%arg0: i32, %arg1: memref<16x896xbf16, #tpu.memory_space<vmem>>, %arg2: memref<896x1024xbf16, #tpu.memory_space<vmem>>, %arg3: memref<512x128xbf16, #tpu.memory_space<vmem>>, %arg4: memref<16x128xf32, #tpu.memory_space<vmem>>) attributes {dimension_semantics = [#tpu.dimension_semantics<parallel>], iteration_bounds = array<i64: 2>, scalar_prefetch = 0 : i64, scratch_operands = 0 : i64, tpu.core_type = #tpu.core_type<tc>, window_params = [{transform_indices = @transform_0, window_bounds = array<i64: 16, 896>}, {pipeline_mode = #tpu.pipeline_mode<synchronous>, transform_indices = @transform_1, window_bounds = array<i64: 896, 1024>}, {pipeline_mode = #tpu.pipeline_mode<synchronous>, transform_indices = @transform_2, window_bounds = array<i64: 512, 128>}, {transform_indices = @transform_3, window_bounds = array<i64: 16, 128>}]} {
    %c0 = arith.constant 0 : index
    %c0_0 = arith.constant 0 : index
    %0 = vector.load %arg1[%c0, %c0_0] : memref<16x896xbf16, #tpu.memory_space<vmem>>, vector<16x896xbf16>
    %c0_1 = arith.constant 0 : index
    %c0_2 = arith.constant 0 : index
    %1 = vector.load %arg2[%c0_1, %c0_2] : memref<896x1024xbf16, #tpu.memory_space<vmem>>, vector<896x1024xbf16>
    %cst = arith.constant dense<0.000000e+00> : vector<16x1024xf32>
    %2 = tpu.matmul %0, %1, %cst {dimension_numbers = #tpu.dot_dimension_numbers<[1], [0], [0], [1], [0, 0, 1, 1], [], []>} : vector<16x896xbf16>, vector<896x1024xbf16>, vector<16x1024xf32> -> vector<16x1024xf32>
    %3 = vector.extract_strided_slice %2 {offsets = [0, 0], sizes = [16, 512], strides = [1, 1]} : vector<16x1024xf32> to vector<16x512xf32>
    %4 = vector.extract_strided_slice %2 {offsets = [0, 512], sizes = [16, 512], strides = [1, 1]} : vector<16x1024xf32> to vector<16x512xf32>
    %5 = arith.mulf %3, %3 : vector<16x512xf32>
    %6 = arith.mulf %4, %4 : vector<16x512xf32>
    %7 = arith.addf %5, %6 : vector<16x512xf32>
    %8 = math.sqrt %7 : vector<16x512xf32>
    %9 = arith.truncf %8 : vector<16x512xf32> to vector<16x512xbf16>
    %c0_3 = arith.constant 0 : index
    %c0_4 = arith.constant 0 : index
    %10 = vector.load %arg3[%c0_3, %c0_4] : memref<512x128xbf16, #tpu.memory_space<vmem>>, vector<512x128xbf16>
    %cst_5 = arith.constant dense<0.000000e+00> : vector<16x128xf32>
    %11 = tpu.matmul %9, %10, %cst_5 {dimension_numbers = #tpu.dot_dimension_numbers<[1], [0], [0], [1], [0, 0, 1, 1], [], []>} : vector<16x512xbf16>, vector<512x128xbf16>, vector<16x128xf32> -> vector<16x128xf32>
    %cst_6 = arith.constant 9.999900e-06 : f32
    %12 = vector.broadcast %cst_6 : f32 to vector<16x128xf32>
    %13 = arith.maximumf %11, %12 : vector<16x128xf32>
    %14 = math.log %13 : vector<16x128xf32>
    %cst_7 = arith.constant 0.694871187 : f32
    %15 = vector.broadcast %cst_7 : f32 to vector<16x128xf32>
    %16 = arith.mulf %14, %15 : vector<16x128xf32>
    %cst_8 = arith.constant 2.400000e+00 : f32
    %17 = vector.broadcast %cst_8 : f32 to vector<16x128xf32>
    %18 = arith.addf %16, %17 : vector<16x128xf32>
    %cst_9 = arith.constant -4.000000e+00 : f32
    %cst_10 = arith.constant 4.000000e+00 : f32
    %19 = vector.broadcast %cst_9 : f32 to vector<16x128xf32>
    %20 = arith.maximumf %19, %18 : vector<16x128xf32>
    %21 = vector.broadcast %cst_10 : f32 to vector<16x128xf32>
    %22 = arith.minimumf %21, %20 : vector<16x128xf32>
    %c0_11 = arith.constant 0 : index
    %c0_12 = arith.constant 0 : index
    %23 = vector.load %arg4[%c0_11, %c0_12] : memref<16x128xf32, #tpu.memory_space<vmem>>, vector<16x128xf32>
    tpu.vector_store %arg4[%c0_11, %c0_12], %22 {strides = array<i32>} : memref<16x128xf32, #tpu.memory_space<vmem>>, vector<16x128xf32>,
    return
  }
  func.func @transform_0(%arg0: i32) -> (i32, i32) {
    %c0_i32 = arith.constant 0 : i32
    %c0_i32_0 = arith.constant 0 : i32
    return %arg0, %c0_i32 : i32, i32
  }
  func.func @transform_1(%arg0: i32) -> (i32, i32) {
    %c0_i32 = arith.constant 0 : i32
    %c0_i32_0 = arith.constant 0 : i32
    %c0_i32_1 = arith.constant 0 : i32
    return %c0_i32, %c0_i32_0 : i32, i32
  }
  func.func @transform_2(%arg0: i32) -> (i32, i32) {
    %c0_i32 = arith.constant 0 : i32
    %c0_i32_0 = arith.constant 0 : i32
    %c0_i32_1 = arith.constant 0 : i32
    return %c0_i32, %c0_i32_0 : i32, i32
  }
  func.func @transform_3(%arg0: i32) -> (i32, i32) {
    %c0_i32 = arith.constant 0 : i32
    %c0_i32_0 = arith.constant 0 : i32
    return %arg0, %c0_i32 : i32, i32
  }
}

</mosaic_0001>

<llo_original>
// kernel: reverse
$region0: #{reverse}
  %s0 = inlined_call_operand.vmem [shape: bf16[512], index: 0, kind: input, shape index: {}]
  %s1 = inlined_call_operand.vmem [shape: bf16[512], index: 1, kind: output, shape index: {}]
  %v2 = vlaneseq
  %v3 = vsub.s32 127, %v2
  %4 = vset.pattern.permute.xlu0 %v3
  $region1: #{reverse} parent=0
    #allocation0 [shape = 'u8[8192]{0}', space=vmem, size = 0x2000, scoped, tag = 'operand span for operand 0']
    #allocation1 [shape = 'u8[2048]{0}', space=vmem, size = 0x800, scoped, tag = 'packed  for operand 0']
    #allocation2 [shape = 'u8[4096]{0}', space=vmem, size = 0x1000, scoped, tag = 'operand span for operand 1']
    #allocation3 [shape = 'u8[1024]{0}', space=vmem, size = 0x400, scoped, tag = 'packed  for operand 1']
    %s5 = scalar_lea.vmem [#allocation1], 2
    // Predicated region
    $region2: #{reverse} parent=1 // pred_check
      _
    $region3: #{reverse} parent=1 // pred_check_branch
      %7 = sbr.rel (0) target = $region5
    $region4: #{reverse} parent=1 // pred_region
      // Predicated region
      $region6: #{reverse} parent=4 // pred_check
        _
      $region7: #{reverse} parent=4 // pred_check_branch
        %9 = sbr.rel target = $region9
      $region8: #{reverse} parent=4 // pred_region
        // Predicated region
        $region21: #{reverse} parent=8 // pred_check
          _
        $region22: #{reverse} parent=8 // pred_check_branch
          %24 = sbr.rel (0) target = $region24
        $region23: #{reverse} parent=8 // pred_region
          loop: start=0, step=1, limit=1
          $region25: #{reverse} parent=23 // loop_pre_header
            _
          $region26: #{reverse} parent=23 // loop_header
            %s27 = sphi 0, %s31
            %p28 = scmp.ge.s32.totalorder %s27, 1
            %s32 = sphi %s0, %s0
            %s33 = sphi %s5, %s5
          $region27: #{reverse} parent=23 // loop_header_branch
            %30 = sbr.rel (%p28) target = $region31
          $region28: #{reverse} parent=23 // loop_body
            %v34 = vld [vmem:[%s32] sm:$0x3]
            %35 = vst [vmem:[%s33] sm:$0x3] %v34
          $region29: #{reverse} parent=23 // loop_footer
            %s31 = sadd.s32 1, %s27
          $region30: #{reverse} parent=23 // loop_footer_branch
            %26 = sbr.rel target = $region26
          $region31: #{reverse} parent=23 // loop_exit
            _
        $region24: #{reverse} parent=8 // pred_fallthru
          _
      $region9: #{reverse} parent=4 // pred_fallthru
        _
      // Predicated region
      $region10: #{reverse} parent=4 // pred_check
        _
      $region11: #{reverse} parent=4 // pred_check_branch
        %11 = sbr.rel (0) target = $region13
      $region12: #{reverse} parent=4 // pred_region
        loop: start=0, step=1, limit=1
        $region14: #{reverse} parent=12 // loop_pre_header
          _
        $region15: #{reverse} parent=12 // loop_header
          %s14 = sphi 0, %s18
          %p15 = scmp.ge.s32.totalorder %s14, 1
          %s19 = sphi %s0, %s0
          %s20 = sphi %s5, %s5
        $region16: #{reverse} parent=12 // loop_header_branch
          %17 = sbr.rel (%p15) target = $region20
        $region17: #{reverse} parent=12 // loop_body
          %v21 = vld [vmem:[%s19] sm:$0x3]
          %22 = vst [vmem:[%s20] sm:$0x3] %v21
        $region18: #{reverse} parent=12 // loop_footer
          %s18 = sadd.s32 1, %s14
        $region19: #{reverse} parent=12 // loop_footer_branch
          %13 = sbr.rel target = $region15
        $region20: #{reverse} parent=12 // loop_exit
          _
      $region13: #{reverse} parent=4 // pred_fallthru
        _
    $region5: #{reverse} parent=1 // pred_fallthru
      _
    %36 = vnop
    %s38 = smul.u32 2, 2
    %s39 = sshllo.u32 0, %s38
    %s40 = scalar_lea.vmem [#allocation1], 2
    %s41 = sshrl.u32 %s39, 1
    %s42 = sor.u32 %s39, %s41
    %s43 = sand.u32 %s42, 85
    %s44 = sshrl.u32 %s43, 1
    %s45 = sor.u32 %s43, %s44
    %s46 = sand.u32 51, %s45
    %s47 = sshrl.u32 %s46, 2
    %s48 = sor.u32 %s46, %s47
    %s49 = sand.u32 15, %s48
    %v50 = vld [vmem:[%s40] sm:%s49]
    %v51 = vunpack.c.l.bf16 %v50
    %v52 = vunpack.c.h.bf16 %v50
    %s53 = scalar_lea.vmem [#allocation0], 8
    %54 = vst [vmem:[%s53] sm:%s39] %v51
    %s55 = sshrl.u32 %s39, 1
    %s56 = sor.u32 %s39, %s55
    %s57 = sand.u32 %s56, 85
    %s58 = sshrl.u32 %s57, 1
    %s59 = sor.u32 %s57, %s58
    %s60 = sand.u32 51, %s59
    %s61 = sshrl.u32 %s60, 2
    %s62 = sor.u32 %s60, %s61
    %s63 = sand.u32 15, %s62
    %v64 = vld [vmem:[#allocation1] sm:%s63]
    %v65 = vunpack.c.l.bf16 %v64
    %v66 = vunpack.c.h.bf16 %v64
    %67 = vst [vmem:[#allocation0] sm:%s39] %v65
    %s68 = scalar_lea.vmem [#allocation0], 7
    %v69 = vld [vmem:[%s68] ss:$-1 sm:$0xff]
    %v70 = vrot.slane %v69, 4
    %71 = vperm.xlu0 %4, %v70
    %v72 = vpop.permute.xlu0 %71
    %73 = vst [vmem:[#allocation2] sm:$0xff] %v72
    %s74 = scalar_lea.vmem [#allocation0], 8
    %s75 = scalar_lea.vmem %s74, 7 [#allocation0]
    %v76 = vld [vmem:[%s75] ss:$-1 sm:$0xff]
    %v77 = vrot.slane %v76, 4
    %78 = vperm.xlu0 %4, %v77
    %v79 = vpop.permute.xlu0 %78
    %v80 = vlaneseq
    %v81 = vshrl.u32 %v80, 7
    %vm82 = vcmp.lt.s32.totalorder %v81, 4
    %83 = vst.msk [vmem:[#allocation2] sm:$0xff] %vm82, %v79
    %s85 = smul.u32 2, 2
    %s86 = sshllo.u32 0, %s85
    %s87 = sshrl.u32 %s85, 1
    %v88 = vld [vmem:[#allocation2] sm:%s86]
    %v89 = vpack.c.bf16 0.0, %v88
    %s90 = sshllo.u32 0, %s87
    %91 = vst [vmem:[#allocation3] sm:%s90] %v89
    // Predicated region
    $region32: #{reverse} parent=1 // pred_check
      _
    $region33: #{reverse} parent=1 // pred_check_branch
      %93 = sbr.rel (0) target = $region35
    $region34: #{reverse} parent=1 // pred_region
      // Predicated region
      $region36: #{reverse} parent=34 // pred_check
        _
      $region37: #{reverse} parent=34 // pred_check_branch
        %95 = sbr.rel target = $region39
      $region38: #{reverse} parent=34 // pred_region
        // Predicated region
        $region51: #{reverse} parent=38 // pred_check
          _
        $region52: #{reverse} parent=38 // pred_check_branch
          %110 = sbr.rel (0) target = $region54
        $region53: #{reverse} parent=38 // pred_region
          loop: start=0, step=1, limit=1
          $region55: #{reverse} parent=53 // loop_pre_header
            _
          $region56: #{reverse} parent=53 // loop_header
            %s113 = sphi 0, %s117
            %p114 = scmp.ge.s32.totalorder %s113, 1
            %s118 = sphi [#allocation3], [#allocation3]
            %s119 = sphi %s1, %s1
          $region57: #{reverse} parent=53 // loop_header_branch
            %116 = sbr.rel (%p114) target = $region61
          $region58: #{reverse} parent=53 // loop_body
            %v120 = vld [vmem:[%s118] sm:$0x3]
            %121 = vst [vmem:[%s119] sm:$0x3] %v120
          $region59: #{reverse} parent=53 // loop_footer
            %s117 = sadd.s32 1, %s113
          $region60: #{reverse} parent=53 // loop_footer_branch
            %112 = sbr.rel target = $region56
          $region61: #{reverse} parent=53 // loop_exit
            _
        $region54: #{reverse} parent=38 // pred_fallthru
          _
      $region39: #{reverse} parent=34 // pred_fallthru
        _
      // Predicated region
      $region40: #{reverse} parent=34 // pred_check
        _
      $region41: #{reverse} parent=34 // pred_check_branch
        %97 = sbr.rel (0) target = $region43
      $region42: #{reverse} parent=34 // pred_region
        loop: start=0, step=1, limit=1
        $region44: #{reverse} parent=42 // loop_pre_header
          _
        $region45: #{reverse} parent=42 // loop_header
          %s100 = sphi 0, %s104
          %p101 = scmp.ge.s32.totalorder %s100, 1
          %s105 = sphi [#allocation3], [#allocation3]
          %s106 = sphi %s1, %s1
        $region46: #{reverse} parent=42 // loop_header_branch
          %103 = sbr.rel (%p101) target = $region50
        $region47: #{reverse} parent=42 // loop_body
          %v107 = vld [vmem:[%s105] sm:$0x3]
          %108 = vst [vmem:[%s106] sm:$0x3] %v107
        $region48: #{reverse} parent=42 // loop_footer
          %s104 = sadd.s32 1, %s100
        $region49: #{reverse} parent=42 // loop_footer_branch
          %99 = sbr.rel target = $region45
        $region50: #{reverse} parent=42 // loop_exit
          _
      $region43: #{reverse} parent=34 // pred_fallthru
        _
    $region35: #{reverse} parent=1 // pred_fallthru
      _
    %122 = vnop

// kernel: _get_mel_spectrogram_impl.1
$region0: #{_get_mel_spectrogram_impl.1}
  #allocation0 [shape = 'u32[]', space=smem, size = 0x4, offset = 0x4, fixed_abs, tag = 'smem constant byte address 0x4 - core index']
  #allocation1 [shape = 'u32[144,128]{1,0:T(1,128)}', space=vmem, size = 0x12000, scoped, tag = 'internal scratch']
  %s0 = inlined_call_operand.vmem [shape: bf16[32,896], index: 0, kind: input, shape index: {}]
  %s1 = inlined_call_operand.vmem [shape: bf16[896,1024], index: 1, kind: input, shape index: {}]
  %s2 = inlined_call_operand.vmem [shape: bf16[512,128], index: 2, kind: input, shape index: {}]
  %s3 = inlined_call_operand.vmem [shape: f32[32,128], index: 3, kind: output, shape index: {}]
  %s4 = sld [smem:[#allocation0]]
  $region45: #{_get_mel_spectrogram_impl.1} parent=0
    _
  %s6 = ssub.s32 1, %s4
  %s7 = scalar_select 0, %s6, %s4
  loop: start=0, step=1, limit=4
  $region2: #{_get_mel_spectrogram_impl.1} parent=0 // loop_pre_header
    _
  $region3: #{_get_mel_spectrogram_impl.1} parent=0 // loop_header
    %s9 = sphi 0, %s13
    %p10 = scmp.ge.s32.totalorder %s9, 4
    %s19 = sphi 0, %s21
    %s22 = sphi 0, %s19
    %s23 = sphi 0, %s22
    %s39 = sphi 0, %s23
    %s43 = sphi 0, %s43
    %s45 = sphi 0, %s43
    %s46 = sphi 0, %s45
    %s60 = sphi 0, %s46
    %s64 = sphi 0, %s64
    %s66 = sphi 0, %s64
    %s67 = sphi 0, %s66
    %s81 = sphi 0, %s67
    %s87 = sphi 0, %s89
    %s90 = sphi 0, %s87
    %s91 = sphi 0, %s90
    %s107 = sphi 0, %s91
  $region4: #{_get_mel_spectrogram_impl.1} parent=0 // loop_header_branch
    %12 = sbr.rel (%p10) target = $region8
  $region5: #{_get_mel_spectrogram_impl.1} parent=0 // loop_body
    %s14 = ssub.s32 %s9, 1
    %s15 = ssub.s32 %s9, 2
    %s16 = sadd.s32 %s9, 1
    %s17 = ssub.s32 %s9, %s16
    %p18 = scmp.eq.s32.totalorder %s17, 0
    %s20 = sadd.s32 %s19, 1
    %s21 = scalar_select %p18, %s19, %s20
    %p24 = pneg %p18
    %p25 = scmp.eq.s32.totalorder %s9, 1
    %p26 = por %p24, %p25
    %p27 = scmp.ne.s32.totalorder %s19, %s22
    %p28 = scmp.eq.s32.totalorder %s9, 0
    %p29 = por %p27, %p28
    %p30 = scmp.ne.s32.totalorder %s19, %s22
    %p31 = scmp.eq.s32.totalorder %s14, 1
    %p32 = por %p30, %p31
    %p33 = scmp.ne.s32.totalorder %s22, %s23
    %p34 = scmp.eq.s32.totalorder %s14, 0
    %p35 = por %p33, %p34
    %p36 = scmp.ne.s32.totalorder %s22, %s23
    %p37 = scmp.eq.s32.totalorder %s15, 1
    %p38 = por %p36, %p37
    %p40 = scmp.ne.s32.totalorder %s23, %s39
    %p41 = scmp.eq.s32.totalorder %s15, 0
    %p42 = por %p40, %p41
    %s44 = sadd.s32 %s43, 1
    %p47 = scmp.eq.s32.totalorder %s9, 1
    %p48 = scmp.ne.s32.totalorder %s43, %s45
    %p49 = scmp.eq.s32.totalorder %s9, 0
    %p50 = por %p48, %p49
    %p51 = scmp.ne.s32.totalorder %s43, %s45
    %p52 = scmp.eq.s32.totalorder %s14, 1
    %p53 = por %p51, %p52
    %p54 = scmp.ne.s32.totalorder %s45, %s46
    %p55 = scmp.eq.s32.totalorder %s14, 0
    %p56 = por %p54, %p55
    %p57 = scmp.ne.s32.totalorder %s45, %s46
    %p58 = scmp.eq.s32.totalorder %s15, 1
    %p59 = por %p57, %p58
    %p61 = scmp.ne.s32.totalorder %s46, %s60
    %p62 = scmp.eq.s32.totalorder %s15, 0
    %p63 = por %p61, %p62
    %s65 = sadd.s32 %s64, 1
    %p68 = scmp.eq.s32.totalorder %s9, 1
    %p69 = scmp.ne.s32.totalorder %s64, %s66
    %p70 = scmp.eq.s32.totalorder %s9, 0
    %p71 = por %p69, %p70
    %p72 = scmp.ne.s32.totalorder %s64, %s66
    %p73 = scmp.eq.s32.totalorder %s14, 1
    %p74 = por %p72, %p73
    %p75 = scmp.ne.s32.totalorder %s66, %s67
    %p76 = scmp.eq.s32.totalorder %s14, 0
    %p77 = por %p75, %p76
    %p78 = scmp.ne.s32.totalorder %s66, %s67
    %p79 = scmp.eq.s32.totalorder %s15, 1
    %p80 = por %p78, %p79
    %p82 = scmp.ne.s32.totalorder %s67, %s81
    %p83 = scmp.eq.s32.totalorder %s15, 0
    %p84 = por %p82, %p83
    %s85 = ssub.s32 %s9, %s16
    %p86 = scmp.eq.s32.totalorder %s85, 0
    %s88 = sadd.s32 %s87, 1
    %s89 = scalar_select %p86, %s87, %s88
    %p92 = pneg %p86
    %p93 = scmp.eq.s32.totalorder %s9, 1
    %p94 = por %p92, %p93
    %p95 = scmp.ne.s32.totalorder %s87, %s90
    %p96 = scmp.eq.s32.totalorder %s9, 0
    %p97 = por %p95, %p96
    %p98 = scmp.ne.s32.totalorder %s87, %s90
    %p99 = scmp.eq.s32.totalorder %s14, 1
    %p100 = por %p98, %p99
    %p101 = scmp.ne.s32.totalorder %s90, %s91
    %p102 = scmp.eq.s32.totalorder %s14, 0
    %p103 = por %p101, %p102
    %p104 = scmp.ne.s32.totalorder %s90, %s91
    %p105 = scmp.eq.s32.totalorder %s15, 1
    %p106 = por %p104, %p105
    %p108 = scmp.ne.s32.totalorder %s91, %s107
    %p109 = scmp.eq.s32.totalorder %s15, 0
    %p110 = por %p108, %p109
    %p111 = scmp.le.s32.totalorder 1, %s9
    %p112 = scmp.lt.s32.totalorder %s9, 3
    %p113 = pnand %p111, %p112
    %p114 = pneg %p113
    // Predicated region
    $region9: #{_get_mel_spectrogram_impl.1} parent=5 // pred_check
      _
    $region10: #{_get_mel_spectrogram_impl.1} parent=5 // pred_check_branch
      %116 = sbr.rel (%p113) target = $region12
    $region11: #{_get_mel_spectrogram_impl.1} parent=5 // pred_region
      %s117 = ssub.s32 %s9, 1
      // Predicated region
      $region13: #{_get_mel_spectrogram_impl.1} parent=11 // pred_check
        %p118 = pneg %p56
      $region14: #{_get_mel_spectrogram_impl.1} parent=11 // pred_check_branch
        %120 = sbr.rel (%p118) target = $region16
      $region15: #{_get_mel_spectrogram_impl.1} parent=11 // pred_region
        _
      $region16: #{_get_mel_spectrogram_impl.1} parent=11 // pred_fallthru
        _
      // Predicated region
      $region17: #{_get_mel_spectrogram_impl.1} parent=11 // pred_check
        %p121 = pneg %p77
      $region18: #{_get_mel_spectrogram_impl.1} parent=11 // pred_check_branch
        %123 = sbr.rel (%p121) target = $region20
      $region19: #{_get_mel_spectrogram_impl.1} parent=11 // pred_region
        _
      $region20: #{_get_mel_spectrogram_impl.1} parent=11 // pred_fallthru
        _
    $region12: #{_get_mel_spectrogram_impl.1} parent=5 // pred_fallthru
      _
    %p124 = scmp.lt.s32.totalorder %s9, 2
    // Predicated region
    $region21: #{_get_mel_spectrogram_impl.1} parent=5 // pred_check
      %p125 = pneg %p124
    $region22: #{_get_mel_spectrogram_impl.1} parent=5 // pred_check_branch
      %127 = sbr.rel (%p125) target = $region24
    $region23: #{_get_mel_spectrogram_impl.1} parent=5 // pred_region
      // Predicated region
      $region25: #{_get_mel_spectrogram_impl.1} parent=23 // pred_check
        %p128 = pneg %p29
      $region26: #{_get_mel_spectrogram_impl.1} parent=23 // pred_check_branch
        %130 = sbr.rel (%p128) target = $region28
      $region27: #{_get_mel_spectrogram_impl.1} parent=23 // pred_region
        %s131 = smul.u32 2, %s9
        %p132 = scmp.lt.s32.totalorder %s131, 3
        %s133 = scalar_select %p132, %s131, 3
        %s134 = smul.addr %s133, 7
        %s135 = smul.addr %s134, 4
        %s136 = scalar_lea.vmem %s0, %s135
        %s137 = smul.u32 2, %s9
      $region28: #{_get_mel_spectrogram_impl.1} parent=23 // pred_fallthru
        _
    $region24: #{_get_mel_spectrogram_impl.1} parent=5 // pred_fallthru
      _
    %p138 = scmp.le.s32.totalorder 1, %s9
    %p139 = scmp.lt.s32.totalorder %s9, 3
    %p140 = pnand %p138, %p139
    %p141 = pneg %p140
    // Predicated region
    $region29: #{_get_mel_spectrogram_impl.1} parent=5 // pred_check
      _
    $region30: #{_get_mel_spectrogram_impl.1} parent=5 // pred_check_branch
      %143 = sbr.rel (%p140) target = $region32
    $region31: #{_get_mel_spectrogram_impl.1} parent=5 // pred_region
      %s144 = ssub.s32 %s9, 1
      %s145 = smul.u32 2, %s14
      %p146 = scmp.lt.s32.totalorder %s145, 3
      %s147 = scalar_select %p146, %s145, 3
      %s148 = smul.addr %s147, 7
      %s149 = smul.addr %s148, 4
      %s150 = scalar_lea.vmem %s0, %s149
      %p151 = pneg %p35
      %p152 = pneg %p32
      %p153 = pneg %p56
      %p154 = pneg %p53
      %p155 = pneg %p77
      %p156 = pneg %p74
      %p157 = pneg %p103
      %p158 = pneg %p100
      %s159 = smul.u32 2, %s14
      %p160 = scmp.lt.s32.totalorder %s159, 3
      %s161 = scalar_select %p160, %s159, 3
      %s162 = smul.addr %s161, 8
      %s163 = scalar_lea.vmem %s3, %s162
      %s164 = smul.u32 2, %s14
      %p165 = scmp.lt.s32.totalorder %s164, 3
      %s166 = scalar_select %p165, %s164, 3
      %s167 = smul.addr %s166, 7
      %s168 = smul.addr %s167, 4
      %s169 = scalar_lea.vmem %s0, %s168
      %s170 = smul.u32 2, %s14
      %s171 = smul.u32 2, %s14
      %p172 = scmp.lt.s32.totalorder %s171, 3
      %s173 = scalar_select %p172, %s171, 3
      %s174 = smul.addr %s173, 8
      %s175 = scalar_lea.vmem %s3, %s174
      %s176 = smul.u32 2, %s14
      %v178 = vld [vmem:[%s169] sm:$0xff]
      %v179 = vld [vmem:[%s169 + $0x8] sm:$0xff]
      %v180 = vld [vmem:[%s169 + $0x10] sm:$0xff]
      %v181 = vld [vmem:[%s169 + $0x18] sm:$0xf]
      %v182 = vld [vmem:[%s169 + $0x1c] sm:$0xff]
      %v183 = vld [vmem:[%s169 + $0x24] sm:$0xff]
      %v184 = vld [vmem:[%s169 + $0x2c] sm:$0xff]
      %v185 = vld [vmem:[%s169 + $0x34] sm:$0xf]
      %v186 = vld [vmem:[%s1] sm:$0xff]
      %v187 = vld [vmem:[%s1 + $0x8] sm:$0xff]
      %v188 = vld [vmem:[%s1 + $0x10] sm:$0xff]
      %v189 = vld [vmem:[%s1 + $0x18] sm:$0xff]
      %v190 = vld [vmem:[%s1 + $0x20] sm:$0xff]
      %v191 = vld [vmem:[%s1 + $0x28] sm:$0xff]
      %v192 = vld [vmem:[%s1 + $0x30] sm:$0xff]
      %v193 = vld [vmem:[%s1 + $0x38] sm:$0xff]
      %v194 = vld [vmem:[%s1 + $0x40] sm:$0xff]
      %v195 = vld [vmem:[%s1 + $0x48] sm:$0xff]
      %v196 = vld [vmem:[%s1 + $0x50] sm:$0xff]
      %v197 = vld [vmem:[%s1 + $0x58] sm:$0xff]
      %v198 = vld [vmem:[%s1 + $0x60] sm:$0xff]
      %v199 = vld [vmem:[%s1 + $0x68] sm:$0xff]
      %v200 = vld [vmem:[%s1 + $0x70] sm:$0xff]
      %v201 = vld [vmem:[%s1 + $0x78] sm:$0xff]
      %v202 = vld [vmem:[%s1 + $0x80] sm:$0xff]
      %v203 = vld [vmem:[%s1 + $0x88] sm:$0xff]
      %v204 = vld [vmem:[%s1 + $0x90] sm:$0xff]
      %v205 = vld [vmem:[%s1 + $0x98] sm:$0xff]
      %v206 = vld [vmem:[%s1 + $0xa0] sm:$0xff]
      %v207 = vld [vmem:[%s1 + $0xa8] sm:$0xff]
      %v208 = vld [vmem:[%s1 + $0xb0] sm:$0xff]
      %v209 = vld [vmem:[%s1 + $0xb8] sm:$0xff]
      %v210 = vld [vmem:[%s1 + $0xc0] sm:$0xff]
      %v211 = vld [vmem:[%s1 + $0xc8] sm:$0xff]
      %v212 = vld [vmem:[%s1 + $0xd0] sm:$0xff]
      %v213 = vld [vmem:[%s1 + $0xd8] sm:$0xff]
      %v214 = vld [vmem:[%s1 + $0xe0] sm:$0xff]
      %v215 = vld [vmem:[%s1 + $0xe8] sm:$0xff]
      %v216 = vld [vmem:[%s1 + $0xf0] sm:$0xff]
      %v217 = vld [vmem:[%s1 + $0xf8] sm:$0xff]
      %v218 = vld [vmem:[%s1 + $0x100] sm:$0xff]
      %v219 = vld [vmem:[%s1 + $0x108] sm:$0xff]
      %v220 = vld [vmem:[%s1 + $0x110] sm:$0xff]
      %v221 = vld [vmem:[%s1 + $0x118] sm:$0xff]
      %v222 = vld [vmem:[%s1 + $0x120] sm:$0xff]
      %v223 = vld [vmem:[%s1 + $0x128] sm:$0xff]
      %v224 = vld [vmem:[%s1 + $0x130] sm:$0xff]
      %v225 = vld [vmem:[%s1 + $0x138] sm:$0xff]
      %v226 = vld [vmem:[%s1 + $0x140] sm:$0xff]
      %v227 = vld [vmem:[%s1 + $0x148] sm:$0xff]
      %v228 = vld [vmem:[%s1 + $0x150] sm:$0xff]
      %v229 = vld [vmem:[%s1 + $0x158] sm:$0xff]
      %v230 = vld [vmem:[%s1 + $0x160] sm:$0xff]
      %v231 = vld [vmem:[%s1 + $0x168] sm:$0xff]
      %v232 = vld [vmem:[%s1 + $0x170] sm:$0xff]
      %v233 = vld [vmem:[%s1 + $0x178] sm:$0xff]
      %v234 = vld [vmem:[%s1 + $0x180] sm:$0xff]
      %v235 = vld [vmem:[%s1 + $0x188] sm:$0xff]
      %v236 = vld [vmem:[%s1 + $0x190] sm:$0xff]
      %v237 = vld [vmem:[%s1 + $0x198] sm:$0xff]
      %v238 = vld [vmem:[%s1 + $0x1a0] sm:$0xff]
      %v239 = vld [vmem:[%s1 + $0x1a8] sm:$0xff]
      %v240 = vld [vmem:[%s1 + $0x1b0] sm:$0xff]
      %v241 = vld [vmem:[%s1 + $0x1b8] sm:$0xff]
      %v242 = vld [vmem:[%s1 + $0x1c0] sm:$0xff]
      %v243 = vld [vmem:[%s1 + $0x1c8] sm:$0xff]
      %v244 = vld [vmem:[%s1 + $0x1d0] sm:$0xff]
      %v245 = vld [vmem:[%s1 + $0x1d8] sm:$0xff]
      %v246 = vld [vmem:[%s1 + $0x1e0] sm:$0xff]
      %v247 = vld [vmem:[%s1 + $0x1e8] sm:$0xff]
      %v248 = vld [vmem:[%s1 + $0x1f0] sm:$0xff]
      %v249 = vld [vmem:[%s1 + $0x1f8] sm:$0xff]
      %v250 = vld [vmem:[%s1 + $0x200] sm:$0xff]
      %v251 = vld [vmem:[%s1 + $0x208] sm:$0xff]
      %v252 = vld [vmem:[%s1 + $0x210] sm:$0xff]
      %v253 = vld [vmem:[%s1 + $0x218] sm:$0xff]
      %v254 = vld [vmem:[%s1 + $0x220] sm:$0xff]
      %v255 = vld [vmem:[%s1 + $0x228] sm:$0xff]
      %v256 = vld [vmem:[%s1 + $0x230] sm:$0xff]
      %v257 = vld [vmem:[%s1 + $0x238] sm:$0xff]
      %v258 = vld [vmem:[%s1 + $0x240] sm:$0xff]
      %v259 = vld [vmem:[%s1 + $0x248] sm:$0xff]
      %v260 = vld [vmem:[%s1 + $0x250] sm:$0xff]
      %v261 = vld [vmem:[%s1 + $0x258] sm:$0xff]
      %v262 = vld [vmem:[%s1 + $0x260] sm:$0xff]
      %v263 = vld [vmem:[%s1 + $0x268] sm:$0xff]
      %v264 = vld [vmem:[%s1 + $0x270] sm:$0xff]
      %v265 = vld [vmem:[%s1 + $0x278] sm:$0xff]
      %v266 = vld [vmem:[%s1 + $0x280] sm:$0xff]
      %v267 = vld [vmem:[%s1 + $0x288] sm:$0xff]
      %v268 = vld [vmem:[%s1 + $0x290] sm:$0xff]
      %v269 = vld [vmem:[%s1 + $0x298] sm:$0xff]
      %v270 = vld [vmem:[%s1 + $0x2a0] sm:$0xff]
      %v271 = vld [vmem:[%s1 + $0x2a8] sm:$0xff]
      %v272 = vld [vmem:[%s1 + $0x2b0] sm:$0xff]
      %v273 = vld [vmem:[%s1 + $0x2b8] sm:$0xff]
      %v274 = vld [vmem:[%s1 + $0x2c0] sm:$0xff]
      %v275 = vld [vmem:[%s1 + $0x2c8] sm:$0xff]
      %v276 = vld [vmem:[%s1 + $0x2d0] sm:$0xff]
      %v277 = vld [vmem:[%s1 + $0x2d8] sm:$0xff]
      %v278 = vld [vmem:[%s1 + $0x2e0] sm:$0xff]
      %v279 = vld [vmem:[%s1 + $0x2e8] sm:$0xff]
      %v280 = vld [vmem:[%s1 + $0x2f0] sm:$0xff]
      %v281 = vld [vmem:[%s1 + $0x2f8] sm:$0xff]
      %v282 = vld [vmem:[%s1 + $0x300] sm:$0xff]
      %v283 = vld [vmem:[%s1 + $0x308] sm:$0xff]
      %v284 = vld [vmem:[%s1 + $0x310] sm:$0xff]
      %v285 = vld [vmem:[%s1 + $0x318] sm:$0xff]
      %v286 = vld [vmem:[%s1 + $0x320] sm:$0xff]
      %v287 = vld [vmem:[%s1 + $0x328] sm:$0xff]
      %v288 = vld [vmem:[%s1 + $0x330] sm:$0xff]
      %v289 = vld [vmem:[%s1 + $0x338] sm:$0xff]
      %v290 = vld [vmem:[%s1 + $0x340] sm:$0xff]
      %v291 = vld [vmem:[%s1 + $0x348] sm:$0xff]
      %v292 = vld [vmem:[%s1 + $0x350] sm:$0xff]
      %v293 = vld [vmem:[%s1 + $0x358] sm:$0xff]
      %v294 = vld [vmem:[%s1 + $0x360] sm:$0xff]
      %v295 = vld [vmem:[%s1 + $0x368] sm:$0xff]
      %v296 = vld [vmem:[%s1 + $0x370] sm:$0xff]
      %v297 = vld [vmem:[%s1 + $0x378] sm:$0xff]
      %v298 = vld [vmem:[%s1 + $0x380] sm:$0xff]
      %v299 = vld [vmem:[%s1 + $0x388] sm:$0xff]
      %v300 = vld [vmem:[%s1 + $0x390] sm:$0xff]
      %v301 = vld [vmem:[%s1 + $0x398] sm:$0xff]
      %v302 = vld [vmem:[%s1 + $0x3a0] sm:$0xff]
      %v303 = vld [vmem:[%s1 + $0x3a8] sm:$0xff]
      %v304 = vld [vmem:[%s1 + $0x3b0] sm:$0xff]
      %v305 = vld [vmem:[%s1 + $0x3b8] sm:$0xff]
      %v306 = vld [vmem:[%s1 + $0x3c0] sm:$0xff]
      %v307 = vld [vmem:[%s1 + $0x3c8] sm:$0xff]
      %v308 = vld [vmem:[%s1 + $0x3d0] sm:$0xff]
      %v309 = vld [vmem:[%s1 + $0x3d8] sm:$0xff]
      %v310 = vld [vmem:[%s1 + $0x3e0] sm:$0xff]
      %v311 = vld [vmem:[%s1 + $0x3e8] sm:$0xff]
      %v312 = vld [vmem:[%s1 + $0x3f0] sm:$0xff]
      %v313 = vld [vmem:[%s1 + $0x3f8] sm:$0xff]
      %v314 = vld [vmem:[%s1 + $0x400] sm:$0xff]
      %v315 = vld [vmem:[%s1 + $0x408] sm:$0xff]
      %v316 = vld [vmem:[%s1 + $0x410] sm:$0xff]
      %v317 = vld [vmem:[%s1 + $0x418] sm:$0xff]
      %v318 = vld [vmem:[%s1 + $0x420] sm:$0xff]
      %v319 = vld [vmem:[%s1 + $0x428] sm:$0xff]
      %v320 = vld [vmem:[%s1 + $0x430] sm:$0xff]
      %v321 = vld [vmem:[%s1 + $0x438] sm:$0xff]
      %v322 = vld [vmem:[%s1 + $0x440] sm:$0xff]
      %v323 = vld [vmem:[%s1 + $0x448] sm:$0xff]
      %v324 = vld [vmem:[%s1 + $0x450] sm:$0xff]
      %v325 = vld [vmem:[%s1 + $0x458] sm:$0xff]
      %v326 = vld [vmem:[%s1 + $0x460] sm:$0xff]
      %v327 = vld [vmem:[%s1 + $0x468] sm:$0xff]
      %v328 = vld [vmem:[%s1 + $0x470] sm:$0xff]
      %v329 = vld [vmem:[%s1 + $0x478] sm:$0xff]
      %v330 = vld [vmem:[%s1 + $0x480] sm:$0xff]
      %v331 = vld [vmem:[%s1 + $0x488] sm:$0xff]
      %v332 = vld [vmem:[%s1 + $0x490] sm:$0xff]
      %v333 = vld [vmem:[%s1 + $0x498] sm:$0xff]
      %v334 = vld [vmem:[%s1 + $0x4a0] sm:$0xff]
      %v335 = vld [vmem:[%s1 + $0x4a8] sm:$0xff]
      %v336 = vld [vmem:[%s1 + $0x4b0] sm:$0xff]
      %v337 = vld [vmem:[%s1 + $0x4b8] sm:$0xff]
      %v338 = vld [vmem:[%s1 + $0x4c0] sm:$0xff]
      %v339 = vld [vmem:[%s1 + $0x4c8] sm:$0xff]
      %v340 = vld [vmem:[%s1 + $0x4d0] sm:$0xff]
      %v341 = vld [vmem:[%s1 + $0x4d8] sm:$0xff]
      %v342 = vld [vmem:[%s1 + $0x4e0] sm:$0xff]
      %v343 = vld [vmem:[%s1 + $0x4e8] sm:$0xff]
      %v344 = vld [vmem:[%s1 + $0x4f0] sm:$0xff]
      %v345 = vld [vmem:[%s1 + $0x4f8] sm:$0xff]
      %v346 = vld [vmem:[%s1 + $0x500] sm:$0xff]
      %v347 = vld [vmem:[%s1 + $0x508] sm:$0xff]
      %v348 = vld [vmem:[%s1 + $0x510] sm:$0xff]
      %v349 = vld [vmem:[%s1 + $0x518] sm:$0xff]
      %v350 = vld [vmem:[%s1 + $0x520] sm:$0xff]
      %v351 = vld [vmem:[%s1 + $0x528] sm:$0xff]
      %v352 = vld [vmem:[%s1 + $0x530] sm:$0xff]
      %v353 = vld [vmem:[%s1 + $0x538] sm:$0xff]
      %v354 = vld [vmem:[%s1 + $0x540] sm:$0xff]
      %v355 = vld [vmem:[%s1 + $0x548] sm:$0xff]
      %v356 = vld [vmem:[%s1 + $0x550] sm:$0xff]
      %v357 = vld [vmem:[%s1 + $0x558] sm:$0xff]
      %v358 = vld [vmem:[%s1 + $0x560] sm:$0xff]
      %v359 = vld [vmem:[%s1 + $0x568] sm:$0xff]
      %v360 = vld [vmem:[%s1 + $0x570] sm:$0xff]
      %v361 = vld [vmem:[%s1 + $0x578] sm:$0xff]
      %v362 = vld [vmem:[%s1 + $0x580] sm:$0xff]
      %v363 = vld [vmem:[%s1 + $0x588] sm:$0xff]
      %v364 = vld [vmem:[%s1 + $0x590] sm:$0xff]
      %v365 = vld [vmem:[%s1 + $0x598] sm:$0xff]
      %v366 = vld [vmem:[%s1 + $0x5a0] sm:$0xff]
      %v367 = vld [vmem:[%s1 + $0x5a8] sm:$0xff]
      %v368 = vld [vmem:[%s1 + $0x5b0] sm:$0xff]
      %v369 = vld [vmem:[%s1 + $0x5b8] sm:$0xff]
      %v370 = vld [vmem:[%s1 + $0x5c0] sm:$0xff]
      %v371 = vld [vmem:[%s1 + $0x5c8] sm:$0xff]
      %v372 = vld [vmem:[%s1 + $0x5d0] sm:$0xff]
      %v373 = vld [vmem:[%s1 + $0x5d8] sm:$0xff]
      %v374 = vld [vmem:[%s1 + $0x5e0] sm:$0xff]
      %v375 = vld [vmem:[%s1 + $0x5e8] sm:$0xff]
      %v376 = vld [vmem:[%s1 + $0x5f0] sm:$0xff]
      %v377 = vld [vmem:[%s1 + $0x5f8] sm:$0xff]
      %v378 = vld [vmem:[%s1 + $0x600] sm:$0xff]
      %v379 = vld [vmem:[%s1 + $0x608] sm:$0xff]
      %v380 = vld [vmem:[%s1 + $0x610] sm:$0xff]
      %v381 = vld [vmem:[%s1 + $0x618] sm:$0xff]
      %v382 = vld [vmem:[%s1 + $0x620] sm:$0xff]
      %v383 = vld [vmem:[%s1 + $0x628] sm:$0xff]
      %v384 = vld [vmem:[%s1 + $0x630] sm:$0xff]
      %v385 = vld [vmem:[%s1 + $0x638] sm:$0xff]
      %v386 = vld [vmem:[%s1 + $0x640] sm:$0xff]
      %v387 = vld [vmem:[%s1 + $0x648] sm:$0xff]
      %v388 = vld [vmem:[%s1 + $0x650] sm:$0xff]
      %v389 = vld [vmem:[%s1 + $0x658] sm:$0xff]
      %v390 = vld [vmem:[%s1 + $0x660] sm:$0xff]
      %v391 = vld [vmem:[%s1 + $0x668] sm:$0xff]
      %v392 = vld [vmem:[%s1 + $0x670] sm:$0xff]
      %v393 = vld [vmem:[%s1 + $0x678] sm:$0xff]
      %v394 = vld [vmem:[%s1 + $0x680] sm:$0xff]
      %v395 = vld [vmem:[%s1 + $0x688] sm:$0xff]
      %v396 = vld [vmem:[%s1 + $0x690] sm:$0xff]
      %v397 = vld [vmem:[%s1 + $0x698] sm:$0xff]
      %v398 = vld [vmem:[%s1 + $0x6a0] sm:$0xff]
      %v399 = vld [vmem:[%s1 + $0x6a8] sm:$0xff]
      %v400 = vld [vmem:[%s1 + $0x6b0] sm:$0xff]
      %v401 = vld [vmem:[%s1 + $0x6b8] sm:$0xff]
      %v402 = vld [vmem:[%s1 + $0x6c0] sm:$0xff]
      %v403 = vld [vmem:[%s1 + $0x6c8] sm:$0xff]
      %v404 = vld [vmem:[%s1 + $0x6d0] sm:$0xff]
      %v405 = vld [vmem:[%s1 + $0x6d8] sm:$0xff]
      %v406 = vld [vmem:[%s1 + $0x6e0] sm:$0xff]
      %v407 = vld [vmem:[%s1 + $0x6e8] sm:$0xff]
      %v408 = vld [vmem:[%s1 + $0x6f0] sm:$0xff]
      %v409 = vld [vmem:[%s1 + $0x6f8] sm:$0xff]
      %v410 = vld [vmem:[%s1 + $0x700] sm:$0xff]
      %v411 = vld [vmem:[%s1 + $0x708] sm:$0xff]
      %v412 = vld [vmem:[%s1 + $0x710] sm:$0xff]
      %v413 = vld [vmem:[%s1 + $0x718] sm:$0xff]
      %v414 = vld [vmem:[%s1 + $0x720] sm:$0xff]
      %v415 = vld [vmem:[%s1 + $0x728] sm:$0xff]
      %v416 = vld [vmem:[%s1 + $0x730] sm:$0xff]
      %v417 = vld [vmem:[%s1 + $0x738] sm:$0xff]
      %v418 = vld [vmem:[%s1 + $0x740] sm:$0xff]
      %v419 = vld [vmem:[%s1 + $0x748] sm:$0xff]
      %v420 = vld [vmem:[%s1 + $0x750] sm:$0xff]
      %v421 = vld [vmem:[%s1 + $0x758] sm:$0xff]
      %v422 = vld [vmem:[%s1 + $0x760] sm:$0xff]
      %v423 = vld [vmem:[%s1 + $0x768] sm:$0xff]
      %v424 = vld [vmem:[%s1 + $0x770] sm:$0xff]
      %v425 = vld [vmem:[%s1 + $0x778] sm:$0xff]
      %v426 = vld [vmem:[%s1 + $0x780] sm:$0xff]
      %v427 = vld [vmem:[%s1 + $0x788] sm:$0xff]
      %v428 = vld [vmem:[%s1 + $0x790] sm:$0xff]
      %v429 = vld [vmem:[%s1 + $0x798] sm:$0xff]
      %v430 = vld [vmem:[%s1 + $0x7a0] sm:$0xff]
      %v431 = vld [vmem:[%s1 + $0x7a8] sm:$0xff]
      %v432 = vld [vmem:[%s1 + $0x7b0] sm:$0xff]
      %v433 = vld [vmem:[%s1 + $0x7b8] sm:$0xff]
      %v434 = vld [vmem:[%s1 + $0x7c0] sm:$0xff]
      %v435 = vld [vmem:[%s1 + $0x7c8] sm:$0xff]
      %v436 = vld [vmem:[%s1 + $0x7d0] sm:$0xff]
      %v437 = vld [vmem:[%s1 + $0x7d8] sm:$0xff]
      %v438 = vld [vmem:[%s1 + $0x7e0] sm:$0xff]
      %v439 = vld [vmem:[%s1 + $0x7e8] sm:$0xff]
      %v440 = vld [vmem:[%s1 + $0x7f0] sm:$0xff]
      %v441 = vld [vmem:[%s1 + $0x7f8] sm:$0xff]
      %v442 = vld [vmem:[%s1 + $0x800] sm:$0xff]
      %v443 = vld [vmem:[%s1 + $0x808] sm:$0xff]
      %v444 = vld [vmem:[%s1 + $0x810] sm:$0xff]
      %v445 = vld [vmem:[%s1 + $0x818] sm:$0xff]
      %v446 = vld [vmem:[%s1 + $0x820] sm:$0xff]
      %v447 = vld [vmem:[%s1 + $0x828] sm:$0xff]
      %v448 = vld [vmem:[%s1 + $0x830] sm:$0xff]
      %v449 = vld [vmem:[%s1 + $0x838] sm:$0xff]
      %v450 = vld [vmem:[%s1 + $0x840] sm:$0xff]
      %v451 = vld [vmem:[%s1 + $0x848] sm:$0xff]
      %v452 = vld [vmem:[%s1 + $0x850] sm:$0xff]
      %v453 = vld [vmem:[%s1 + $0x858] sm:$0xff]
      %v454 = vld [vmem:[%s1 + $0x860] sm:$0xff]
      %v455 = vld [vmem:[%s1 + $0x868] sm:$0xff]
      %v456 = vld [vmem:[%s1 + $0x870] sm:$0xff]
      %v457 = vld [vmem:[%s1 + $0x878] sm:$0xff]
      %v458 = vld [vmem:[%s1 + $0x880] sm:$0xff]
      %v459 = vld [vmem:[%s1 + $0x888] sm:$0xff]
      %v460 = vld [vmem:[%s1 + $0x890] sm:$0xff]
      %v461 = vld [vmem:[%s1 + $0x898] sm:$0xff]
      %v462 = vld [vmem:[%s1 + $0x8a0] sm:$0xff]
      %v463 = vld [vmem:[%s1 + $0x8a8] sm:$0xff]
      %v464 = vld [vmem:[%s1 + $0x8b0] sm:$0xff]
      %v465 = vld [vmem:[%s1 + $0x8b8] sm:$0xff]
      %v466 = vld [vmem:[%s1 + $0x8c0] sm:$0xff]
      %v467 = vld [vmem:[%s1 + $0x8c8] sm:$0xff]
      %v468 = vld [vmem:[%s1 + $0x8d0] sm:$0xff]
      %v469 = vld [vmem:[%s1 + $0x8d8] sm:$0xff]
      %v470 = vld [vmem:[%s1 + $0x8e0] sm:$0xff]
      %v471 = vld [vmem:[%s1 + $0x8e8] sm:$0xff]
      %v472 = vld [vmem:[%s1 + $0x8f0] sm:$0xff]
      %v473 = vld [vmem:[%s1 + $0x8f8] sm:$0xff]
      %v474 = vld [vmem:[%s1 + $0x900] sm:$0xff]
      %v475 = vld [vmem:[%s1 + $0x908] sm:$0xff]
      %v476 = vld [vmem:[%s1 + $0x910] sm:$0xff]
      %v477 = vld [vmem:[%s1 + $0x918] sm:$0xff]
      %v478 = vld [vmem:[%s1 + $0x920] sm:$0xff]
      %v479 = vld [vmem:[%s1 + $0x928] sm:$0xff]
      %v480 = vld [vmem:[%s1 + $0x930] sm:$0xff]
      %v481 = vld [vmem:[%s1 + $0x938] sm:$0xff]
      %v482 = vld [vmem:[%s1 + $0x940] sm:$0xff]
      %v483 = vld [vmem:[%s1 + $0x948] sm:$0xff]
      %v484 = vld [vmem:[%s1 + $0x950] sm:$0xff]
      %v485 = vld [vmem:[%s1 + $0x958] sm:$0xff]
      %v486 = vld [vmem:[%s1 + $0x960] sm:$0xff]
      %v487 = vld [vmem:[%s1 + $0x968] sm:$0xff]
      %v488 = vld [vmem:[%s1 + $0x970] sm:$0xff]
      %v489 = vld [vmem:[%s1 + $0x978] sm:$0xff]
      %v490 = vld [vmem:[%s1 + $0x980] sm:$0xff]
      %v491 = vld [vmem:[%s1 + $0x988] sm:$0xff]
      %v492 = vld [vmem:[%s1 + $0x990] sm:$0xff]
      %v493 = vld [vmem:[%s1 + $0x998] sm:$0xff]
      %v494 = vld [vmem:[%s1 + $0x9a0] sm:$0xff]
      %v495 = vld [vmem:[%s1 + $0x9a8] sm:$0xff]
      %v496 = vld [vmem:[%s1 + $0x9b0] sm:$0xff]
      %v497 = vld [vmem:[%s1 + $0x9b8] sm:$0xff]
      %v498 = vld [vmem:[%s1 + $0x9c0] sm:$0xff]
      %v499 = vld [vmem:[%s1 + $0x9c8] sm:$0xff]
      %v500 = vld [vmem:[%s1 + $0x9d0] sm:$0xff]
      %v501 = vld [vmem:[%s1 + $0x9d8] sm:$0xff]
      %v502 = vld [vmem:[%s1 + $0x9e0] sm:$0xff]
      %v503 = vld [vmem:[%s1 + $0x9e8] sm:$0xff]
      %v504 = vld [vmem:[%s1 + $0x9f0] sm:$0xff]
      %v505 = vld [vmem:[%s1 + $0x9f8] sm:$0xff]
      %v506 = vld [vmem:[%s1 + $0xa00] sm:$0xff]
      %v507 = vld [vmem:[%s1 + $0xa08] sm:$0xff]
      %v508 = vld [vmem:[%s1 + $0xa10] sm:$0xff]
      %v509 = vld [vmem:[%s1 + $0xa18] sm:$0xff]
      %v510 = vld [vmem:[%s1 + $0xa20] sm:$0xff]
      %v511 = vld [vmem:[%s1 + $0xa28] sm:$0xff]
      %v512 = vld [vmem:[%s1 + $0xa30] sm:$0xff]
      %v513 = vld [vmem:[%s1 + $0xa38] sm:$0xff]
      %v514 = vld [vmem:[%s1 + $0xa40] sm:$0xff]
      %v515 = vld [vmem:[%s1 + $0xa48] sm:$0xff]
      %v516 = vld [vmem:[%s1 + $0xa50] sm:$0xff]
      %v517 = vld [vmem:[%s1 + $0xa58] sm:$0xff]
      %v518 = vld [vmem:[%s1 + $0xa60] sm:$0xff]
      %v519 = vld [vmem:[%s1 + $0xa68] sm:$0xff]
      %v520 = vld [vmem:[%s1 + $0xa70] sm:$0xff]
      %v521 = vld [vmem:[%s1 + $0xa78] sm:$0xff]
      %v522 = vld [vmem:[%s1 + $0xa80] sm:$0xff]
      %v523 = vld [vmem:[%s1 + $0xa88] sm:$0xff]
      %v524 = vld [vmem:[%s1 + $0xa90] sm:$0xff]
      %v525 = vld [vmem:[%s1 + $0xa98] sm:$0xff]
      %v526 = vld [vmem:[%s1 + $0xaa0] sm:$0xff]
      %v527 = vld [vmem:[%s1 + $0xaa8] sm:$0xff]
      %v528 = vld [vmem:[%s1 + $0xab0] sm:$0xff]
      %v529 = vld [vmem:[%s1 + $0xab8] sm:$0xff]
      %v530 = vld [vmem:[%s1 + $0xac0] sm:$0xff]
      %v531 = vld [vmem:[%s1 + $0xac8] sm:$0xff]
      %v532 = vld [vmem:[%s1 + $0xad0] sm:$0xff]
      %v533 = vld [vmem:[%s1 + $0xad8] sm:$0xff]
      %v534 = vld [vmem:[%s1 + $0xae0] sm:$0xff]
      %v535 = vld [vmem:[%s1 + $0xae8] sm:$0xff]
      %v536 = vld [vmem:[%s1 + $0xaf0] sm:$0xff]
      %v537 = vld [vmem:[%s1 + $0xaf8] sm:$0xff]
      %v538 = vld [vmem:[%s1 + $0xb00] sm:$0xff]
      %v539 = vld [vmem:[%s1 + $0xb08] sm:$0xff]
      %v540 = vld [vmem:[%s1 + $0xb10] sm:$0xff]
      %v541 = vld [vmem:[%s1 + $0xb18] sm:$0xff]
      %v542 = vld [vmem:[%s1 + $0xb20] sm:$0xff]
      %v543 = vld [vmem:[%s1 + $0xb28] sm:$0xff]
      %v544 = vld [vmem:[%s1 + $0xb30] sm:$0xff]
      %v545 = vld [vmem:[%s1 + $0xb38] sm:$0xff]
      %v546 = vld [vmem:[%s1 + $0xb40] sm:$0xff]
      %v547 = vld [vmem:[%s1 + $0xb48] sm:$0xff]
      %v548 = vld [vmem:[%s1 + $0xb50] sm:$0xff]
      %v549 = vld [vmem:[%s1 + $0xb58] sm:$0xff]
      %v550 = vld [vmem:[%s1 + $0xb60] sm:$0xff]
      %v551 = vld [vmem:[%s1 + $0xb68] sm:$0xff]
      %v552 = vld [vmem:[%s1 + $0xb70] sm:$0xff]
      %v553 = vld [vmem:[%s1 + $0xb78] sm:$0xff]
      %v554 = vld [vmem:[%s1 + $0xb80] sm:$0xff]
      %v555 = vld [vmem:[%s1 + $0xb88] sm:$0xff]
      %v556 = vld [vmem:[%s1 + $0xb90] sm:$0xff]
      %v557 = vld [vmem:[%s1 + $0xb98] sm:$0xff]
      %v558 = vld [vmem:[%s1 + $0xba0] sm:$0xff]
      %v559 = vld [vmem:[%s1 + $0xba8] sm:$0xff]
      %v560 = vld [vmem:[%s1 + $0xbb0] sm:$0xff]
      %v561 = vld [vmem:[%s1 + $0xbb8] sm:$0xff]
      %v562 = vld [vmem:[%s1 + $0xbc0] sm:$0xff]
      %v563 = vld [vmem:[%s1 + $0xbc8] sm:$0xff]
      %v564 = vld [vmem:[%s1 + $0xbd0] sm:$0xff]
      %v565 = vld [vmem:[%s1 + $0xbd8] sm:$0xff]
      %v566 = vld [vmem:[%s1 + $0xbe0] sm:$0xff]
      %v567 = vld [vmem:[%s1 + $0xbe8] sm:$0xff]
      %v568 = vld [vmem:[%s1 + $0xbf0] sm:$0xff]
      %v569 = vld [vmem:[%s1 + $0xbf8] sm:$0xff]
      %v570 = vld [vmem:[%s1 + $0xc00] sm:$0xff]
      %v571 = vld [vmem:[%s1 + $0xc08] sm:$0xff]
      %v572 = vld [vmem:[%s1 + $0xc10] sm:$0xff]
      %v573 = vld [vmem:[%s1 + $0xc18] sm:$0xff]
      %v574 = vld [vmem:[%s1 + $0xc20] sm:$0xff]
      %v575 = vld [vmem:[%s1 + $0xc28] sm:$0xff]
      %v576 = vld [vmem:[%s1 + $0xc30] sm:$0xff]
      %v577 = vld [vmem:[%s1 + $0xc38] sm:$0xff]
      %v578 = vld [vmem:[%s1 + $0xc40] sm:$0xff]
      %v579 = vld [vmem:[%s1 + $0xc48] sm:$0xff]
      %v580 = vld [vmem:[%s1 + $0xc50] sm:$0xff]
      %v581 = vld [vmem:[%s1 + $0xc58] sm:$0xff]
      %v582 = vld [vmem:[%s1 + $0xc60] sm:$0xff]
      %v583 = vld [vmem:[%s1 + $0xc68] sm:$0xff]
      %v584 = vld [vmem:[%s1 + $0xc70] sm:$0xff]
      %v585 = vld [vmem:[%s1 + $0xc78] sm:$0xff]
      %v586 = vld [vmem:[%s1 + $0xc80] sm:$0xff]
      %v587 = vld [vmem:[%s1 + $0xc88] sm:$0xff]
      %v588 = vld [vmem:[%s1 + $0xc90] sm:$0xff]
      %v589 = vld [vmem:[%s1 + $0xc98] sm:$0xff]
      %v590 = vld [vmem:[%s1 + $0xca0] sm:$0xff]
      %v591 = vld [vmem:[%s1 + $0xca8] sm:$0xff]
      %v592 = vld [vmem:[%s1 + $0xcb0] sm:$0xff]
      %v593 = vld [vmem:[%s1 + $0xcb8] sm:$0xff]
      %v594 = vld [vmem:[%s1 + $0xcc0] sm:$0xff]
      %v595 = vld [vmem:[%s1 + $0xcc8] sm:$0xff]
      %v596 = vld [vmem:[%s1 + $0xcd0] sm:$0xff]
      %v597 = vld [vmem:[%s1 + $0xcd8] sm:$0xff]
      %v598 = vld [vmem:[%s1 + $0xce0] sm:$0xff]
      %v599 = vld [vmem:[%s1 + $0xce8] sm:$0xff]
      %v600 = vld [vmem:[%s1 + $0xcf0] sm:$0xff]
      %v601 = vld [vmem:[%s1 + $0xcf8] sm:$0xff]
      %v602 = vld [vmem:[%s1 + $0xd00] sm:$0xff]
      %v603 = vld [vmem:[%s1 + $0xd08] sm:$0xff]
      %v604 = vld [vmem:[%s1 + $0xd10] sm:$0xff]
      %v605 = vld [vmem:[%s1 + $0xd18] sm:$0xff]
      %v606 = vld [vmem:[%s1 + $0xd20] sm:$0xff]
      %v607 = vld [vmem:[%s1 + $0xd28] sm:$0xff]
      %v608 = vld [vmem:[%s1 + $0xd30] sm:$0xff]
      %v609 = vld [vmem:[%s1 + $0xd38] sm:$0xff]
      %v610 = vld [vmem:[%s1 + $0xd40] sm:$0xff]
      %v611 = vld [vmem:[%s1 + $0xd48] sm:$0xff]
      %v612 = vld [vmem:[%s1 + $0xd50] sm:$0xff]
      %v613 = vld [vmem:[%s1 + $0xd58] sm:$0xff]
      %v614 = vld [vmem:[%s1 + $0xd60] sm:$0xff]
      %v615 = vld [vmem:[%s1 + $0xd68] sm:$0xff]
      %v616 = vld [vmem:[%s1 + $0xd70] sm:$0xff]
      %v617 = vld [vmem:[%s1 + $0xd78] sm:$0xff]
      %v618 = vld [vmem:[%s1 + $0xd80] sm:$0xff]
      %v619 = vld [vmem:[%s1 + $0xd88] sm:$0xff]
      %v620 = vld [vmem:[%s1 + $0xd90] sm:$0xff]
      %v621 = vld [vmem:[%s1 + $0xd98] sm:$0xff]
      %v622 = vld [vmem:[%s1 + $0xda0] sm:$0xff]
      %v623 = vld [vmem:[%s1 + $0xda8] sm:$0xff]
      %v624 = vld [vmem:[%s1 + $0xdb0] sm:$0xff]
      %v625 = vld [vmem:[%s1 + $0xdb8] sm:$0xff]
      %v626 = vld [vmem:[%s1 + $0xdc0] sm:$0xff]
      %v627 = vld [vmem:[%s1 + $0xdc8] sm:$0xff]
      %v628 = vld [vmem:[%s1 + $0xdd0] sm:$0xff]
      %v629 = vld [vmem:[%s1 + $0xdd8] sm:$0xff]
      %v630 = vld [vmem:[%s1 + $0xde0] sm:$0xff]
      %v631 = vld [vmem:[%s1 + $0xde8] sm:$0xff]
      %v632 = vld [vmem:[%s1 + $0xdf0] sm:$0xff]
      %v633 = vld [vmem:[%s1 + $0xdf8] sm:$0xff]
      %v642 = vunpack.c.l.b16 %v178
      %v643 = vunpack.c.h.b16 %v178
      %v644 = vunpack.c.l.b16 %v179
      %v645 = vunpack.c.h.b16 %v179
      %v646 = vunpack.c.l.b16 %v180
      %v647 = vunpack.c.h.b16 %v180
      %v648 = vunpack.c.l.b16 %v181
      %v649 = vunpack.c.l.b16 %v182
      %v650 = vunpack.c.h.b16 %v182
      %v651 = vunpack.c.l.b16 %v183
      %v652 = vunpack.c.h.b16 %v183
      %v653 = vunpack.c.l.b16 %v184
      %v654 = vunpack.c.h.b16 %v184
      %v655 = vunpack.c.l.b16 %v185
      %v656 = vpack.c.b16 %v649, %v642
      %v657 = vpack.c.b16 %v650, %v643
      %v658 = vpack.c.b16 %v651, %v644
      %v659 = vpack.c.b16 %v652, %v645
      %v660 = vpack.c.b16 %v653, %v646
      %v661 = vpack.c.b16 %v654, %v647
      %v662 = vpack.c.b16 %v655, %v648
      %v1118 = vunpack.c.l.b16 %v186
      %v1119 = vunpack.c.h.b16 %v186
      %v1120 = vunpack.c.l.b16 %v187
      %v1121 = vunpack.c.h.b16 %v187
      %v1122 = vunpack.c.l.b16 %v188
      %v1123 = vunpack.c.h.b16 %v188
      %v1124 = vunpack.c.l.b16 %v189
      %v1125 = vunpack.c.h.b16 %v189
      %v1126 = vunpack.c.l.b16 %v190
      %v1127 = vunpack.c.h.b16 %v190
      %v1128 = vunpack.c.l.b16 %v191
      %v1129 = vunpack.c.h.b16 %v191
      %v1130 = vunpack.c.l.b16 %v192
      %v1131 = vunpack.c.h.b16 %v192
      %v1132 = vunpack.c.l.b16 %v193
      %v1133 = vunpack.c.h.b16 %v193
      %v1134 = vunpack.c.l.b16 %v194
      %v1135 = vunpack.c.h.b16 %v194
      %v1136 = vunpack.c.l.b16 %v195
      %v1137 = vunpack.c.h.b16 %v195
      %v1138 = vunpack.c.l.b16 %v196
      %v1139 = vunpack.c.h.b16 %v196
      %v1140 = vunpack.c.l.b16 %v197
      %v1141 = vunpack.c.h.b16 %v197
      %v1142 = vunpack.c.l.b16 %v198
      %v1143 = vunpack.c.h.b16 %v198
      %v1144 = vunpack.c.l.b16 %v199
      %v1145 = vunpack.c.h.b16 %v199
      %v1146 = vunpack.c.l.b16 %v200
      %v1147 = vunpack.c.h.b16 %v200
      %v1148 = vunpack.c.l.b16 %v201
      %v1149 = vunpack.c.h.b16 %v201
      %v1150 = vunpack.c.l.b16 %v202
      %v1151 = vunpack.c.h.b16 %v202
      %v1152 = vunpack.c.l.b16 %v203
      %v1153 = vunpack.c.h.b16 %v203
      %v1154 = vunpack.c.l.b16 %v204
      %v1155 = vunpack.c.h.b16 %v204
      %v1156 = vunpack.c.l.b16 %v205
      %v1157 = vunpack.c.h.b16 %v205
      %v1158 = vunpack.c.l.b16 %v206
      %v1159 = vunpack.c.h.b16 %v206
      %v1160 = vunpack.c.l.b16 %v207
      %v1161 = vunpack.c.h.b16 %v207
      %v1162 = vunpack.c.l.b16 %v208
      %v1163 = vunpack.c.h.b16 %v208
      %v1164 = vunpack.c.l.b16 %v209
      %v1165 = vunpack.c.h.b16 %v209
      %v1166 = vunpack.c.l.b16 %v210
      %v1167 = vunpack.c.h.b16 %v210
      %v1168 = vunpack.c.l.b16 %v211
      %v1169 = vunpack.c.h.b16 %v211
      %v1170 = vunpack.c.l.b16 %v212
      %v1171 = vunpack.c.h.b16 %v212
      %v1172 = vunpack.c.l.b16 %v213
      %v1173 = vunpack.c.h.b16 %v213
      %v1174 = vunpack.c.l.b16 %v214
      %v1175 = vunpack.c.h.b16 %v214
      %v1176 = vunpack.c.l.b16 %v215
      %v1177 = vunpack.c.h.b16 %v215
      %v1178 = vunpack.c.l.b16 %v216
      %v1179 = vunpack.c.h.b16 %v216
      %v1180 = vunpack.c.l.b16 %v217
      %v1181 = vunpack.c.h.b16 %v217
      %v1182 = vunpack.c.l.b16 %v218
      %v1183 = vunpack.c.h.b16 %v218
      %v1184 = vunpack.c.l.b16 %v219
      %v1185 = vunpack.c.h.b16 %v219
      %v1186 = vunpack.c.l.b16 %v220
      %v1187 = vunpack.c.h.b16 %v220
      %v1188 = vunpack.c.l.b16 %v221
      %v1189 = vunpack.c.h.b16 %v221
      %v1190 = vunpack.c.l.b16 %v222
      %v1191 = vunpack.c.h.b16 %v222
      %v1192 = vunpack.c.l.b16 %v223
      %v1193 = vunpack.c.h.b16 %v223
      %v1194 = vunpack.c.l.b16 %v224
      %v1195 = vunpack.c.h.b16 %v224
      %v1196 = vunpack.c.l.b16 %v225
      %v1197 = vunpack.c.h.b16 %v225
      %v1198 = vunpack.c.l.b16 %v226
      %v1199 = vunpack.c.h.b16 %v226
      %v1200 = vunpack.c.l.b16 %v227
      %v1201 = vunpack.c.h.b16 %v227
      %v1202 = vunpack.c.l.b16 %v228
      %v1203 = vunpack.c.h.b16 %v228
      %v1204 = vunpack.c.l.b16 %v229
      %v1205 = vunpack.c.h.b16 %v229
      %v1206 = vunpack.c.l.b16 %v230
      %v1207 = vunpack.c.h.b16 %v230
      %v1208 = vunpack.c.l.b16 %v231
      %v1209 = vunpack.c.h.b16 %v231
      %v1210 = vunpack.c.l.b16 %v232
      %v1211 = vunpack.c.h.b16 %v232
      %v1212 = vunpack.c.l.b16 %v233
      %v1213 = vunpack.c.h.b16 %v233
      %v1214 = vunpack.c.l.b16 %v234
      %v1215 = vunpack.c.h.b16 %v234
      %v1216 = vunpack.c.l.b16 %v235
      %v1217 = vunpack.c.h.b16 %v235
      %v1218 = vunpack.c.l.b16 %v236
      %v1219 = vunpack.c.h.b16 %v236
      %v1220 = vunpack.c.l.b16 %v237
      %v1221 = vunpack.c.h.b16 %v237
      %v1222 = vunpack.c.l.b16 %v238
      %v1223 = vunpack.c.h.b16 %v238
      %v1224 = vunpack.c.l.b16 %v239
      %v1225 = vunpack.c.h.b16 %v239
      %v1226 = vunpack.c.l.b16 %v240
      %v1227 = vunpack.c.h.b16 %v240
      %v1228 = vunpack.c.l.b16 %v241
      %v1229 = vunpack.c.h.b16 %v241
      %v1230 = vunpack.c.l.b16 %v242
      %v1231 = vunpack.c.h.b16 %v242
      %v1232 = vunpack.c.l.b16 %v243
      %v1233 = vunpack.c.h.b16 %v243
      %v1234 = vunpack.c.l.b16 %v244
      %v1235 = vunpack.c.h.b16 %v244
      %v1236 = vunpack.c.l.b16 %v245
      %v1237 = vunpack.c.h.b16 %v245
      %v1238 = vunpack.c.l.b16 %v246
      %v1239 = vunpack.c.h.b16 %v246
      %v1240 = vunpack.c.l.b16 %v247
      %v1241 = vunpack.c.h.b16 %v247
      %v1242 = vunpack.c.l.b16 %v248
      %v1243 = vunpack.c.h.b16 %v248
      %v1244 = vunpack.c.l.b16 %v249
      %v1245 = vunpack.c.h.b16 %v249
      %v1246 = vunpack.c.l.b16 %v250
      %v1247 = vunpack.c.h.b16 %v250
      %v1248 = vunpack.c.l.b16 %v251
      %v1249 = vunpack.c.h.b16 %v251
      %v1250 = vunpack.c.l.b16 %v252
      %v1251 = vunpack.c.h.b16 %v252
      %v1252 = vunpack.c.l.b16 %v253
      %v1253 = vunpack.c.h.b16 %v253
      %v1254 = vunpack.c.l.b16 %v254
      %v1255 = vunpack.c.h.b16 %v254
      %v1256 = vunpack.c.l.b16 %v255
      %v1257 = vunpack.c.h.b16 %v255
      %v1258 = vunpack.c.l.b16 %v256
      %v1259 = vunpack.c.h.b16 %v256
      %v1260 = vunpack.c.l.b16 %v257
      %v1261 = vunpack.c.h.b16 %v257
      %v1262 = vunpack.c.l.b16 %v258
      %v1263 = vunpack.c.h.b16 %v258
      %v1264 = vunpack.c.l.b16 %v259
      %v1265 = vunpack.c.h.b16 %v259
      %v1266 = vunpack.c.l.b16 %v260
      %v1267 = vunpack.c.h.b16 %v260
      %v1268 = vunpack.c.l.b16 %v261
      %v1269 = vunpack.c.h.b16 %v261
      %v1270 = vunpack.c.l.b16 %v262
      %v1271 = vunpack.c.h.b16 %v262
      %v1272 = vunpack.c.l.b16 %v263
      %v1273 = vunpack.c.h.b16 %v263
      %v1274 = vunpack.c.l.b16 %v264
      %v1275 = vunpack.c.h.b16 %v264
      %v1276 = vunpack.c.l.b16 %v265
      %v1277 = vunpack.c.h.b16 %v265
      %v1278 = vunpack.c.l.b16 %v266
      %v1279 = vunpack.c.h.b16 %v266
      %v1280 = vunpack.c.l.b16 %v267
      %v1281 = vunpack.c.h.b16 %v267
      %v1282 = vunpack.c.l.b16 %v268
      %v1283 = vunpack.c.h.b16 %v268
      %v1284 = vunpack.c.l.b16 %v269
      %v1285 = vunpack.c.h.b16 %v269
      %v1286 = vunpack.c.l.b16 %v270
      %v1287 = vunpack.c.h.b16 %v270
      %v1288 = vunpack.c.l.b16 %v271
      %v1289 = vunpack.c.h.b16 %v271
      %v1290 = vunpack.c.l.b16 %v272
      %v1291 = vunpack.c.h.b16 %v272
      %v1292 = vunpack.c.l.b16 %v273
      %v1293 = vunpack.c.h.b16 %v273
      %v1294 = vunpack.c.l.b16 %v274
      %v1295 = vunpack.c.h.b16 %v274
      %v1296 = vunpack.c.l.b16 %v275
      %v1297 = vunpack.c.h.b16 %v275
      %v1298 = vunpack.c.l.b16 %v276
      %v1299 = vunpack.c.h.b16 %v276
      %v1300 = vunpack.c.l.b16 %v277
      %v1301 = vunpack.c.h.b16 %v277
      %v1302 = vunpack.c.l.b16 %v278
      %v1303 = vunpack.c.h.b16 %v278
      %v1304 = vunpack.c.l.b16 %v279
      %v1305 = vunpack.c.h.b16 %v279
      %v1306 = vunpack.c.l.b16 %v280
      %v1307 = vunpack.c.h.b16 %v280
      %v1308 = vunpack.c.l.b16 %v281
      %v1309 = vunpack.c.h.b16 %v281
      %v1310 = vunpack.c.l.b16 %v282
      %v1311 = vunpack.c.h.b16 %v282
      %v1312 = vunpack.c.l.b16 %v283
      %v1313 = vunpack.c.h.b16 %v283
      %v1314 = vunpack.c.l.b16 %v284
      %v1315 = vunpack.c.h.b16 %v284
      %v1316 = vunpack.c.l.b16 %v285
      %v1317 = vunpack.c.h.b16 %v285
      %v1318 = vunpack.c.l.b16 %v286
      %v1319 = vunpack.c.h.b16 %v286
      %v1320 = vunpack.c.l.b16 %v287
      %v1321 = vunpack.c.h.b16 %v287
      %v1322 = vunpack.c.l.b16 %v288
      %v1323 = vunpack.c.h.b16 %v288
      %v1324 = vunpack.c.l.b16 %v289
      %v1325 = vunpack.c.h.b16 %v289
      %v1326 = vunpack.c.l.b16 %v290
      %v1327 = vunpack.c.h.b16 %v290
      %v1328 = vunpack.c.l.b16 %v291
      %v1329 = vunpack.c.h.b16 %v291
      %v1330 = vunpack.c.l.b16 %v292
      %v1331 = vunpack.c.h.b16 %v292
      %v1332 = vunpack.c.l.b16 %v293
      %v1333 = vunpack.c.h.b16 %v293
      %v1334 = vunpack.c.l.b16 %v294
      %v1335 = vunpack.c.h.b16 %v294
      %v1336 = vunpack.c.l.b16 %v295
      %v1337 = vunpack.c.h.b16 %v295
      %v1338 = vunpack.c.l.b16 %v296
      %v1339 = vunpack.c.h.b16 %v296
      %v1340 = vunpack.c.l.b16 %v297
      %v1341 = vunpack.c.h.b16 %v297
      %v1342 = vunpack.c.l.b16 %v298
      %v1343 = vunpack.c.h.b16 %v298
      %v1344 = vunpack.c.l.b16 %v299
      %v1345 = vunpack.c.h.b16 %v299
      %v1346 = vunpack.c.l.b16 %v300
      %v1347 = vunpack.c.h.b16 %v300
      %v1348 = vunpack.c.l.b16 %v301
      %v1349 = vunpack.c.h.b16 %v301
      %v1350 = vunpack.c.l.b16 %v302
      %v1351 = vunpack.c.h.b16 %v302
      %v1352 = vunpack.c.l.b16 %v303
      %v1353 = vunpack.c.h.b16 %v303
      %v1354 = vunpack.c.l.b16 %v304
      %v1355 = vunpack.c.h.b16 %v304
      %v1356 = vunpack.c.l.b16 %v305
      %v1357 = vunpack.c.h.b16 %v305
      %v1358 = vunpack.c.l.b16 %v306
      %v1359 = vunpack.c.h.b16 %v306
      %v1360 = vunpack.c.l.b16 %v307
      %v1361 = vunpack.c.h.b16 %v307
      %v1362 = vunpack.c.l.b16 %v308
      %v1363 = vunpack.c.h.b16 %v308
      %v1364 = vunpack.c.l.b16 %v309
      %v1365 = vunpack.c.h.b16 %v309
      %v1366 = vunpack.c.l.b16 %v310
      %v1367 = vunpack.c.h.b16 %v310
      %v1368 = vunpack.c.l.b16 %v311
      %v1369 = vunpack.c.h.b16 %v311
      %v1370 = vunpack.c.l.b16 %v312
      %v1371 = vunpack.c.h.b16 %v312
      %v1372 = vunpack.c.l.b16 %v313
      %v1373 = vunpack.c.h.b16 %v313
      %v1374 = vunpack.c.l.b16 %v314
      %v1375 = vunpack.c.h.b16 %v314
      %v1376 = vunpack.c.l.b16 %v315
      %v1377 = vunpack.c.h.b16 %v315
      %v1378 = vunpack.c.l.b16 %v316
      %v1379 = vunpack.c.h.b16 %v316
      %v1380 = vunpack.c.l.b16 %v317
      %v1381 = vunpack.c.h.b16 %v317
      %v1382 = vunpack.c.l.b16 %v318
      %v1383 = vunpack.c.h.b16 %v318
      %v1384 = vunpack.c.l.b16 %v319
      %v1385 = vunpack.c.h.b16 %v319
      %v1386 = vunpack.c.l.b16 %v320
      %v1387 = vunpack.c.h.b16 %v320
      %v1388 = vunpack.c.l.b16 %v321
      %v1389 = vunpack.c.h.b16 %v321
      %v1390 = vunpack.c.l.b16 %v322
      %v1391 = vunpack.c.h.b16 %v322
      %v1392 = vunpack.c.l.b16 %v323
      %v1393 = vunpack.c.h.b16 %v323
      %v1394 = vunpack.c.l.b16 %v324
      %v1395 = vunpack.c.h.b16 %v324
      %v1396 = vunpack.c.l.b16 %v325
      %v1397 = vunpack.c.h.b16 %v325
      %v1398 = vunpack.c.l.b16 %v326
      %v1399 = vunpack.c.h.b16 %v326
      %v1400 = vunpack.c.l.b16 %v327
      %v1401 = vunpack.c.h.b16 %v327
      %v1402 = vunpack.c.l.b16 %v328
      %v1403 = vunpack.c.h.b16 %v328
      %v1404 = vunpack.c.l.b16 %v329
      %v1405 = vunpack.c.h.b16 %v329
      %v1406 = vunpack.c.l.b16 %v330
      %v1407 = vunpack.c.h.b16 %v330
      %v1408 = vunpack.c.l.b16 %v331
      %v1409 = vunpack.c.h.b16 %v331
      %v1410 = vunpack.c.l.b16 %v332
      %v1411 = vunpack.c.h.b16 %v332
      %v1412 = vunpack.c.l.b16 %v333
      %v1413 = vunpack.c.h.b16 %v333
      %v1414 = vunpack.c.l.b16 %v334
      %v1415 = vunpack.c.h.b16 %v334
      %v1416 = vunpack.c.l.b16 %v335
      %v1417 = vunpack.c.h.b16 %v335
      %v1418 = vunpack.c.l.b16 %v336
      %v1419 = vunpack.c.h.b16 %v336
      %v1420 = vunpack.c.l.b16 %v337
      %v1421 = vunpack.c.h.b16 %v337
      %v1422 = vunpack.c.l.b16 %v338
      %v1423 = vunpack.c.h.b16 %v338
      %v1424 = vunpack.c.l.b16 %v339
      %v1425 = vunpack.c.h.b16 %v339
      %v1426 = vunpack.c.l.b16 %v340
      %v1427 = vunpack.c.h.b16 %v340
      %v1428 = vunpack.c.l.b16 %v341
      %v1429 = vunpack.c.h.b16 %v341
      %v1430 = vunpack.c.l.b16 %v342
      %v1431 = vunpack.c.h.b16 %v342
      %v1432 = vunpack.c.l.b16 %v343
      %v1433 = vunpack.c.h.b16 %v343
      %v1434 = vunpack.c.l.b16 %v344
      %v1435 = vunpack.c.h.b16 %v344
      %v1436 = vunpack.c.l.b16 %v345
      %v1437 = vunpack.c.h.b16 %v345
      %v1438 = vunpack.c.l.b16 %v346
      %v1439 = vunpack.c.h.b16 %v346
      %v1440 = vunpack.c.l.b16 %v347
      %v1441 = vunpack.c.h.b16 %v347
      %v1442 = vunpack.c.l.b16 %v348
      %v1443 = vunpack.c.h.b16 %v348
      %v1444 = vunpack.c.l.b16 %v349
      %v1445 = vunpack.c.h.b16 %v349
      %v1446 = vunpack.c.l.b16 %v350
      %v1447 = vunpack.c.h.b16 %v350
      %v1448 = vunpack.c.l.b16 %v351
      %v1449 = vunpack.c.h.b16 %v351
      %v1450 = vunpack.c.l.b16 %v352
      %v1451 = vunpack.c.h.b16 %v352
      %v1452 = vunpack.c.l.b16 %v353
      %v1453 = vunpack.c.h.b16 %v353
      %v1454 = vunpack.c.l.b16 %v354
      %v1455 = vunpack.c.h.b16 %v354
      %v1456 = vunpack.c.l.b16 %v355
      %v1457 = vunpack.c.h.b16 %v355
      %v1458 = vunpack.c.l.b16 %v356
      %v1459 = vunpack.c.h.b16 %v356
      %v1460 = vunpack.c.l.b16 %v357
      %v1461 = vunpack.c.h.b16 %v357
      %v1462 = vunpack.c.l.b16 %v358
      %v1463 = vunpack.c.h.b16 %v358
      %v1464 = vunpack.c.l.b16 %v359
      %v1465 = vunpack.c.h.b16 %v359
      %v1466 = vunpack.c.l.b16 %v360
      %v1467 = vunpack.c.h.b16 %v360
      %v1468 = vunpack.c.l.b16 %v361
      %v1469 = vunpack.c.h.b16 %v361
      %v1470 = vunpack.c.l.b16 %v362
      %v1471 = vunpack.c.h.b16 %v362
      %v1472 = vunpack.c.l.b16 %v363
      %v1473 = vunpack.c.h.b16 %v363
      %v1474 = vunpack.c.l.b16 %v364
      %v1475 = vunpack.c.h.b16 %v364
      %v1476 = vunpack.c.l.b16 %v365
      %v1477 = vunpack.c.h.b16 %v365
      %v1478 = vunpack.c.l.b16 %v366
      %v1479 = vunpack.c.h.b16 %v366
      %v1480 = vunpack.c.l.b16 %v367
      %v1481 = vunpack.c.h.b16 %v367
      %v1482 = vunpack.c.l.b16 %v368
      %v1483 = vunpack.c.h.b16 %v368
      %v1484 = vunpack.c.l.b16 %v369
      %v1485 = vunpack.c.h.b16 %v369
      %v1486 = vunpack.c.l.b16 %v370
      %v1487 = vunpack.c.h.b16 %v370
      %v1488 = vunpack.c.l.b16 %v371
      %v1489 = vunpack.c.h.b16 %v371
      %v1490 = vunpack.c.l.b16 %v372
      %v1491 = vunpack.c.h.b16 %v372
      %v1492 = vunpack.c.l.b16 %v373
      %v1493 = vunpack.c.h.b16 %v373
      %v1494 = vunpack.c.l.b16 %v374
      %v1495 = vunpack.c.h.b16 %v374
      %v1496 = vunpack.c.l.b16 %v375
      %v1497 = vunpack.c.h.b16 %v375
      %v1498 = vunpack.c.l.b16 %v376
      %v1499 = vunpack.c.h.b16 %v376
      %v1500 = vunpack.c.l.b16 %v377
      %v1501 = vunpack.c.h.b16 %v377
      %v1502 = vunpack.c.l.b16 %v378
      %v1503 = vunpack.c.h.b16 %v378
      %v1504 = vunpack.c.l.b16 %v379
      %v1505 = vunpack.c.h.b16 %v379
      %v1506 = vunpack.c.l.b16 %v380
      %v1507 = vunpack.c.h.b16 %v380
      %v1508 = vunpack.c.l.b16 %v381
      %v1509 = vunpack.c.h.b16 %v381
      %v1510 = vunpack.c.l.b16 %v382
      %v1511 = vunpack.c.h.b16 %v382
      %v1512 = vunpack.c.l.b16 %v383
      %v1513 = vunpack.c.h.b16 %v383
      %v1514 = vunpack.c.l.b16 %v384
      %v1515 = vunpack.c.h.b16 %v384
      %v1516 = vunpack.c.l.b16 %v385
      %v1517 = vunpack.c.h.b16 %v385
      %v1518 = vunpack.c.l.b16 %v386
      %v1519 = vunpack.c.h.b16 %v386
      %v1520 = vunpack.c.l.b16 %v387
      %v1521 = vunpack.c.h.b16 %v387
      %v1522 = vunpack.c.l.b16 %v388
      %v1523 = vunpack.c.h.b16 %v388
      %v1524 = vunpack.c.l.b16 %v389
      %v1525 = vunpack.c.h.b16 %v389
      %v1526 = vunpack.c.l.b16 %v390
      %v1527 = vunpack.c.h.b16 %v390
      %v1528 = vunpack.c.l.b16 %v391
      %v1529 = vunpack.c.h.b16 %v391
      %v1530 = vunpack.c.l.b16 %v392
      %v1531 = vunpack.c.h.b16 %v392
      %v1532 = vunpack.c.l.b16 %v393
      %v1533 = vunpack.c.h.b16 %v393
      %v1534 = vunpack.c.l.b16 %v394
      %v1535 = vunpack.c.h.b16 %v394
      %v1536 = vunpack.c.l.b16 %v395
      %v1537 = vunpack.c.h.b16 %v395
      %v1538 = vunpack.c.l.b16 %v396
      %v1539 = vunpack.c.h.b16 %v396
      %v1540 = vunpack.c.l.b16 %v397
      %v1541 = vunpack.c.h.b16 %v397
      %v1542 = vunpack.c.l.b16 %v398
      %v1543 = vunpack.c.h.b16 %v398
      %v1544 = vunpack.c.l.b16 %v399
      %v1545 = vunpack.c.h.b16 %v399
      %v1546 = vunpack.c.l.b16 %v400
      %v1547 = vunpack.c.h.b16 %v400
      %v1548 = vunpack.c.l.b16 %v401
      %v1549 = vunpack.c.h.b16 %v401
      %v1550 = vunpack.c.l.b16 %v402
      %v1551 = vunpack.c.h.b16 %v402
      %v1552 = vunpack.c.l.b16 %v403
      %v1553 = vunpack.c.h.b16 %v403
      %v1554 = vunpack.c.l.b16 %v404
      %v1555 = vunpack.c.h.b16 %v404
      %v1556 = vunpack.c.l.b16 %v405
      %v1557 = vunpack.c.h.b16 %v405
      %v1558 = vunpack.c.l.b16 %v406
      %v1559 = vunpack.c.h.b16 %v406
      %v1560 = vunpack.c.l.b16 %v407
      %v1561 = vunpack.c.h.b16 %v407
      %v1562 = vunpack.c.l.b16 %v408
      %v1563 = vunpack.c.h.b16 %v408
      %v1564 = vunpack.c.l.b16 %v409
      %v1565 = vunpack.c.h.b16 %v409
      %v1566 = vunpack.c.l.b16 %v410
      %v1567 = vunpack.c.h.b16 %v410
      %v1568 = vunpack.c.l.b16 %v411
      %v1569 = vunpack.c.h.b16 %v411
      %v1570 = vunpack.c.l.b16 %v412
      %v1571 = vunpack.c.h.b16 %v412
      %v1572 = vunpack.c.l.b16 %v413
      %v1573 = vunpack.c.h.b16 %v413
      %v1574 = vunpack.c.l.b16 %v414
      %v1575 = vunpack.c.h.b16 %v414
      %v1576 = vunpack.c.l.b16 %v415
      %v1577 = vunpack.c.h.b16 %v415
      %v1578 = vunpack.c.l.b16 %v416
      %v1579 = vunpack.c.h.b16 %v416
      %v1580 = vunpack.c.l.b16 %v417
      %v1581 = vunpack.c.h.b16 %v417
      %v1582 = vunpack.c.l.b16 %v418
      %v1583 = vunpack.c.h.b16 %v418
      %v1584 = vunpack.c.l.b16 %v419
      %v1585 = vunpack.c.h.b16 %v419
      %v1586 = vunpack.c.l.b16 %v420
      %v1587 = vunpack.c.h.b16 %v420
      %v1588 = vunpack.c.l.b16 %v421
      %v1589 = vunpack.c.h.b16 %v421
      %v1590 = vunpack.c.l.b16 %v422
      %v1591 = vunpack.c.h.b16 %v422
      %v1592 = vunpack.c.l.b16 %v423
      %v1593 = vunpack.c.h.b16 %v423
      %v1594 = vunpack.c.l.b16 %v424
      %v1595 = vunpack.c.h.b16 %v424
      %v1596 = vunpack.c.l.b16 %v425
      %v1597 = vunpack.c.h.b16 %v425
      %v1598 = vunpack.c.l.b16 %v426
      %v1599 = vunpack.c.h.b16 %v426
      %v1600 = vunpack.c.l.b16 %v427
      %v1601 = vunpack.c.h.b16 %v427
      %v1602 = vunpack.c.l.b16 %v428
      %v1603 = vunpack.c.h.b16 %v428
      %v1604 = vunpack.c.l.b16 %v429
      %v1605 = vunpack.c.h.b16 %v429
      %v1606 = vunpack.c.l.b16 %v430
      %v1607 = vunpack.c.h.b16 %v430
      %v1608 = vunpack.c.l.b16 %v431
      %v1609 = vunpack.c.h.b16 %v431
      %v1610 = vunpack.c.l.b16 %v432
      %v1611 = vunpack.c.h.b16 %v432
      %v1612 = vunpack.c.l.b16 %v433
      %v1613 = vunpack.c.h.b16 %v433
      %v1614 = vunpack.c.l.b16 %v434
      %v1615 = vunpack.c.h.b16 %v434
      %v1616 = vunpack.c.l.b16 %v435
      %v1617 = vunpack.c.h.b16 %v435
      %v1618 = vunpack.c.l.b16 %v436
      %v1619 = vunpack.c.h.b16 %v436
      %v1620 = vunpack.c.l.b16 %v437
      %v1621 = vunpack.c.h.b16 %v437
      %v1622 = vunpack.c.l.b16 %v438
      %v1623 = vunpack.c.h.b16 %v438
      %v1624 = vunpack.c.l.b16 %v439
      %v1625 = vunpack.c.h.b16 %v439
      %v1626 = vunpack.c.l.b16 %v440
      %v1627 = vunpack.c.h.b16 %v440
      %v1628 = vunpack.c.l.b16 %v441
      %v1629 = vunpack.c.h.b16 %v441
      %v1630 = vunpack.c.l.b16 %v442
      %v1631 = vunpack.c.h.b16 %v442
      %v1632 = vunpack.c.l.b16 %v443
      %v1633 = vunpack.c.h.b16 %v443
      %v1634 = vunpack.c.l.b16 %v444
      %v1635 = vunpack.c.h.b16 %v444
      %v1636 = vunpack.c.l.b16 %v445
      %v1637 = vunpack.c.h.b16 %v445
      %v1638 = vunpack.c.l.b16 %v446
      %v1639 = vunpack.c.h.b16 %v446
      %v1640 = vunpack.c.l.b16 %v447
      %v1641 = vunpack.c.h.b16 %v447
      %v1642 = vunpack.c.l.b16 %v448
      %v1643 = vunpack.c.h.b16 %v448
      %v1644 = vunpack.c.l.b16 %v449
      %v1645 = vunpack.c.h.b16 %v449
      %v1646 = vunpack.c.l.b16 %v450
      %v1647 = vunpack.c.h.b16 %v450
      %v1648 = vunpack.c.l.b16 %v451
      %v1649 = vunpack.c.h.b16 %v451
      %v1650 = vunpack.c.l.b16 %v452
      %v1651 = vunpack.c.h.b16 %v452
      %v1652 = vunpack.c.l.b16 %v453
      %v1653 = vunpack.c.h.b16 %v453
      %v1654 = vunpack.c.l.b16 %v454
      %v1655 = vunpack.c.h.b16 %v454
      %v1656 = vunpack.c.l.b16 %v455
      %v1657 = vunpack.c.h.b16 %v455
      %v1658 = vunpack.c.l.b16 %v456
      %v1659 = vunpack.c.h.b16 %v456
      %v1660 = vunpack.c.l.b16 %v457
      %v1661 = vunpack.c.h.b16 %v457
      %v1662 = vunpack.c.l.b16 %v458
      %v1663 = vunpack.c.h.b16 %v458
      %v1664 = vunpack.c.l.b16 %v459
      %v1665 = vunpack.c.h.b16 %v459
      %v1666 = vunpack.c.l.b16 %v460
      %v1667 = vunpack.c.h.b16 %v460
      %v1668 = vunpack.c.l.b16 %v461
      %v1669 = vunpack.c.h.b16 %v461
      %v1670 = vunpack.c.l.b16 %v462
      %v1671 = vunpack.c.h.b16 %v462
      %v1672 = vunpack.c.l.b16 %v463
      %v1673 = vunpack.c.h.b16 %v463
      %v1674 = vunpack.c.l.b16 %v464
      %v1675 = vunpack.c.h.b16 %v464
      %v1676 = vunpack.c.l.b16 %v465
      %v1677 = vunpack.c.h.b16 %v465
      %v1678 = vunpack.c.l.b16 %v466
      %v1679 = vunpack.c.h.b16 %v466
      %v1680 = vunpack.c.l.b16 %v467
      %v1681 = vunpack.c.h.b16 %v467
      %v1682 = vunpack.c.l.b16 %v468
      %v1683 = vunpack.c.h.b16 %v468
      %v1684 = vunpack.c.l.b16 %v469
      %v1685 = vunpack.c.h.b16 %v469
      %v1686 = vunpack.c.l.b16 %v470
      %v1687 = vunpack.c.h.b16 %v470
      %v1688 = vunpack.c.l.b16 %v471
      %v1689 = vunpack.c.h.b16 %v471
      %v1690 = vunpack.c.l.b16 %v472
      %v1691 = vunpack.c.h.b16 %v472
      %v1692 = vunpack.c.l.b16 %v473
      %v1693 = vunpack.c.h.b16 %v473
      %v1694 = vunpack.c.l.b16 %v474
      %v1695 = vunpack.c.h.b16 %v474
      %v1696 = vunpack.c.l.b16 %v475
      %v1697 = vunpack.c.h.b16 %v475
      %v1698 = vunpack.c.l.b16 %v476
      %v1699 = vunpack.c.h.b16 %v476
      %v1700 = vunpack.c.l.b16 %v477
      %v1701 = vunpack.c.h.b16 %v477
      %v1702 = vunpack.c.l.b16 %v478
      %v1703 = vunpack.c.h.b16 %v478
      %v1704 = vunpack.c.l.b16 %v479
      %v1705 = vunpack.c.h.b16 %v479
      %v1706 = vunpack.c.l.b16 %v480
      %v1707 = vunpack.c.h.b16 %v480
      %v1708 = vunpack.c.l.b16 %v481
      %v1709 = vunpack.c.h.b16 %v481
      %v1710 = vunpack.c.l.b16 %v482
      %v1711 = vunpack.c.h.b16 %v482
      %v1712 = vunpack.c.l.b16 %v483
      %v1713 = vunpack.c.h.b16 %v483
      %v1714 = vunpack.c.l.b16 %v484
      %v1715 = vunpack.c.h.b16 %v484
      %v1716 = vunpack.c.l.b16 %v485
      %v1717 = vunpack.c.h.b16 %v485
      %v1718 = vunpack.c.l.b16 %v486
      %v1719 = vunpack.c.h.b16 %v486
      %v1720 = vunpack.c.l.b16 %v487
      %v1721 = vunpack.c.h.b16 %v487
      %v1722 = vunpack.c.l.b16 %v488
      %v1723 = vunpack.c.h.b16 %v488
      %v1724 = vunpack.c.l.b16 %v489
      %v1725 = vunpack.c.h.b16 %v489
      %v1726 = vunpack.c.l.b16 %v490
      %v1727 = vunpack.c.h.b16 %v490
      %v1728 = vunpack.c.l.b16 %v491
      %v1729 = vunpack.c.h.b16 %v491
      %v1730 = vunpack.c.l.b16 %v492
      %v1731 = vunpack.c.h.b16 %v492
      %v1732 = vunpack.c.l.b16 %v493
      %v1733 = vunpack.c.h.b16 %v493
      %v1734 = vunpack.c.l.b16 %v494
      %v1735 = vunpack.c.h.b16 %v494
      %v1736 = vunpack.c.l.b16 %v495
      %v1737 = vunpack.c.h.b16 %v495
      %v1738 = vunpack.c.l.b16 %v496
      %v1739 = vunpack.c.h.b16 %v496
      %v1740 = vunpack.c.l.b16 %v497
      %v1741 = vunpack.c.h.b16 %v497
      %v1742 = vunpack.c.l.b16 %v498
      %v1743 = vunpack.c.h.b16 %v498
      %v1744 = vunpack.c.l.b16 %v499
      %v1745 = vunpack.c.h.b16 %v499
      %v1746 = vunpack.c.l.b16 %v500
      %v1747 = vunpack.c.h.b16 %v500
      %v1748 = vunpack.c.l.b16 %v501
      %v1749 = vunpack.c.h.b16 %v501
      %v1750 = vunpack.c.l.b16 %v502
      %v1751 = vunpack.c.h.b16 %v502
      %v1752 = vunpack.c.l.b16 %v503
      %v1753 = vunpack.c.h.b16 %v503
      %v1754 = vunpack.c.l.b16 %v504
      %v1755 = vunpack.c.h.b16 %v504
      %v1756 = vunpack.c.l.b16 %v505
      %v1757 = vunpack.c.h.b16 %v505
      %v1758 = vunpack.c.l.b16 %v506
      %v1759 = vunpack.c.h.b16 %v506
      %v1760 = vunpack.c.l.b16 %v507
      %v1761 = vunpack.c.h.b16 %v507
      %v1762 = vunpack.c.l.b16 %v508
      %v1763 = vunpack.c.h.b16 %v508
      %v1764 = vunpack.c.l.b16 %v509
      %v1765 = vunpack.c.h.b16 %v509
      %v1766 = vunpack.c.l.b16 %v510
      %v1767 = vunpack.c.h.b16 %v510
      %v1768 = vunpack.c.l.b16 %v511
      %v1769 = vunpack.c.h.b16 %v511
      %v1770 = vunpack.c.l.b16 %v512
      %v1771 = vunpack.c.h.b16 %v512
      %v1772 = vunpack.c.l.b16 %v513
      %v1773 = vunpack.c.h.b16 %v513
      %v1774 = vunpack.c.l.b16 %v514
      %v1775 = vunpack.c.h.b16 %v514
      %v1776 = vunpack.c.l.b16 %v515
      %v1777 = vunpack.c.h.b16 %v515
      %v1778 = vunpack.c.l.b16 %v516
      %v1779 = vunpack.c.h.b16 %v516
      %v1780 = vunpack.c.l.b16 %v517
      %v1781 = vunpack.c.h.b16 %v517
      %v1782 = vunpack.c.l.b16 %v518
      %v1783 = vunpack.c.h.b16 %v518
      %v1784 = vunpack.c.l.b16 %v519
      %v1785 = vunpack.c.h.b16 %v519
      %v1786 = vunpack.c.l.b16 %v520
      %v1787 = vunpack.c.h.b16 %v520
      %v1788 = vunpack.c.l.b16 %v521
      %v1789 = vunpack.c.h.b16 %v521
      %v1790 = vunpack.c.l.b16 %v522
      %v1791 = vunpack.c.h.b16 %v522
      %v1792 = vunpack.c.l.b16 %v523
      %v1793 = vunpack.c.h.b16 %v523
      %v1794 = vunpack.c.l.b16 %v524
      %v1795 = vunpack.c.h.b16 %v524
      %v1796 = vunpack.c.l.b16 %v525
      %v1797 = vunpack.c.h.b16 %v525
      %v1798 = vunpack.c.l.b16 %v526
      %v1799 = vunpack.c.h.b16 %v526
      %v1800 = vunpack.c.l.b16 %v527
      %v1801 = vunpack.c.h.b16 %v527
      %v1802 = vunpack.c.l.b16 %v528
      %v1803 = vunpack.c.h.b16 %v528
      %v1804 = vunpack.c.l.b16 %v529
      %v1805 = vunpack.c.h.b16 %v529
      %v1806 = vunpack.c.l.b16 %v530
      %v1807 = vunpack.c.h.b16 %v530
      %v1808 = vunpack.c.l.b16 %v531
      %v1809 = vunpack.c.h.b16 %v531
      %v1810 = vunpack.c.l.b16 %v532
      %v1811 = vunpack.c.h.b16 %v532
      %v1812 = vunpack.c.l.b16 %v533
      %v1813 = vunpack.c.h.b16 %v533
      %v1814 = vunpack.c.l.b16 %v534
      %v1815 = vunpack.c.h.b16 %v534
      %v1816 = vunpack.c.l.b16 %v535
      %v1817 = vunpack.c.h.b16 %v535
      %v1818 = vunpack.c.l.b16 %v536
      %v1819 = vunpack.c.h.b16 %v536
      %v1820 = vunpack.c.l.b16 %v537
      %v1821 = vunpack.c.h.b16 %v537
      %v1822 = vunpack.c.l.b16 %v538
      %v1823 = vunpack.c.h.b16 %v538
      %v1824 = vunpack.c.l.b16 %v539
      %v1825 = vunpack.c.h.b16 %v539
      %v1826 = vunpack.c.l.b16 %v540
      %v1827 = vunpack.c.h.b16 %v540
      %v1828 = vunpack.c.l.b16 %v541
      %v1829 = vunpack.c.h.b16 %v541
      %v1830 = vunpack.c.l.b16 %v542
      %v1831 = vunpack.c.h.b16 %v542
      %v1832 = vunpack.c.l.b16 %v543
      %v1833 = vunpack.c.h.b16 %v543
      %v1834 = vunpack.c.l.b16 %v544
      %v1835 = vunpack.c.h.b16 %v544
      %v1836 = vunpack.c.l.b16 %v545
      %v1837 = vunpack.c.h.b16 %v545
      %v1838 = vunpack.c.l.b16 %v546
      %v1839 = vunpack.c.h.b16 %v546
      %v1840 = vunpack.c.l.b16 %v547
      %v1841 = vunpack.c.h.b16 %v547
      %v1842 = vunpack.c.l.b16 %v548
      %v1843 = vunpack.c.h.b16 %v548
      %v1844 = vunpack.c.l.b16 %v549
      %v1845 = vunpack.c.h.b16 %v549
      %v1846 = vunpack.c.l.b16 %v550
      %v1847 = vunpack.c.h.b16 %v550
      %v1848 = vunpack.c.l.b16 %v551
      %v1849 = vunpack.c.h.b16 %v551
      %v1850 = vunpack.c.l.b16 %v552
      %v1851 = vunpack.c.h.b16 %v552
      %v1852 = vunpack.c.l.b16 %v553
      %v1853 = vunpack.c.h.b16 %v553
      %v1854 = vunpack.c.l.b16 %v554
      %v1855 = vunpack.c.h.b16 %v554
      %v1856 = vunpack.c.l.b16 %v555
      %v1857 = vunpack.c.h.b16 %v555
      %v1858 = vunpack.c.l.b16 %v556
      %v1859 = vunpack.c.h.b16 %v556
      %v1860 = vunpack.c.l.b16 %v557
      %v1861 = vunpack.c.h.b16 %v557
      %v1862 = vunpack.c.l.b16 %v558
      %v1863 = vunpack.c.h.b16 %v558
      %v1864 = vunpack.c.l.b16 %v559
      %v1865 = vunpack.c.h.b16 %v559
      %v1866 = vunpack.c.l.b16 %v560
      %v1867 = vunpack.c.h.b16 %v560
      %v1868 = vunpack.c.l.b16 %v561
      %v1869 = vunpack.c.h.b16 %v561
      %v1870 = vunpack.c.l.b16 %v562
      %v1871 = vunpack.c.h.b16 %v562
      %v1872 = vunpack.c.l.b16 %v563
      %v1873 = vunpack.c.h.b16 %v563
      %v1874 = vunpack.c.l.b16 %v564
      %v1875 = vunpack.c.h.b16 %v564
      %v1876 = vunpack.c.l.b16 %v565
      %v1877 = vunpack.c.h.b16 %v565
      %v1878 = vunpack.c.l.b16 %v566
      %v1879 = vunpack.c.h.b16 %v566
      %v1880 = vunpack.c.l.b16 %v567
      %v1881 = vunpack.c.h.b16 %v567
      %v1882 = vunpack.c.l.b16 %v568
      %v1883 = vunpack.c.h.b16 %v568
      %v1884 = vunpack.c.l.b16 %v569
      %v1885 = vunpack.c.h.b16 %v569
      %v1886 = vunpack.c.l.b16 %v570
      %v1887 = vunpack.c.h.b16 %v570
      %v1888 = vunpack.c.l.b16 %v571
      %v1889 = vunpack.c.h.b16 %v571
      %v1890 = vunpack.c.l.b16 %v572
      %v1891 = vunpack.c.h.b16 %v572
      %v1892 = vunpack.c.l.b16 %v573
      %v1893 = vunpack.c.h.b16 %v573
      %v1894 = vunpack.c.l.b16 %v574
      %v1895 = vunpack.c.h.b16 %v574
      %v1896 = vunpack.c.l.b16 %v575
      %v1897 = vunpack.c.h.b16 %v575
      %v1898 = vunpack.c.l.b16 %v576
      %v1899 = vunpack.c.h.b16 %v576
      %v1900 = vunpack.c.l.b16 %v577
      %v1901 = vunpack.c.h.b16 %v577
      %v1902 = vunpack.c.l.b16 %v578
      %v1903 = vunpack.c.h.b16 %v578
      %v1904 = vunpack.c.l.b16 %v579
      %v1905 = vunpack.c.h.b16 %v579
      %v1906 = vunpack.c.l.b16 %v580
      %v1907 = vunpack.c.h.b16 %v580
      %v1908 = vunpack.c.l.b16 %v581
      %v1909 = vunpack.c.h.b16 %v581
      %v1910 = vunpack.c.l.b16 %v582
      %v1911 = vunpack.c.h.b16 %v582
      %v1912 = vunpack.c.l.b16 %v583
      %v1913 = vunpack.c.h.b16 %v583
      %v1914 = vunpack.c.l.b16 %v584
      %v1915 = vunpack.c.h.b16 %v584
      %v1916 = vunpack.c.l.b16 %v585
      %v1917 = vunpack.c.h.b16 %v585
      %v1918 = vunpack.c.l.b16 %v586
      %v1919 = vunpack.c.h.b16 %v586
      %v1920 = vunpack.c.l.b16 %v587
      %v1921 = vunpack.c.h.b16 %v587
      %v1922 = vunpack.c.l.b16 %v588
      %v1923 = vunpack.c.h.b16 %v588
      %v1924 = vunpack.c.l.b16 %v589
      %v1925 = vunpack.c.h.b16 %v589
      %v1926 = vunpack.c.l.b16 %v590
      %v1927 = vunpack.c.h.b16 %v590
      %v1928 = vunpack.c.l.b16 %v591
      %v1929 = vunpack.c.h.b16 %v591
      %v1930 = vunpack.c.l.b16 %v592
      %v1931 = vunpack.c.h.b16 %v592
      %v1932 = vunpack.c.l.b16 %v593
      %v1933 = vunpack.c.h.b16 %v593
      %v1934 = vunpack.c.l.b16 %v594
      %v1935 = vunpack.c.h.b16 %v594
      %v1936 = vunpack.c.l.b16 %v595
      %v1937 = vunpack.c.h.b16 %v595
      %v1938 = vunpack.c.l.b16 %v596
      %v1939 = vunpack.c.h.b16 %v596
      %v1940 = vunpack.c.l.b16 %v597
      %v1941 = vunpack.c.h.b16 %v597
      %v1942 = vunpack.c.l.b16 %v598
      %v1943 = vunpack.c.h.b16 %v598
      %v1944 = vunpack.c.l.b16 %v599
      %v1945 = vunpack.c.h.b16 %v599
      %v1946 = vunpack.c.l.b16 %v600
      %v1947 = vunpack.c.h.b16 %v600
      %v1948 = vunpack.c.l.b16 %v601
      %v1949 = vunpack.c.h.b16 %v601
      %v1950 = vunpack.c.l.b16 %v602
      %v1951 = vunpack.c.h.b16 %v602
      %v1952 = vunpack.c.l.b16 %v603
      %v1953 = vunpack.c.h.b16 %v603
      %v1954 = vunpack.c.l.b16 %v604
      %v1955 = vunpack.c.h.b16 %v604
      %v1956 = vunpack.c.l.b16 %v605
      %v1957 = vunpack.c.h.b16 %v605
      %v1958 = vunpack.c.l.b16 %v606
      %v1959 = vunpack.c.h.b16 %v606
      %v1960 = vunpack.c.l.b16 %v607
      %v1961 = vunpack.c.h.b16 %v607
      %v1962 = vunpack.c.l.b16 %v608
      %v1963 = vunpack.c.h.b16 %v608
      %v1964 = vunpack.c.l.b16 %v609
      %v1965 = vunpack.c.h.b16 %v609
      %v1966 = vunpack.c.l.b16 %v610
      %v1967 = vunpack.c.h.b16 %v610
      %v1968 = vunpack.c.l.b16 %v611
      %v1969 = vunpack.c.h.b16 %v611
      %v1970 = vunpack.c.l.b16 %v612
      %v1971 = vunpack.c.h.b16 %v612
      %v1972 = vunpack.c.l.b16 %v613
      %v1973 = vunpack.c.h.b16 %v613
      %v1974 = vunpack.c.l.b16 %v614
      %v1975 = vunpack.c.h.b16 %v614
      %v1976 = vunpack.c.l.b16 %v615
      %v1977 = vunpack.c.h.b16 %v615
      %v1978 = vunpack.c.l.b16 %v616
      %v1979 = vunpack.c.h.b16 %v616
      %v1980 = vunpack.c.l.b16 %v617
      %v1981 = vunpack.c.h.b16 %v617
      %v1982 = vunpack.c.l.b16 %v618
      %v1983 = vunpack.c.h.b16 %v618
      %v1984 = vunpack.c.l.b16 %v619
      %v1985 = vunpack.c.h.b16 %v619
      %v1986 = vunpack.c.l.b16 %v620
      %v1987 = vunpack.c.h.b16 %v620
      %v1988 = vunpack.c.l.b16 %v621
      %v1989 = vunpack.c.h.b16 %v621
      %v1990 = vunpack.c.l.b16 %v622
      %v1991 = vunpack.c.h.b16 %v622
      %v1992 = vunpack.c.l.b16 %v623
      %v1993 = vunpack.c.h.b16 %v623
      %v1994 = vunpack.c.l.b16 %v624
      %v1995 = vunpack.c.h.b16 %v624
      %v1996 = vunpack.c.l.b16 %v625
      %v1997 = vunpack.c.h.b16 %v625
      %v1998 = vunpack.c.l.b16 %v626
      %v1999 = vunpack.c.h.b16 %v626
      %v2000 = vunpack.c.l.b16 %v627
      %v2001 = vunpack.c.h.b16 %v627
      %v2002 = vunpack.c.l.b16 %v628
      %v2003 = vunpack.c.h.b16 %v628
      %v2004 = vunpack.c.l.b16 %v629
      %v2005 = vunpack.c.h.b16 %v629
      %v2006 = vunpack.c.l.b16 %v630
      %v2007 = vunpack.c.h.b16 %v630
      %v2008 = vunpack.c.l.b16 %v631
      %v2009 = vunpack.c.h.b16 %v631
      %v2010 = vunpack.c.l.b16 %v632
      %v2011 = vunpack.c.h.b16 %v632
      %v2012 = vunpack.c.l.b16 %v633
      %v2013 = vunpack.c.h.b16 %v633
      %v2014 = vpack.c.b16 %v1126, %v1118
      %v2015 = vpack.c.b16 %v1127, %v1119
      %v2016 = vpack.c.b16 %v1128, %v1120
      %v2017 = vpack.c.b16 %v1129, %v1121
      %v2018 = vpack.c.b16 %v1130, %v1122
      %v2019 = vpack.c.b16 %v1131, %v1123
      %v2020 = vpack.c.b16 %v1132, %v1124
      %v2021 = vpack.c.b16 %v1133, %v1125
      %v2022 = vpack.c.b16 %v1142, %v1134
      %v2023 = vpack.c.b16 %v1143, %v1135
      %v2024 = vpack.c.b16 %v1144, %v1136
      %v2025 = vpack.c.b16 %v1145, %v1137
      %v2026 = vpack.c.b16 %v1146, %v1138
      %v2027 = vpack.c.b16 %v1147, %v1139
      %v2028 = vpack.c.b16 %v1148, %v1140
      %v2029 = vpack.c.b16 %v1149, %v1141
      %v2030 = vpack.c.b16 %v1158, %v1150
      %v2031 = vpack.c.b16 %v1159, %v1151
      %v2032 = vpack.c.b16 %v1160, %v1152
      %v2033 = vpack.c.b16 %v1161, %v1153
      %v2034 = vpack.c.b16 %v1162, %v1154
      %v2035 = vpack.c.b16 %v1163, %v1155
      %v2036 = vpack.c.b16 %v1164, %v1156
      %v2037 = vpack.c.b16 %v1165, %v1157
      %v2038 = vpack.c.b16 %v1174, %v1166
      %v2039 = vpack.c.b16 %v1175, %v1167
      %v2040 = vpack.c.b16 %v1176, %v1168
      %v2041 = vpack.c.b16 %v1177, %v1169
      %v2042 = vpack.c.b16 %v1178, %v1170
      %v2043 = vpack.c.b16 %v1179, %v1171
      %v2044 = vpack.c.b16 %v1180, %v1172
      %v2045 = vpack.c.b16 %v1181, %v1173
      %v2046 = vpack.c.b16 %v1190, %v1182
      %v2047 = vpack.c.b16 %v1191, %v1183
      %v2048 = vpack.c.b16 %v1192, %v1184
      %v2049 = vpack.c.b16 %v1193, %v1185
      %v2050 = vpack.c.b16 %v1194, %v1186
      %v2051 = vpack.c.b16 %v1195, %v1187
      %v2052 = vpack.c.b16 %v1196, %v1188
      %v2053 = vpack.c.b16 %v1197, %v1189
      %v2054 = vpack.c.b16 %v1206, %v1198
      %v2055 = vpack.c.b16 %v1207, %v1199
      %v2056 = vpack.c.b16 %v1208, %v1200
      %v2057 = vpack.c.b16 %v1209, %v1201
      %v2058 = vpack.c.b16 %v1210, %v1202
      %v2059 = vpack.c.b16 %v1211, %v1203
      %v2060 = vpack.c.b16 %v1212, %v1204
      %v2061 = vpack.c.b16 %v1213, %v1205
      %v2062 = vpack.c.b16 %v1222, %v1214
      %v2063 = vpack.c.b16 %v1223, %v1215
      %v2064 = vpack.c.b16 %v1224, %v1216
      %v2065 = vpack.c.b16 %v1225, %v1217
      %v2066 = vpack.c.b16 %v1226, %v1218
      %v2067 = vpack.c.b16 %v1227, %v1219
      %v2068 = vpack.c.b16 %v1228, %v1220
      %v2069 = vpack.c.b16 %v1229, %v1221
      %v2070 = vpack.c.b16 %v1238, %v1230
      %v2071 = vpack.c.b16 %v1239, %v1231
      %v2072 = vpack.c.b16 %v1240, %v1232
      %v2073 = vpack.c.b16 %v1241, %v1233
      %v2074 = vpack.c.b16 %v1242, %v1234
      %v2075 = vpack.c.b16 %v1243, %v1235
      %v2076 = vpack.c.b16 %v1244, %v1236
      %v2077 = vpack.c.b16 %v1245, %v1237
      %v2078 = vpack.c.b16 %v1254, %v1246
      %v2079 = vpack.c.b16 %v1255, %v1247
      %v2080 = vpack.c.b16 %v1256, %v1248
      %v2081 = vpack.c.b16 %v1257, %v1249
      %v2082 = vpack.c.b16 %v1258, %v1250
      %v2083 = vpack.c.b16 %v1259, %v1251
      %v2084 = vpack.c.b16 %v1260, %v1252
      %v2085 = vpack.c.b16 %v1261, %v1253
      %v2086 = vpack.c.b16 %v1270, %v1262
      %v2087 = vpack.c.b16 %v1271, %v1263
      %v2088 = vpack.c.b16 %v1272, %v1264
      %v2089 = vpack.c.b16 %v1273, %v1265
      %v2090 = vpack.c.b16 %v1274, %v1266
      %v2091 = vpack.c.b16 %v1275, %v1267
      %v2092 = vpack.c.b16 %v1276, %v1268
      %v2093 = vpack.c.b16 %v1277, %v1269
      %v2094 = vpack.c.b16 %v1286, %v1278
      %v2095 = vpack.c.b16 %v1287, %v1279
      %v2096 = vpack.c.b16 %v1288, %v1280
      %v2097 = vpack.c.b16 %v1289, %v1281
      %v2098 = vpack.c.b16 %v1290, %v1282
      %v2099 = vpack.c.b16 %v1291, %v1283
      %v2100 = vpack.c.b16 %v1292, %v1284
      %v2101 = vpack.c.b16 %v1293, %v1285
      %v2102 = vpack.c.b16 %v1302, %v1294
      %v2103 = vpack.c.b16 %v1303, %v1295
      %v2104 = vpack.c.b16 %v1304, %v1296
      %v2105 = vpack.c.b16 %v1305, %v1297
      %v2106 = vpack.c.b16 %v1306, %v1298
      %v2107 = vpack.c.b16 %v1307, %v1299
      %v2108 = vpack.c.b16 %v1308, %v1300
      %v2109 = vpack.c.b16 %v1309, %v1301
      %v2110 = vpack.c.b16 %v1318, %v1310
      %v2111 = vpack.c.b16 %v1319, %v1311
      %v2112 = vpack.c.b16 %v1320, %v1312
      %v2113 = vpack.c.b16 %v1321, %v1313
      %v2114 = vpack.c.b16 %v1322, %v1314
      %v2115 = vpack.c.b16 %v1323, %v1315
      %v2116 = vpack.c.b16 %v1324, %v1316
      %v2117 = vpack.c.b16 %v1325, %v1317
      %v2118 = vpack.c.b16 %v1334, %v1326
      %v2119 = vpack.c.b16 %v1335, %v1327
      %v2120 = vpack.c.b16 %v1336, %v1328
      %v2121 = vpack.c.b16 %v1337, %v1329
      %v2122 = vpack.c.b16 %v1338, %v1330
      %v2123 = vpack.c.b16 %v1339, %v1331
      %v2124 = vpack.c.b16 %v1340, %v1332
      %v2125 = vpack.c.b16 %v1341, %v1333
      %v2126 = vpack.c.b16 %v1350, %v1342
      %v2127 = vpack.c.b16 %v1351, %v1343
      %v2128 = vpack.c.b16 %v1352, %v1344
      %v2129 = vpack.c.b16 %v1353, %v1345
      %v2130 = vpack.c.b16 %v1354, %v1346
      %v2131 = vpack.c.b16 %v1355, %v1347
      %v2132 = vpack.c.b16 %v1356, %v1348
      %v2133 = vpack.c.b16 %v1357, %v1349
      %v2134 = vpack.c.b16 %v1366, %v1358
      %v2135 = vpack.c.b16 %v1367, %v1359
      %v2136 = vpack.c.b16 %v1368, %v1360
      %v2137 = vpack.c.b16 %v1369, %v1361
      %v2138 = vpack.c.b16 %v1370, %v1362
      %v2139 = vpack.c.b16 %v1371, %v1363
      %v2140 = vpack.c.b16 %v1372, %v1364
      %v2141 = vpack.c.b16 %v1373, %v1365
      %v2142 = vpack.c.b16 %v1382, %v1374
      %v2143 = vpack.c.b16 %v1383, %v1375
      %v2144 = vpack.c.b16 %v1384, %v1376
      %v2145 = vpack.c.b16 %v1385, %v1377
      %v2146 = vpack.c.b16 %v1386, %v1378
      %v2147 = vpack.c.b16 %v1387, %v1379
      %v2148 = vpack.c.b16 %v1388, %v1380
      %v2149 = vpack.c.b16 %v1389, %v1381
      %v2150 = vpack.c.b16 %v1398, %v1390
      %v2151 = vpack.c.b16 %v1399, %v1391
      %v2152 = vpack.c.b16 %v1400, %v1392
      %v2153 = vpack.c.b16 %v1401, %v1393
      %v2154 = vpack.c.b16 %v1402, %v1394
      %v2155 = vpack.c.b16 %v1403, %v1395
      %v2156 = vpack.c.b16 %v1404, %v1396
      %v2157 = vpack.c.b16 %v1405, %v1397
      %v2158 = vpack.c.b16 %v1414, %v1406
      %v2159 = vpack.c.b16 %v1415, %v1407
      %v2160 = vpack.c.b16 %v1416, %v1408
      %v2161 = vpack.c.b16 %v1417, %v1409
      %v2162 = vpack.c.b16 %v1418, %v1410
      %v2163 = vpack.c.b16 %v1419, %v1411
      %v2164 = vpack.c.b16 %v1420, %v1412
      %v2165 = vpack.c.b16 %v1421, %v1413
      %v2166 = vpack.c.b16 %v1430, %v1422
      %v2167 = vpack.c.b16 %v1431, %v1423
      %v2168 = vpack.c.b16 %v1432, %v1424
      %v2169 = vpack.c.b16 %v1433, %v1425
      %v2170 = vpack.c.b16 %v1434, %v1426
      %v2171 = vpack.c.b16 %v1435, %v1427
      %v2172 = vpack.c.b16 %v1436, %v1428
      %v2173 = vpack.c.b16 %v1437, %v1429
      %v2174 = vpack.c.b16 %v1446, %v1438
      %v2175 = vpack.c.b16 %v1447, %v1439
      %v2176 = vpack.c.b16 %v1448, %v1440
      %v2177 = vpack.c.b16 %v1449, %v1441
      %v2178 = vpack.c.b16 %v1450, %v1442
      %v2179 = vpack.c.b16 %v1451, %v1443
      %v2180 = vpack.c.b16 %v1452, %v1444
      %v2181 = vpack.c.b16 %v1453, %v1445
      %v2182 = vpack.c.b16 %v1462, %v1454
      %v2183 = vpack.c.b16 %v1463, %v1455
      %v2184 = vpack.c.b16 %v1464, %v1456
      %v2185 = vpack.c.b16 %v1465, %v1457
      %v2186 = vpack.c.b16 %v1466, %v1458
      %v2187 = vpack.c.b16 %v1467, %v1459
      %v2188 = vpack.c.b16 %v1468, %v1460
      %v2189 = vpack.c.b16 %v1469, %v1461
      %v2190 = vpack.c.b16 %v1478, %v1470
      %v2191 = vpack.c.b16 %v1479, %v1471
      %v2192 = vpack.c.b16 %v1480, %v1472
      %v2193 = vpack.c.b16 %v1481, %v1473
      %v2194 = vpack.c.b16 %v1482, %v1474
      %v2195 = vpack.c.b16 %v1483, %v1475
      %v2196 = vpack.c.b16 %v1484, %v1476
      %v2197 = vpack.c.b16 %v1485, %v1477
      %v2198 = vpack.c.b16 %v1494, %v1486
      %v2199 = vpack.c.b16 %v1495, %v1487
      %v2200 = vpack.c.b16 %v1496, %v1488
      %v2201 = vpack.c.b16 %v1497, %v1489
      %v2202 = vpack.c.b16 %v1498, %v1490
      %v2203 = vpack.c.b16 %v1499, %v1491
      %v2204 = vpack.c.b16 %v1500, %v1492
      %v2205 = vpack.c.b16 %v1501, %v1493
      %v2206 = vpack.c.b16 %v1510, %v1502
      %v2207 = vpack.c.b16 %v1511, %v1503
      %v2208 = vpack.c.b16 %v1512, %v1504
      %v2209 = vpack.c.b16 %v1513, %v1505
      %v2210 = vpack.c.b16 %v1514, %v1506
      %v2211 = vpack.c.b16 %v1515, %v1507
      %v2212 = vpack.c.b16 %v1516, %v1508
      %v2213 = vpack.c.b16 %v1517, %v1509
      %v2214 = vpack.c.b16 %v1526, %v1518
      %v2215 = vpack.c.b16 %v1527, %v1519
      %v2216 = vpack.c.b16 %v1528, %v1520
      %v2217 = vpack.c.b16 %v1529, %v1521
      %v2218 = vpack.c.b16 %v1530, %v1522
      %v2219 = vpack.c.b16 %v1531, %v1523
      %v2220 = vpack.c.b16 %v1532, %v1524
      %v2221 = vpack.c.b16 %v1533, %v1525
      %v2222 = vpack.c.b16 %v1542, %v1534
      %v2223 = vpack.c.b16 %v1543, %v1535
      %v2224 = vpack.c.b16 %v1544, %v1536
      %v2225 = vpack.c.b16 %v1545, %v1537
      %v2226 = vpack.c.b16 %v1546, %v1538
      %v2227 = vpack.c.b16 %v1547, %v1539
      %v2228 = vpack.c.b16 %v1548, %v1540
      %v2229 = vpack.c.b16 %v1549, %v1541
      %v2230 = vpack.c.b16 %v1558, %v1550
      %v2231 = vpack.c.b16 %v1559, %v1551
      %v2232 = vpack.c.b16 %v1560, %v1552
      %v2233 = vpack.c.b16 %v1561, %v1553
      %v2234 = vpack.c.b16 %v1562, %v1554
      %v2235 = vpack.c.b16 %v1563, %v1555
      %v2236 = vpack.c.b16 %v1564, %v1556
      %v2237 = vpack.c.b16 %v1565, %v1557
      %v2238 = vpack.c.b16 %v1574, %v1566
      %v2239 = vpack.c.b16 %v1575, %v1567
      %v2240 = vpack.c.b16 %v1576, %v1568
      %v2241 = vpack.c.b16 %v1577, %v1569
      %v2242 = vpack.c.b16 %v1578, %v1570
      %v2243 = vpack.c.b16 %v1579, %v1571
      %v2244 = vpack.c.b16 %v1580, %v1572
      %v2245 = vpack.c.b16 %v1581, %v1573
      %v2246 = vpack.c.b16 %v1590, %v1582
      %v2247 = vpack.c.b16 %v1591, %v1583
      %v2248 = vpack.c.b16 %v1592, %v1584
      %v2249 = vpack.c.b16 %v1593, %v1585
      %v2250 = vpack.c.b16 %v1594, %v1586
      %v2251 = vpack.c.b16 %v1595, %v1587
      %v2252 = vpack.c.b16 %v1596, %v1588
      %v2253 = vpack.c.b16 %v1597, %v1589
      %v2254 = vpack.c.b16 %v1606, %v1598
      %v2255 = vpack.c.b16 %v1607, %v1599
      %v2256 = vpack.c.b16 %v1608, %v1600
      %v2257 = vpack.c.b16 %v1609, %v1601
      %v2258 = vpack.c.b16 %v1610, %v1602
      %v2259 = vpack.c.b16 %v1611, %v1603
      %v2260 = vpack.c.b16 %v1612, %v1604
      %v2261 = vpack.c.b16 %v1613, %v1605
      %v2262 = vpack.c.b16 %v1622, %v1614
      %v2263 = vpack.c.b16 %v1623, %v1615
      %v2264 = vpack.c.b16 %v1624, %v1616
      %v2265 = vpack.c.b16 %v1625, %v1617
      %v2266 = vpack.c.b16 %v1626, %v1618
      %v2267 = vpack.c.b16 %v1627, %v1619
      %v2268 = vpack.c.b16 %v1628, %v1620
      %v2269 = vpack.c.b16 %v1629, %v1621
      %v2270 = vpack.c.b16 %v1638, %v1630
      %v2271 = vpack.c.b16 %v1639, %v1631
      %v2272 = vpack.c.b16 %v1640, %v1632
      %v2273 = vpack.c.b16 %v1641, %v1633
      %v2274 = vpack.c.b16 %v1642, %v1634
      %v2275 = vpack.c.b16 %v1643, %v1635
      %v2276 = vpack.c.b16 %v1644, %v1636
      %v2277 = vpack.c.b16 %v1645, %v1637
      %v2278 = vpack.c.b16 %v1654, %v1646
      %v2279 = vpack.c.b16 %v1655, %v1647
      %v2280 = vpack.c.b16 %v1656, %v1648
      %v2281 = vpack.c.b16 %v1657, %v1649
      %v2282 = vpack.c.b16 %v1658, %v1650
      %v2283 = vpack.c.b16 %v1659, %v1651
      %v2284 = vpack.c.b16 %v1660, %v1652
      %v2285 = vpack.c.b16 %v1661, %v1653
      %v2286 = vpack.c.b16 %v1670, %v1662
      %v2287 = vpack.c.b16 %v1671, %v1663
      %v2288 = vpack.c.b16 %v1672, %v1664
      %v2289 = vpack.c.b16 %v1673, %v1665
      %v2290 = vpack.c.b16 %v1674, %v1666
      %v2291 = vpack.c.b16 %v1675, %v1667
      %v2292 = vpack.c.b16 %v1676, %v1668
      %v2293 = vpack.c.b16 %v1677, %v1669
      %v2294 = vpack.c.b16 %v1686, %v1678
      %v2295 = vpack.c.b16 %v1687, %v1679
      %v2296 = vpack.c.b16 %v1688, %v1680
      %v2297 = vpack.c.b16 %v1689, %v1681
      %v2298 = vpack.c.b16 %v1690, %v1682
      %v2299 = vpack.c.b16 %v1691, %v1683
      %v2300 = vpack.c.b16 %v1692, %v1684
      %v2301 = vpack.c.b16 %v1693, %v1685
      %v2302 = vpack.c.b16 %v1702, %v1694
      %v2303 = vpack.c.b16 %v1703, %v1695
      %v2304 = vpack.c.b16 %v1704, %v1696
      %v2305 = vpack.c.b16 %v1705, %v1697
      %v2306 = vpack.c.b16 %v1706, %v1698
      %v2307 = vpack.c.b16 %v1707, %v1699
      %v2308 = vpack.c.b16 %v1708, %v1700
      %v2309 = vpack.c.b16 %v1709, %v1701
      %v2310 = vpack.c.b16 %v1718, %v1710
      %v2311 = vpack.c.b16 %v1719, %v1711
      %v2312 = vpack.c.b16 %v1720, %v1712
      %v2313 = vpack.c.b16 %v1721, %v1713
      %v2314 = vpack.c.b16 %v1722, %v1714
      %v2315 = vpack.c.b16 %v1723, %v1715
      %v2316 = vpack.c.b16 %v1724, %v1716
      %v2317 = vpack.c.b16 %v1725, %v1717
      %v2318 = vpack.c.b16 %v1734, %v1726
      %v2319 = vpack.c.b16 %v1735, %v1727
      %v2320 = vpack.c.b16 %v1736, %v1728
      %v2321 = vpack.c.b16 %v1737, %v1729
      %v2322 = vpack.c.b16 %v1738, %v1730
      %v2323 = vpack.c.b16 %v1739, %v1731
      %v2324 = vpack.c.b16 %v1740, %v1732
      %v2325 = vpack.c.b16 %v1741, %v1733
      %v2326 = vpack.c.b16 %v1750, %v1742
      %v2327 = vpack.c.b16 %v1751, %v1743
      %v2328 = vpack.c.b16 %v1752, %v1744
      %v2329 = vpack.c.b16 %v1753, %v1745
      %v2330 = vpack.c.b16 %v1754, %v1746
      %v2331 = vpack.c.b16 %v1755, %v1747
      %v2332 = vpack.c.b16 %v1756, %v1748
      %v2333 = vpack.c.b16 %v1757, %v1749
      %v2334 = vpack.c.b16 %v1766, %v1758
      %v2335 = vpack.c.b16 %v1767, %v1759
      %v2336 = vpack.c.b16 %v1768, %v1760
      %v2337 = vpack.c.b16 %v1769, %v1761
      %v2338 = vpack.c.b16 %v1770, %v1762
      %v2339 = vpack.c.b16 %v1771, %v1763
      %v2340 = vpack.c.b16 %v1772, %v1764
      %v2341 = vpack.c.b16 %v1773, %v1765
      %v2342 = vpack.c.b16 %v1782, %v1774
      %v2343 = vpack.c.b16 %v1783, %v1775
      %v2344 = vpack.c.b16 %v1784, %v1776
      %v2345 = vpack.c.b16 %v1785, %v1777
      %v2346 = vpack.c.b16 %v1786, %v1778
      %v2347 = vpack.c.b16 %v1787, %v1779
      %v2348 = vpack.c.b16 %v1788, %v1780
      %v2349 = vpack.c.b16 %v1789, %v1781
      %v2350 = vpack.c.b16 %v1798, %v1790
      %v2351 = vpack.c.b16 %v1799, %v1791
      %v2352 = vpack.c.b16 %v1800, %v1792
      %v2353 = vpack.c.b16 %v1801, %v1793
      %v2354 = vpack.c.b16 %v1802, %v1794
      %v2355 = vpack.c.b16 %v1803, %v1795
      %v2356 = vpack.c.b16 %v1804, %v1796
      %v2357 = vpack.c.b16 %v1805, %v1797
      %v2358 = vpack.c.b16 %v1814, %v1806
      %v2359 = vpack.c.b16 %v1815, %v1807
      %v2360 = vpack.c.b16 %v1816, %v1808
      %v2361 = vpack.c.b16 %v1817, %v1809
      %v2362 = vpack.c.b16 %v1818, %v1810
      %v2363 = vpack.c.b16 %v1819, %v1811
      %v2364 = vpack.c.b16 %v1820, %v1812
      %v2365 = vpack.c.b16 %v1821, %v1813
      %v2366 = vpack.c.b16 %v1830, %v1822
      %v2367 = vpack.c.b16 %v1831, %v1823
      %v2368 = vpack.c.b16 %v1832, %v1824
      %v2369 = vpack.c.b16 %v1833, %v1825
      %v2370 = vpack.c.b16 %v1834, %v1826
      %v2371 = vpack.c.b16 %v1835, %v1827
      %v2372 = vpack.c.b16 %v1836, %v1828
      %v2373 = vpack.c.b16 %v1837, %v1829
      %v2374 = vpack.c.b16 %v1846, %v1838
      %v2375 = vpack.c.b16 %v1847, %v1839
      %v2376 = vpack.c.b16 %v1848, %v1840
      %v2377 = vpack.c.b16 %v1849, %v1841
      %v2378 = vpack.c.b16 %v1850, %v1842
      %v2379 = vpack.c.b16 %v1851, %v1843
      %v2380 = vpack.c.b16 %v1852, %v1844
      %v2381 = vpack.c.b16 %v1853, %v1845
      %v2382 = vpack.c.b16 %v1862, %v1854
      %v2383 = vpack.c.b16 %v1863, %v1855
      %v2384 = vpack.c.b16 %v1864, %v1856
      %v2385 = vpack.c.b16 %v1865, %v1857
      %v2386 = vpack.c.b16 %v1866, %v1858
      %v2387 = vpack.c.b16 %v1867, %v1859
      %v2388 = vpack.c.b16 %v1868, %v1860
      %v2389 = vpack.c.b16 %v1869, %v1861
      %v2390 = vpack.c.b16 %v1878, %v1870
      %v2391 = vpack.c.b16 %v1879, %v1871
      %v2392 = vpack.c.b16 %v1880, %v1872
      %v2393 = vpack.c.b16 %v1881, %v1873
      %v2394 = vpack.c.b16 %v1882, %v1874
      %v2395 = vpack.c.b16 %v1883, %v1875
      %v2396 = vpack.c.b16 %v1884, %v1876
      %v2397 = vpack.c.b16 %v1885, %v1877
      %v2398 = vpack.c.b16 %v1894, %v1886
      %v2399 = vpack.c.b16 %v1895, %v1887
      %v2400 = vpack.c.b16 %v1896, %v1888
      %v2401 = vpack.c.b16 %v1897, %v1889
      %v2402 = vpack.c.b16 %v1898, %v1890
      %v2403 = vpack.c.b16 %v1899, %v1891
      %v2404 = vpack.c.b16 %v1900, %v1892
      %v2405 = vpack.c.b16 %v1901, %v1893
      %v2406 = vpack.c.b16 %v1910, %v1902
      %v2407 = vpack.c.b16 %v1911, %v1903
      %v2408 = vpack.c.b16 %v1912, %v1904
      %v2409 = vpack.c.b16 %v1913, %v1905
      %v2410 = vpack.c.b16 %v1914, %v1906
      %v2411 = vpack.c.b16 %v1915, %v1907
      %v2412 = vpack.c.b16 %v1916, %v1908
      %v2413 = vpack.c.b16 %v1917, %v1909
      %v2414 = vpack.c.b16 %v1926, %v1918
      %v2415 = vpack.c.b16 %v1927, %v1919
      %v2416 = vpack.c.b16 %v1928, %v1920
      %v2417 = vpack.c.b16 %v1929, %v1921
      %v2418 = vpack.c.b16 %v1930, %v1922
      %v2419 = vpack.c.b16 %v1931, %v1923
      %v2420 = vpack.c.b16 %v1932, %v1924
      %v2421 = vpack.c.b16 %v1933, %v1925
      %v2422 = vpack.c.b16 %v1942, %v1934
      %v2423 = vpack.c.b16 %v1943, %v1935
      %v2424 = vpack.c.b16 %v1944, %v1936
      %v2425 = vpack.c.b16 %v1945, %v1937
      %v2426 = vpack.c.b16 %v1946, %v1938
      %v2427 = vpack.c.b16 %v1947, %v1939
      %v2428 = vpack.c.b16 %v1948, %v1940
      %v2429 = vpack.c.b16 %v1949, %v1941
      %v2430 = vpack.c.b16 %v1958, %v1950
      %v2431 = vpack.c.b16 %v1959, %v1951
      %v2432 = vpack.c.b16 %v1960, %v1952
      %v2433 = vpack.c.b16 %v1961, %v1953
      %v2434 = vpack.c.b16 %v1962, %v1954
      %v2435 = vpack.c.b16 %v1963, %v1955
      %v2436 = vpack.c.b16 %v1964, %v1956
      %v2437 = vpack.c.b16 %v1965, %v1957
      %v2438 = vpack.c.b16 %v1974, %v1966
      %v2439 = vpack.c.b16 %v1975, %v1967
      %v2440 = vpack.c.b16 %v1976, %v1968
      %v2441 = vpack.c.b16 %v1977, %v1969
      %v2442 = vpack.c.b16 %v1978, %v1970
      %v2443 = vpack.c.b16 %v1979, %v1971
      %v2444 = vpack.c.b16 %v1980, %v1972
      %v2445 = vpack.c.b16 %v1981, %v1973
      %v2446 = vpack.c.b16 %v1990, %v1982
      %v2447 = vpack.c.b16 %v1991, %v1983
      %v2448 = vpack.c.b16 %v1992, %v1984
      %v2449 = vpack.c.b16 %v1993, %v1985
      %v2450 = vpack.c.b16 %v1994, %v1986
      %v2451 = vpack.c.b16 %v1995, %v1987
      %v2452 = vpack.c.b16 %v1996, %v1988
      %v2453 = vpack.c.b16 %v1997, %v1989
      %v2454 = vpack.c.b16 %v2006, %v1998
      %v2455 = vpack.c.b16 %v2007, %v1999
      %v2456 = vpack.c.b16 %v2008, %v2000
      %v2457 = vpack.c.b16 %v2009, %v2001
      %v2458 = vpack.c.b16 %v2010, %v2002
      %v2459 = vpack.c.b16 %v2011, %v2003
      %v2460 = vpack.c.b16 %v2012, %v2004
      %v2461 = vpack.c.b16 %v2013, %v2005
      %2910 = vmatprep.subr.bf16.mxu0 %v2015
      %2911 = vmatpush1.bf16.msra.mxu0 %v2014
      %2912 = vmatprep.subr.bf16.mxu0 %v2023
      %2913 = vmatpush1.bf16.msra.mxu0 %v2022
      %2914 = vmatprep.subr.bf16.mxu0 %v2031
      %2915 = vmatpush1.bf16.msra.mxu0 %v2030
      %2916 = vmatprep.subr.bf16.mxu0 %v2039
      %2917 = vmatpush1.bf16.msra.mxu0 %v2038
      %2918 = vmatprep.subr.bf16.mxu0 %v2047
      %2919 = vmatpush1.bf16.msra.mxu0 %v2046
      %2920 = vmatprep.subr.bf16.mxu0 %v2055
      %2921 = vmatpush1.bf16.msra.mxu0 %v2054
      %2922 = vmatprep.subr.bf16.mxu0 %v2063
      %2923 = vmatpush1.bf16.msra.mxu0 %v2062
      %2924 = vmatprep.subr.bf16.mxu0 %v2071
      %2925 = vmatpush1.bf16.msra.mxu0 %v2070
      %2926 = vmatprep.subr.bf16.mxu0 %v2079
      %2927 = vmatpush1.bf16.msra.mxu0 %v2078
      %2928 = vmatprep.subr.bf16.mxu0 %v2087
      %2929 = vmatpush1.bf16.msra.mxu0 %v2086
      %2930 = vmatprep.subr.bf16.mxu0 %v2095
      %2931 = vmatpush1.bf16.msra.mxu0 %v2094
      %2932 = vmatprep.subr.bf16.mxu0 %v2103
      %2933 = vmatpush1.bf16.msra.mxu0 %v2102
      %2934 = vmatprep.subr.bf16.mxu0 %v2111
      %2935 = vmatpush1.bf16.msra.mxu0 %v2110
      %2936 = vmatprep.subr.bf16.mxu0 %v2119
      %2937 = vmatpush1.bf16.msra.mxu0 %v2118
      %2938 = vmatprep.subr.bf16.mxu0 %v2127
      %2939 = vmatpush1.bf16.msra.mxu0 %v2126
      %2940 = vmatprep.subr.bf16.mxu0 %v2135
      %2941 = vmatpush1.bf16.msra.mxu0 %v2134
      %2942 = vmatprep.mubr.bf16.mxu0 %v657
      %2943 = vmatmul.mubr.bf16.gmra.mrb[0].mxu0 %v656
      %v2944 = vpop.f32.mrb[0].mxu0
      %v2945 = vadd.f32 0.0, %v2944
      %v2946 = vpop.f32.mrb[0].mxu0
      %v2947 = vadd.f32 0.0, %v2946
      %v2948 = vpop.f32.mrb[0].mxu0
      %v2949 = vadd.f32 0.0, %v2948
      %v2950 = vpop.f32.mrb[0].mxu0
      %v2951 = vadd.f32 0.0, %v2950
      %2952 = vdwg.mxu0
      %2953 = vmatprep.subr.bf16.mxu0 %v2143
      %2954 = vmatpush1.bf16.msra.mxu0 %v2142
      %2955 = vmatprep.subr.bf16.mxu0 %v2151
      %2956 = vmatpush1.bf16.msra.mxu0 %v2150
      %2957 = vmatprep.subr.bf16.mxu0 %v2159
      %2958 = vmatpush1.bf16.msra.mxu0 %v2158
      %2959 = vmatprep.subr.bf16.mxu0 %v2167
      %2960 = vmatpush1.bf16.msra.mxu0 %v2166
      %2961 = vmatprep.subr.bf16.mxu0 %v2175
      %2962 = vmatpush1.bf16.msra.mxu0 %v2174
      %2963 = vmatprep.subr.bf16.mxu0 %v2183
      %2964 = vmatpush1.bf16.msra.mxu0 %v2182
      %2965 = vmatprep.subr.bf16.mxu0 %v2191
      %2966 = vmatpush1.bf16.msra.mxu0 %v2190
      %2967 = vmatprep.subr.bf16.mxu0 %v2199
      %2968 = vmatpush1.bf16.msra.mxu0 %v2198
      %2969 = vmatprep.subr.bf16.mxu0 %v2207
      %2970 = vmatpush1.bf16.msra.mxu0 %v2206
      %2971 = vmatprep.subr.bf16.mxu0 %v2215
      %2972 = vmatpush1.bf16.msra.mxu0 %v2214
      %2973 = vmatprep.subr.bf16.mxu0 %v2223
      %2974 = vmatpush1.bf16.msra.mxu0 %v2222
      %2975 = vmatprep.subr.bf16.mxu0 %v2231
      %2976 = vmatpush1.bf16.msra.mxu0 %v2230
      %2977 = vmatprep.subr.bf16.mxu0 %v2239
      %2978 = vmatpush1.bf16.msra.mxu0 %v2238
      %2979 = vmatprep.subr.bf16.mxu0 %v2247
      %2980 = vmatpush1.bf16.msra.mxu0 %v2246
      %2981 = vmatprep.subr.bf16.mxu0 %v2255
      %2982 = vmatpush1.bf16.msra.mxu0 %v2254
      %2983 = vmatprep.subr.bf16.mxu0 %v2263
      %2984 = vmatpush1.bf16.msra.mxu0 %v2262
      %2985 = vmatprep.mubr.bf16.mxu0 %v659
      %2986 = vmatmul.mubr.bf16.gmra.mrb[0].mxu0 %v658
      %v2987 = vpop.f32.mrb[0].mxu0
      %v2988 = vadd.f32 %v2945, %v2987
      %v2989 = vpop.f32.mrb[0].mxu0
      %v2990 = vadd.f32 %v2947, %v2989
      %v2991 = vpop.f32.mrb[0].mxu0
      %v2992 = vadd.f32 %v2949, %v2991
      %v2993 = vpop.f32.mrb[0].mxu0
      %v2994 = vadd.f32 %v2951, %v2993
      %2995 = vdwg.mxu0
      %2996 = vmatprep.subr.bf16.mxu0 %v2271
      %2997 = vmatpush1.bf16.msra.mxu0 %v2270
      %2998 = vmatprep.subr.bf16.mxu0 %v2279
      %2999 = vmatpush1.bf16.msra.mxu0 %v2278
      %3000 = vmatprep.subr.bf16.mxu0 %v2287
      %3001 = vmatpush1.bf16.msra.mxu0 %v2286
      %3002 = vmatprep.subr.bf16.mxu0 %v2295
      %3003 = vmatpush1.bf16.msra.mxu0 %v2294
      %3004 = vmatprep.subr.bf16.mxu0 %v2303
      %3005 = vmatpush1.bf16.msra.mxu0 %v2302
      %3006 = vmatprep.subr.bf16.mxu0 %v2311
      %3007 = vmatpush1.bf16.msra.mxu0 %v2310
      %3008 = vmatprep.subr.bf16.mxu0 %v2319
      %3009 = vmatpush1.bf16.msra.mxu0 %v2318
      %3010 = vmatprep.subr.bf16.mxu0 %v2327
      %3011 = vmatpush1.bf16.msra.mxu0 %v2326
      %3012 = vmatprep.subr.bf16.mxu0 %v2335
      %3013 = vmatpush1.bf16.msra.mxu0 %v2334
      %3014 = vmatprep.subr.bf16.mxu0 %v2343
      %3015 = vmatpush1.bf16.msra.mxu0 %v2342
      %3016 = vmatprep.subr.bf16.mxu0 %v2351
      %3017 = vmatpush1.bf16.msra.mxu0 %v2350
      %3018 = vmatprep.subr.bf16.mxu0 %v2359
      %3019 = vmatpush1.bf16.msra.mxu0 %v2358
      %3020 = vmatprep.subr.bf16.mxu0 %v2367
      %3021 = vmatpush1.bf16.msra.mxu0 %v2366
      %3022 = vmatprep.subr.bf16.mxu0 %v2375
      %3023 = vmatpush1.bf16.msra.mxu0 %v2374
      %3024 = vmatprep.subr.bf16.mxu0 %v2383
      %3025 = vmatpush1.bf16.msra.mxu0 %v2382
      %3026 = vmatprep.subr.bf16.mxu0 %v2391
      %3027 = vmatpush1.bf16.msra.mxu0 %v2390
      %3028 = vmatprep.mubr.bf16.mxu0 %v661
      %3029 = vmatmul.mubr.bf16.gmra.mrb[0].mxu0 %v660
      %v3030 = vpop.f32.mrb[0].mxu0
      %v3031 = vadd.f32 %v2988, %v3030
      %v3032 = vpop.f32.mrb[0].mxu0
      %v3033 = vadd.f32 %v2990, %v3032
      %v3034 = vpop.f32.mrb[0].mxu0
      %v3035 = vadd.f32 %v2992, %v3034
      %v3036 = vpop.f32.mrb[0].mxu0
      %v3037 = vadd.f32 %v2994, %v3036
      %3038 = vdwg.mxu0
      %3039 = vmatprep.subr.bf16.mxu0 %v2399
      %3040 = vmatpush1.bf16.msra.mxu0 %v2398
      %3041 = vmatprep.subr.bf16.mxu0 %v2407
      %3042 = vmatpush1.bf16.msra.mxu0 %v2406
      %3043 = vmatprep.subr.bf16.mxu0 %v2415
      %3044 = vmatpush1.bf16.msra.mxu0 %v2414
      %3045 = vmatprep.subr.bf16.mxu0 %v2423
      %3046 = vmatpush1.bf16.msra.mxu0 %v2422
      %3047 = vmatprep.subr.bf16.mxu0 %v2431
      %3048 = vmatpush1.bf16.msra.mxu0 %v2430
      %3049 = vmatprep.subr.bf16.mxu0 %v2439
      %3050 = vmatpush1.bf16.msra.mxu0 %v2438
      %3051 = vmatprep.subr.bf16.mxu0 %v2447
      %3052 = vmatpush1.bf16.msra.mxu0 %v2446
      %3053 = vmatprep.subr.bf16.mxu0 %v2455
      %3054 = vmatpush1.bf16.msra.mxu0 %v2454
      %3055 = vmatprep.subr.bf16.mxu0 0
      %3056 = vmatpush1.bf16.msra.mxu0 0
      %3057 = vmatprep.subr.bf16.mxu0 0
      %3058 = vmatpush1.bf16.msra.mxu0 0
      %3059 = vmatprep.subr.bf16.mxu0 0
      %3060 = vmatpush1.bf16.msra.mxu0 0
      %3061 = vmatprep.subr.bf16.mxu0 0
      %3062 = vmatpush1.bf16.msra.mxu0 0
      %3063 = vmatprep.subr.bf16.mxu0 0
      %3064 = vmatpush1.bf16.msra.mxu0 0
      %3065 = vmatprep.subr.bf16.mxu0 0
      %3066 = vmatpush1.bf16.msra.mxu0 0
      %3067 = vmatprep.subr.bf16.mxu0 0
      %3068 = vmatpush1.bf16.msra.mxu0 0
      %3069 = vmatprep.subr.bf16.mxu0 0
      %3070 = vmatpush1.bf16.msra.mxu0 0
      %3071 = vmatprep.mubr.bf16.mxu0 0
      %3072 = vmatmul.mubr.bf16.gmra.mrb[0].mxu0 %v662
      %v3073 = vpop.f32.mrb[0].mxu0
      %v3074 = vadd.f32 %v3031, %v3073
      %v3075 = vpop.f32.mrb[0].mxu0
      %v3076 = vadd.f32 %v3033, %v3075
      %v3077 = vpop.f32.mrb[0].mxu0
      %v3078 = vadd.f32 %v3035, %v3077
      %v3079 = vpop.f32.mrb[0].mxu0
      %v3080 = vadd.f32 %v3037, %v3079
      %3081 = vdwg.mxu0
      %3082 = vmatprep.subr.bf16.mxu0 %v2017
      %3083 = vmatpush1.bf16.msra.mxu0 %v2016
      %3084 = vmatprep.subr.bf16.mxu0 %v2025
      %3085 = vmatpush1.bf16.msra.mxu0 %v2024
      %3086 = vmatprep.subr.bf16.mxu0 %v2033
      %3087 = vmatpush1.bf16.msra.mxu0 %v2032
      %3088 = vmatprep.subr.bf16.mxu0 %v2041
      %3089 = vmatpush1.bf16.msra.mxu0 %v2040
      %3090 = vmatprep.subr.bf16.mxu0 %v2049
      %3091 = vmatpush1.bf16.msra.mxu0 %v2048
      %3092 = vmatprep.subr.bf16.mxu0 %v2057
      %3093 = vmatpush1.bf16.msra.mxu0 %v2056
      %3094 = vmatprep.subr.bf16.mxu0 %v2065
      %3095 = vmatpush1.bf16.msra.mxu0 %v2064
      %3096 = vmatprep.subr.bf16.mxu0 %v2073
      %3097 = vmatpush1.bf16.msra.mxu0 %v2072
      %3098 = vmatprep.subr.bf16.mxu0 %v2081
      %3099 = vmatpush1.bf16.msra.mxu0 %v2080
      %3100 = vmatprep.subr.bf16.mxu0 %v2089
      %3101 = vmatpush1.bf16.msra.mxu0 %v2088
      %3102 = vmatprep.subr.bf16.mxu0 %v2097
      %3103 = vmatpush1.bf16.msra.mxu0 %v2096
      %3104 = vmatprep.subr.bf16.mxu0 %v2105
      %3105 = vmatpush1.bf16.msra.mxu0 %v2104
      %3106 = vmatprep.subr.bf16.mxu0 %v2113
      %3107 = vmatpush1.bf16.msra.mxu0 %v2112
      %3108 = vmatprep.subr.bf16.mxu0 %v2121
      %3109 = vmatpush1.bf16.msra.mxu0 %v2120
      %3110 = vmatprep.subr.bf16.mxu0 %v2129
      %3111 = vmatpush1.bf16.msra.mxu0 %v2128
      %3112 = vmatprep.subr.bf16.mxu0 %v2137
      %3113 = vmatpush1.bf16.msra.mxu0 %v2136
      %3114 = vmatprep.mubr.bf16.mxu0 %v657
      %3115 = vmatmul.mubr.bf16.gmra.mrb[0].mxu0 %v656
      %v3116 = vpop.f32.mrb[0].mxu0
      %v3117 = vadd.f32 0.0, %v3116
      %v3118 = vpop.f32.mrb[0].mxu0
      %v3119 = vadd.f32 0.0, %v3118
      %v3120 = vpop.f32.mrb[0].mxu0
      %v3121 = vadd.f32 0.0, %v3120
      %v3122 = vpop.f32.mrb[0].mxu0
      %v3123 = vadd.f32 0.0, %v3122
      %3124 = vdwg.mxu0
      %3125 = vmatprep.subr.bf16.mxu0 %v2145
      %3126 = vmatpush1.bf16.msra.mxu0 %v2144
      %3127 = vmatprep.subr.bf16.mxu0 %v2153
      %3128 = vmatpush1.bf16.msra.mxu0 %v2152
      %3129 = vmatprep.subr.bf16.mxu0 %v2161
      %3130 = vmatpush1.bf16.msra.mxu0 %v2160
      %3131 = vmatprep.subr.bf16.mxu0 %v2169
      %3132 = vmatpush1.bf16.msra.mxu0 %v2168
      %3133 = vmatprep.subr.bf16.mxu0 %v2177
      %3134 = vmatpush1.bf16.msra.mxu0 %v2176
      %3135 = vmatprep.subr.bf16.mxu0 %v2185
      %3136 = vmatpush1.bf16.msra.mxu0 %v2184
      %3137 = vmatprep.subr.bf16.mxu0 %v2193
      %3138 = vmatpush1.bf16.msra.mxu0 %v2192
      %3139 = vmatprep.subr.bf16.mxu0 %v2201
      %3140 = vmatpush1.bf16.msra.mxu0 %v2200
      %3141 = vmatprep.subr.bf16.mxu0 %v2209
      %3142 = vmatpush1.bf16.msra.mxu0 %v2208
      %3143 = vmatprep.subr.bf16.mxu0 %v2217
      %3144 = vmatpush1.bf16.msra.mxu0 %v2216
      %3145 = vmatprep.subr.bf16.mxu0 %v2225
      %3146 = vmatpush1.bf16.msra.mxu0 %v2224
      %3147 = vmatprep.subr.bf16.mxu0 %v2233
      %3148 = vmatpush1.bf16.msra.mxu0 %v2232
      %3149 = vmatprep.subr.bf16.mxu0 %v2241
      %3150 = vmatpush1.bf16.msra.mxu0 %v2240
      %3151 = vmatprep.subr.bf16.mxu0 %v2249
      %3152 = vmatpush1.bf16.msra.mxu0 %v2248
      %3153 = vmatprep.subr.bf16.mxu0 %v2257
      %3154 = vmatpush1.bf16.msra.mxu0 %v2256
      %3155 = vmatprep.subr.bf16.mxu0 %v2265
      %3156 = vmatpush1.bf16.msra.mxu0 %v2264
      %3157 = vmatprep.mubr.bf16.mxu0 %v659
      %3158 = vmatmul.mubr.bf16.gmra.mrb[0].mxu0 %v658
      %v3159 = vpop.f32.mrb[0].mxu0
      %v3160 = vadd.f32 %v3117, %v3159
      %v3161 = vpop.f32.mrb[0].mxu0
      %v3162 = vadd.f32 %v3119, %v3161
      %v3163 = vpop.f32.mrb[0].mxu0
      %v3164 = vadd.f32 %v3121, %v3163
      %v3165 = vpop.f32.mrb[0].mxu0
      %v3166 = vadd.f32 %v3123, %v3165
      %3167 = vdwg.mxu0
      %3168 = vmatprep.subr.bf16.mxu0 %v2273
      %3169 = vmatpush1.bf16.msra.mxu0 %v2272
      %3170 = vmatprep.subr.bf16.mxu0 %v2281
      %3171 = vmatpush1.bf16.msra.mxu0 %v2280
      %3172 = vmatprep.subr.bf16.mxu0 %v2289
      %3173 = vmatpush1.bf16.msra.mxu0 %v2288
      %3174 = vmatprep.subr.bf16.mxu0 %v2297
      %3175 = vmatpush1.bf16.msra.mxu0 %v2296
      %3176 = vmatprep.subr.bf16.mxu0 %v2305
      %3177 = vmatpush1.bf16.msra.mxu0 %v2304
      %3178 = vmatprep.subr.bf16.mxu0 %v2313
      %3179 = vmatpush1.bf16.msra.mxu0 %v2312
      %3180 = vmatprep.subr.bf16.mxu0 %v2321
      %3181 = vmatpush1.bf16.msra.mxu0 %v2320
      %3182 = vmatprep.subr.bf16.mxu0 %v2329
      %3183 = vmatpush1.bf16.msra.mxu0 %v2328
      %3184 = vmatprep.subr.bf16.mxu0 %v2337
      %3185 = vmatpush1.bf16.msra.mxu0 %v2336
      %3186 = vmatprep.subr.bf16.mxu0 %v2345
      %3187 = vmatpush1.bf16.msra.mxu0 %v2344
      %3188 = vmatprep.subr.bf16.mxu0 %v2353
      %3189 = vmatpush1.bf16.msra.mxu0 %v2352
      %3190 = vmatprep.subr.bf16.mxu0 %v2361
      %3191 = vmatpush1.bf16.msra.mxu0 %v2360
      %3192 = vmatprep.subr.bf16.mxu0 %v2369
      %3193 = vmatpush1.bf16.msra.mxu0 %v2368
      %3194 = vmatprep.subr.bf16.mxu0 %v2377
      %3195 = vmatpush1.bf16.msra.mxu0 %v2376
      %3196 = vmatprep.subr.bf16.mxu0 %v2385
      %3197 = vmatpush1.bf16.msra.mxu0 %v2384
      %3198 = vmatprep.subr.bf16.mxu0 %v2393
      %3199 = vmatpush1.bf16.msra.mxu0 %v2392
      %3200 = vmatprep.mubr.bf16.mxu0 %v661
      %3201 = vmatmul.mubr.bf16.gmra.mrb[0].mxu0 %v660
      %v3202 = vpop.f32.mrb[0].mxu0
      %v3203 = vadd.f32 %v3160, %v3202
      %v3204 = vpop.f32.mrb[0].mxu0
      %v3205 = vadd.f32 %v3162, %v3204
      %v3206 = vpop.f32.mrb[0].mxu0
      %v3207 = vadd.f32 %v3164, %v3206
      %v3208 = vpop.f32.mrb[0].mxu0
      %v3209 = vadd.f32 %v3166, %v3208
      %3210 = vdwg.mxu0
      %3211 = vmatprep.subr.bf16.mxu0 %v2401
      %3212 = vmatpush1.bf16.msra.mxu0 %v2400
      %3213 = vmatprep.subr.bf16.mxu0 %v2409
      %3214 = vmatpush1.bf16.msra.mxu0 %v2408
      %3215 = vmatprep.subr.bf16.mxu0 %v2417
      %3216 = vmatpush1.bf16.msra.mxu0 %v2416
      %3217 = vmatprep.subr.bf16.mxu0 %v2425
      %3218 = vmatpush1.bf16.msra.mxu0 %v2424
      %3219 = vmatprep.subr.bf16.mxu0 %v2433
      %3220 = vmatpush1.bf16.msra.mxu0 %v2432
      %3221 = vmatprep.subr.bf16.mxu0 %v2441
      %3222 = vmatpush1.bf16.msra.mxu0 %v2440
      %3223 = vmatprep.subr.bf16.mxu0 %v2449
      %3224 = vmatpush1.bf16.msra.mxu0 %v2448
      %3225 = vmatprep.subr.bf16.mxu0 %v2457
      %3226 = vmatpush1.bf16.msra.mxu0 %v2456
      %3227 = vmatprep.subr.bf16.mxu0 0
      %3228 = vmatpush1.bf16.msra.mxu0 0
      %3229 = vmatprep.subr.bf16.mxu0 0
      %3230 = vmatpush1.bf16.msra.mxu0 0
      %3231 = vmatprep.subr.bf16.mxu0 0
      %3232 = vmatpush1.bf16.msra.mxu0 0
      %3233 = vmatprep.subr.bf16.mxu0 0
      %3234 = vmatpush1.bf16.msra.mxu0 0
      %3235 = vmatprep.subr.bf16.mxu0 0
      %3236 = vmatpush1.bf16.msra.mxu0 0
      %3237 = vmatprep.subr.bf16.mxu0 0
      %3238 = vmatpush1.bf16.msra.mxu0 0
      %3239 = vmatprep.subr.bf16.mxu0 0
      %3240 = vmatpush1.bf16.msra.mxu0 0
      %3241 = vmatprep.subr.bf16.mxu0 0
      %3242 = vmatpush1.bf16.msra.mxu0 0
      %3243 = vmatprep.mubr.bf16.mxu0 0
      %3244 = vmatmul.mubr.bf16.gmra.mrb[0].mxu0 %v662
      %v3245 = vpop.f32.mrb[0].mxu0
      %v3246 = vadd.f32 %v3203, %v3245
      %v3247 = vpop.f32.mrb[0].mxu0
      %v3248 = vadd.f32 %v3205, %v3247
      %v3249 = vpop.f32.mrb[0].mxu0
      %v3250 = vadd.f32 %v3207, %v3249
      %v3251 = vpop.f32.mrb[0].mxu0
      %v3252 = vadd.f32 %v3209, %v3251
      %3253 = vdwg.mxu0
      %3254 = vmatprep.subr.bf16.mxu0 %v2019
      %3255 = vmatpush1.bf16.msra.mxu0 %v2018
      %3256 = vmatprep.subr.bf16.mxu0 %v2027
      %3257 = vmatpush1.bf16.msra.mxu0 %v2026
      %3258 = vmatprep.subr.bf16.mxu0 %v2035
      %3259 = vmatpush1.bf16.msra.mxu0 %v2034
      %3260 = vmatprep.subr.bf16.mxu0 %v2043
      %3261 = vmatpush1.bf16.msra.mxu0 %v2042
      %3262 = vmatprep.subr.bf16.mxu0 %v2051
      %3263 = vmatpush1.bf16.msra.mxu0 %v2050
      %3264 = vmatprep.subr.bf16.mxu0 %v2059
      %3265 = vmatpush1.bf16.msra.mxu0 %v2058
      %3266 = vmatprep.subr.bf16.mxu0 %v2067
      %3267 = vmatpush1.bf16.msra.mxu0 %v2066
      %3268 = vmatprep.subr.bf16.mxu0 %v2075
      %3269 = vmatpush1.bf16.msra.mxu0 %v2074
      %3270 = vmatprep.subr.bf16.mxu0 %v2083
      %3271 = vmatpush1.bf16.msra.mxu0 %v2082
      %3272 = vmatprep.subr.bf16.mxu0 %v2091
      %3273 = vmatpush1.bf16.msra.mxu0 %v2090
      %3274 = vmatprep.subr.bf16.mxu0 %v2099
      %3275 = vmatpush1.bf16.msra.mxu0 %v2098
      %3276 = vmatprep.subr.bf16.mxu0 %v2107
      %3277 = vmatpush1.bf16.msra.mxu0 %v2106
      %3278 = vmatprep.subr.bf16.mxu0 %v2115
      %3279 = vmatpush1.bf16.msra.mxu0 %v2114
      %3280 = vmatprep.subr.bf16.mxu0 %v2123
      %3281 = vmatpush1.bf16.msra.mxu0 %v2122
      %3282 = vmatprep.subr.bf16.mxu0 %v2131
      %3283 = vmatpush1.bf16.msra.mxu0 %v2130
      %3284 = vmatprep.subr.bf16.mxu0 %v2139
      %3285 = vmatpush1.bf16.msra.mxu0 %v2138
      %3286 = vmatprep.mubr.bf16.mxu0 %v657
      %3287 = vmatmul.mubr.bf16.gmra.mrb[0].mxu0 %v656
      %v3288 = vpop.f32.mrb[0].mxu0
      %v3289 = vadd.f32 0.0, %v3288
      %v3290 = vpop.f32.mrb[0].mxu0
      %v3291 = vadd.f32 0.0, %v3290
      %v3292 = vpop.f32.mrb[0].mxu0
      %v3293 = vadd.f32 0.0, %v3292
      %v3294 = vpop.f32.mrb[0].mxu0
      %v3295 = vadd.f32 0.0, %v3294
      %3296 = vdwg.mxu0
      %3297 = vmatprep.subr.bf16.mxu0 %v2147
      %3298 = vmatpush1.bf16.msra.mxu0 %v2146
      %3299 = vmatprep.subr.bf16.mxu0 %v2155
      %3300 = vmatpush1.bf16.msra.mxu0 %v2154
      %3301 = vmatprep.subr.bf16.mxu0 %v2163
      %3302 = vmatpush1.bf16.msra.mxu0 %v2162
      %3303 = vmatprep.subr.bf16.mxu0 %v2171
      %3304 = vmatpush1.bf16.msra.mxu0 %v2170
      %3305 = vmatprep.subr.bf16.mxu0 %v2179
      %3306 = vmatpush1.bf16.msra.mxu0 %v2178
      %3307 = vmatprep.subr.bf16.mxu0 %v2187
      %3308 = vmatpush1.bf16.msra.mxu0 %v2186
      %3309 = vmatprep.subr.bf16.mxu0 %v2195
      %3310 = vmatpush1.bf16.msra.mxu0 %v2194
      %3311 = vmatprep.subr.bf16.mxu0 %v2203
      %3312 = vmatpush1.bf16.msra.mxu0 %v2202
      %3313 = vmatprep.subr.bf16.mxu0 %v2211
      %3314 = vmatpush1.bf16.msra.mxu0 %v2210
      %3315 = vmatprep.subr.bf16.mxu0 %v2219
      %3316 = vmatpush1.bf16.msra.mxu0 %v2218
      %3317 = vmatprep.subr.bf16.mxu0 %v2227
      %3318 = vmatpush1.bf16.msra.mxu0 %v2226
      %3319 = vmatprep.subr.bf16.mxu0 %v2235
      %3320 = vmatpush1.bf16.msra.mxu0 %v2234
      %3321 = vmatprep.subr.bf16.mxu0 %v2243
      %3322 = vmatpush1.bf16.msra.mxu0 %v2242
      %3323 = vmatprep.subr.bf16.mxu0 %v2251
      %3324 = vmatpush1.bf16.msra.mxu0 %v2250
      %3325 = vmatprep.subr.bf16.mxu0 %v2259
      %3326 = vmatpush1.bf16.msra.mxu0 %v2258
      %3327 = vmatprep.subr.bf16.mxu0 %v2267
      %3328 = vmatpush1.bf16.msra.mxu0 %v2266
      %3329 = vmatprep.mubr.bf16.mxu0 %v659
      %3330 = vmatmul.mubr.bf16.gmra.mrb[0].mxu0 %v658
      %v3331 = vpop.f32.mrb[0].mxu0
      %v3332 = vadd.f32 %v3289, %v3331
      %v3333 = vpop.f32.mrb[0].mxu0
      %v3334 = vadd.f32 %v3291, %v3333
      %v3335 = vpop.f32.mrb[0].mxu0
      %v3336 = vadd.f32 %v3293, %v3335
      %v3337 = vpop.f32.mrb[0].mxu0
      %v3338 = vadd.f32 %v3295, %v3337
      %3339 = vdwg.mxu0
      %3340 = vmatprep.subr.bf16.mxu0 %v2275
      %3341 = vmatpush1.bf16.msra.mxu0 %v2274
      %3342 = vmatprep.subr.bf16.mxu0 %v2283
      %3343 = vmatpush1.bf16.msra.mxu0 %v2282
      %3344 = vmatprep.subr.bf16.mxu0 %v2291
      %3345 = vmatpush1.bf16.msra.mxu0 %v2290
      %3346 = vmatprep.subr.bf16.mxu0 %v2299
      %3347 = vmatpush1.bf16.msra.mxu0 %v2298
      %3348 = vmatprep.subr.bf16.mxu0 %v2307
      %3349 = vmatpush1.bf16.msra.mxu0 %v2306
      %3350 = vmatprep.subr.bf16.mxu0 %v2315
      %3351 = vmatpush1.bf16.msra.mxu0 %v2314
      %3352 = vmatprep.subr.bf16.mxu0 %v2323
      %3353 = vmatpush1.bf16.msra.mxu0 %v2322
      %3354 = vmatprep.subr.bf16.mxu0 %v2331
      %3355 = vmatpush1.bf16.msra.mxu0 %v2330
      %3356 = vmatprep.subr.bf16.mxu0 %v2339
      %3357 = vmatpush1.bf16.msra.mxu0 %v2338
      %3358 = vmatprep.subr.bf16.mxu0 %v2347
      %3359 = vmatpush1.bf16.msra.mxu0 %v2346
      %3360 = vmatprep.subr.bf16.mxu0 %v2355
      %3361 = vmatpush1.bf16.msra.mxu0 %v2354
      %3362 = vmatprep.subr.bf16.mxu0 %v2363
      %3363 = vmatpush1.bf16.msra.mxu0 %v2362
      %3364 = vmatprep.subr.bf16.mxu0 %v2371
      %3365 = vmatpush1.bf16.msra.mxu0 %v2370
      %3366 = vmatprep.subr.bf16.mxu0 %v2379
      %3367 = vmatpush1.bf16.msra.mxu0 %v2378
      %3368 = vmatprep.subr.bf16.mxu0 %v2387
      %3369 = vmatpush1.bf16.msra.mxu0 %v2386
      %3370 = vmatprep.subr.bf16.mxu0 %v2395
      %3371 = vmatpush1.bf16.msra.mxu0 %v2394
      %3372 = vmatprep.mubr.bf16.mxu0 %v661
      %3373 = vmatmul.mubr.bf16.gmra.mrb[0].mxu0 %v660
      %v3374 = vpop.f32.mrb[0].mxu0
      %v3375 = vadd.f32 %v3332, %v3374
      %v3376 = vpop.f32.mrb[0].mxu0
      %v3377 = vadd.f32 %v3334, %v3376
      %v3378 = vpop.f32.mrb[0].mxu0
      %v3379 = vadd.f32 %v3336, %v3378
      %v3380 = vpop.f32.mrb[0].mxu0
      %v3381 = vadd.f32 %v3338, %v3380
      %3382 = vdwg.mxu0
      %3383 = vmatprep.subr.bf16.mxu0 %v2403
      %3384 = vmatpush1.bf16.msra.mxu0 %v2402
      %3385 = vmatprep.subr.bf16.mxu0 %v2411
      %3386 = vmatpush1.bf16.msra.mxu0 %v2410
      %3387 = vmatprep.subr.bf16.mxu0 %v2419
      %3388 = vmatpush1.bf16.msra.mxu0 %v2418
      %3389 = vmatprep.subr.bf16.mxu0 %v2427
      %3390 = vmatpush1.bf16.msra.mxu0 %v2426
      %3391 = vmatprep.subr.bf16.mxu0 %v2435
      %3392 = vmatpush1.bf16.msra.mxu0 %v2434
      %3393 = vmatprep.subr.bf16.mxu0 %v2443
      %3394 = vmatpush1.bf16.msra.mxu0 %v2442
      %3395 = vmatprep.subr.bf16.mxu0 %v2451
      %3396 = vmatpush1.bf16.msra.mxu0 %v2450
      %3397 = vmatprep.subr.bf16.mxu0 %v2459
      %3398 = vmatpush1.bf16.msra.mxu0 %v2458
      %3399 = vmatprep.subr.bf16.mxu0 0
      %3400 = vmatpush1.bf16.msra.mxu0 0
      %3401 = vmatprep.subr.bf16.mxu0 0
      %3402 = vmatpush1.bf16.msra.mxu0 0
      %3403 = vmatprep.subr.bf16.mxu0 0
      %3404 = vmatpush1.bf16.msra.mxu0 0
      %3405 = vmatprep.subr.bf16.mxu0 0
      %3406 = vmatpush1.bf16.msra.mxu0 0
      %3407 = vmatprep.subr.bf16.mxu0 0
      %3408 = vmatpush1.bf16.msra.mxu0 0
      %3409 = vmatprep.subr.bf16.mxu0 0
      %3410 = vmatpush1.bf16.msra.mxu0 0
      %3411 = vmatprep.subr.bf16.mxu0 0
      %3412 = vmatpush1.bf16.msra.mxu0 0
      %3413 = vmatprep.subr.bf16.mxu0 0
      %3414 = vmatpush1.bf16.msra.mxu0 0
      %3415 = vmatprep.mubr.bf16.mxu0 0
      %3416 = vmatmul.mubr.bf16.gmra.mrb[0].mxu0 %v662
      %v3417 = vpop.f32.mrb[0].mxu0
      %v3418 = vadd.f32 %v3375, %v3417
      %v3419 = vpop.f32.mrb[0].mxu0
      %v3420 = vadd.f32 %v3377, %v3419
      %v3421 = vpop.f32.mrb[0].mxu0
      %v3422 = vadd.f32 %v3379, %v3421
      %v3423 = vpop.f32.mrb[0].mxu0
      %v3424 = vadd.f32 %v3381, %v3423
      %3425 = vdwg.mxu0
      %3426 = vmatprep.subr.bf16.mxu0 %v2021
      %3427 = vmatpush1.bf16.msra.mxu0 %v2020
      %3428 = vmatprep.subr.bf16.mxu0 %v2029
      %3429 = vmatpush1.bf16.msra.mxu0 %v2028
      %3430 = vmatprep.subr.bf16.mxu0 %v2037
      %3431 = vmatpush1.bf16.msra.mxu0 %v2036
      %3432 = vmatprep.subr.bf16.mxu0 %v2045
      %3433 = vmatpush1.bf16.msra.mxu0 %v2044
      %3434 = vmatprep.subr.bf16.mxu0 %v2053
      %3435 = vmatpush1.bf16.msra.mxu0 %v2052
      %3436 = vmatprep.subr.bf16.mxu0 %v2061
      %3437 = vmatpush1.bf16.msra.mxu0 %v2060
      %3438 = vmatprep.subr.bf16.mxu0 %v2069
      %3439 = vmatpush1.bf16.msra.mxu0 %v2068
      %3440 = vmatprep.subr.bf16.mxu0 %v2077
      %3441 = vmatpush1.bf16.msra.mxu0 %v2076
      %3442 = vmatprep.subr.bf16.mxu0 %v2085
      %3443 = vmatpush1.bf16.msra.mxu0 %v2084
      %3444 = vmatprep.subr.bf16.mxu0 %v2093
      %3445 = vmatpush1.bf16.msra.mxu0 %v2092
      %3446 = vmatprep.subr.bf16.mxu0 %v2101
      %3447 = vmatpush1.bf16.msra.mxu0 %v2100
      %3448 = vmatprep.subr.bf16.mxu0 %v2109
      %3449 = vmatpush1.bf16.msra.mxu0 %v2108
      %3450 = vmatprep.subr.bf16.mxu0 %v2117
      %3451 = vmatpush1.bf16.msra.mxu0 %v2116
      %3452 = vmatprep.subr.bf16.mxu0 %v2125
      %3453 = vmatpush1.bf16.msra.mxu0 %v2124
      %3454 = vmatprep.subr.bf16.mxu0 %v2133
      %3455 = vmatpush1.bf16.msra.mxu0 %v2132
      %3456 = vmatprep.subr.bf16.mxu0 %v2141
      %3457 = vmatpush1.bf16.msra.mxu0 %v2140
      %3458 = vmatprep.mubr.bf16.mxu0 %v657
      %3459 = vmatmul.mubr.bf16.gmra.mrb[0].mxu0 %v656
      %v3460 = vpop.f32.mrb[0].mxu0
      %v3461 = vadd.f32 0.0, %v3460
      %v3462 = vpop.f32.mrb[0].mxu0
      %v3463 = vadd.f32 0.0, %v3462
      %v3464 = vpop.f32.mrb[0].mxu0
      %v3465 = vadd.f32 0.0, %v3464
      %v3466 = vpop.f32.mrb[0].mxu0
      %v3467 = vadd.f32 0.0, %v3466
      %3468 = vdwg.mxu0
      %3469 = vmatprep.subr.bf16.mxu0 %v2149
      %3470 = vmatpush1.bf16.msra.mxu0 %v2148
      %3471 = vmatprep.subr.bf16.mxu0 %v2157
      %3472 = vmatpush1.bf16.msra.mxu0 %v2156
      %3473 = vmatprep.subr.bf16.mxu0 %v2165
      %3474 = vmatpush1.bf16.msra.mxu0 %v2164
      %3475 = vmatprep.subr.bf16.mxu0 %v2173
      %3476 = vmatpush1.bf16.msra.mxu0 %v2172
      %3477 = vmatprep.subr.bf16.mxu0 %v2181
      %3478 = vmatpush1.bf16.msra.mxu0 %v2180
      %3479 = vmatprep.subr.bf16.mxu0 %v2189
      %3480 = vmatpush1.bf16.msra.mxu0 %v2188
      %3481 = vmatprep.subr.bf16.mxu0 %v2197
      %3482 = vmatpush1.bf16.msra.mxu0 %v2196
      %3483 = vmatprep.subr.bf16.mxu0 %v2205
      %3484 = vmatpush1.bf16.msra.mxu0 %v2204
      %3485 = vmatprep.subr.bf16.mxu0 %v2213
      %3486 = vmatpush1.bf16.msra.mxu0 %v2212
      %3487 = vmatprep.subr.bf16.mxu0 %v2221
      %3488 = vmatpush1.bf16.msra.mxu0 %v2220
      %3489 = vmatprep.subr.bf16.mxu0 %v2229
      %3490 = vmatpush1.bf16.msra.mxu0 %v2228
      %3491 = vmatprep.subr.bf16.mxu0 %v2237
      %3492 = vmatpush1.bf16.msra.mxu0 %v2236
      %3493 = vmatprep.subr.bf16.mxu0 %v2245
      %3494 = vmatpush1.bf16.msra.mxu0 %v2244
      %3495 = vmatprep.subr.bf16.mxu0 %v2253
      %3496 = vmatpush1.bf16.msra.mxu0 %v2252
      %3497 = vmatprep.subr.bf16.mxu0 %v2261
      %3498 = vmatpush1.bf16.msra.mxu0 %v2260
      %3499 = vmatprep.subr.bf16.mxu0 %v2269
      %3500 = vmatpush1.bf16.msra.mxu0 %v2268
      %3501 = vmatprep.mubr.bf16.mxu0 %v659
      %3502 = vmatmul.mubr.bf16.gmra.mrb[0].mxu0 %v658
      %v3503 = vpop.f32.mrb[0].mxu0
      %v3504 = vadd.f32 %v3461, %v3503
      %v3505 = vpop.f32.mrb[0].mxu0
      %v3506 = vadd.f32 %v3463, %v3505
      %v3507 = vpop.f32.mrb[0].mxu0
      %v3508 = vadd.f32 %v3465, %v3507
      %v3509 = vpop.f32.mrb[0].mxu0
      %v3510 = vadd.f32 %v3467, %v3509
      %3511 = vdwg.mxu0
      %3512 = vmatprep.subr.bf16.mxu0 %v2277
      %3513 = vmatpush1.bf16.msra.mxu0 %v2276
      %3514 = vmatprep.subr.bf16.mxu0 %v2285
      %3515 = vmatpush1.bf16.msra.mxu0 %v2284
      %3516 = vmatprep.subr.bf16.mxu0 %v2293
      %3517 = vmatpush1.bf16.msra.mxu0 %v2292
      %3518 = vmatprep.subr.bf16.mxu0 %v2301
      %3519 = vmatpush1.bf16.msra.mxu0 %v2300
      %3520 = vmatprep.subr.bf16.mxu0 %v2309
      %3521 = vmatpush1.bf16.msra.mxu0 %v2308
      %3522 = vmatprep.subr.bf16.mxu0 %v2317
      %3523 = vmatpush1.bf16.msra.mxu0 %v2316
      %3524 = vmatprep.subr.bf16.mxu0 %v2325
      %3525 = vmatpush1.bf16.msra.mxu0 %v2324
      %3526 = vmatprep.subr.bf16.mxu0 %v2333
      %3527 = vmatpush1.bf16.msra.mxu0 %v2332
      %3528 = vmatprep.subr.bf16.mxu0 %v2341
      %3529 = vmatpush1.bf16.msra.mxu0 %v2340
      %3530 = vmatprep.subr.bf16.mxu0 %v2349
      %3531 = vmatpush1.bf16.msra.mxu0 %v2348
      %3532 = vmatprep.subr.bf16.mxu0 %v2357
      %3533 = vmatpush1.bf16.msra.mxu0 %v2356
      %3534 = vmatprep.subr.bf16.mxu0 %v2365
      %3535 = vmatpush1.bf16.msra.mxu0 %v2364
      %3536 = vmatprep.subr.bf16.mxu0 %v2373
      %3537 = vmatpush1.bf16.msra.mxu0 %v2372
      %3538 = vmatprep.subr.bf16.mxu0 %v2381
      %3539 = vmatpush1.bf16.msra.mxu0 %v2380
      %3540 = vmatprep.subr.bf16.mxu0 %v2389
      %3541 = vmatpush1.bf16.msra.mxu0 %v2388
      %3542 = vmatprep.subr.bf16.mxu0 %v2397
      %3543 = vmatpush1.bf16.msra.mxu0 %v2396
      %3544 = vmatprep.mubr.bf16.mxu0 %v661
      %3545 = vmatmul.mubr.bf16.gmra.mrb[0].mxu0 %v660
      %v3546 = vpop.f32.mrb[0].mxu0
      %v3547 = vadd.f32 %v3504, %v3546
      %v3548 = vpop.f32.mrb[0].mxu0
      %v3549 = vadd.f32 %v3506, %v3548
      %v3550 = vpop.f32.mrb[0].mxu0
      %v3551 = vadd.f32 %v3508, %v3550
      %v3552 = vpop.f32.mrb[0].mxu0
      %v3553 = vadd.f32 %v3510, %v3552
      %3554 = vdwg.mxu0
      %3555 = vmatprep.subr.bf16.mxu0 %v2405
      %3556 = vmatpush1.bf16.msra.mxu0 %v2404
      %3557 = vmatprep.subr.bf16.mxu0 %v2413
      %3558 = vmatpush1.bf16.msra.mxu0 %v2412
      %3559 = vmatprep.subr.bf16.mxu0 %v2421
      %3560 = vmatpush1.bf16.msra.mxu0 %v2420
      %3561 = vmatprep.subr.bf16.mxu0 %v2429
      %3562 = vmatpush1.bf16.msra.mxu0 %v2428
      %3563 = vmatprep.subr.bf16.mxu0 %v2437
      %3564 = vmatpush1.bf16.msra.mxu0 %v2436
      %3565 = vmatprep.subr.bf16.mxu0 %v2445
      %3566 = vmatpush1.bf16.msra.mxu0 %v2444
      %3567 = vmatprep.subr.bf16.mxu0 %v2453
      %3568 = vmatpush1.bf16.msra.mxu0 %v2452
      %3569 = vmatprep.subr.bf16.mxu0 %v2461
      %3570 = vmatpush1.bf16.msra.mxu0 %v2460
      %3571 = vmatprep.subr.bf16.mxu0 0
      %3572 = vmatpush1.bf16.msra.mxu0 0
      %3573 = vmatprep.subr.bf16.mxu0 0
      %3574 = vmatpush1.bf16.msra.mxu0 0
      %3575 = vmatprep.subr.bf16.mxu0 0
      %3576 = vmatpush1.bf16.msra.mxu0 0
      %3577 = vmatprep.subr.bf16.mxu0 0
      %3578 = vmatpush1.bf16.msra.mxu0 0
      %3579 = vmatprep.subr.bf16.mxu0 0
      %3580 = vmatpush1.bf16.msra.mxu0 0
      %3581 = vmatprep.subr.bf16.mxu0 0
      %3582 = vmatpush1.bf16.msra.mxu0 0
      %3583 = vmatprep.subr.bf16.mxu0 0
      %3584 = vmatpush1.bf16.msra.mxu0 0
      %3585 = vmatprep.subr.bf16.mxu0 0
      %3586 = vmatpush1.bf16.msra.mxu0 0
      %3587 = vmatprep.mubr.bf16.mxu0 0
      %3588 = vmatmul.mubr.bf16.gmra.mrb[0].mxu0 %v662
      %v3589 = vpop.f32.mrb[0].mxu0
      %v3590 = vadd.f32 %v3547, %v3589
      %v3591 = vpop.f32.mrb[0].mxu0
      %v3592 = vadd.f32 %v3549, %v3591
      %v3593 = vpop.f32.mrb[0].mxu0
      %v3594 = vadd.f32 %v3551, %v3593
      %v3595 = vpop.f32.mrb[0].mxu0
      %v3596 = vadd.f32 %v3553, %v3595
      %3597 = vdwg.mxu0
      %v3598 = vmul.f32 %v3074, %v3074
      %v3599 = vmul.f32 %v3076, %v3076
      %v3600 = vmul.f32 %v3246, %v3246
      %v3601 = vmul.f32 %v3248, %v3248
      %v3602 = vmul.f32 %v3078, %v3078
      %v3603 = vmul.f32 %v3080, %v3080
      %v3604 = vmul.f32 %v3250, %v3250
      %v3605 = vmul.f32 %v3252, %v3252
      %v3606 = vmul.f32 %v3418, %v3418
      %v3607 = vmul.f32 %v3420, %v3420
      %v3608 = vmul.f32 %v3590, %v3590
      %v3609 = vmul.f32 %v3592, %v3592
      %v3610 = vmul.f32 %v3422, %v3422
      %v3611 = vmul.f32 %v3424, %v3424
      %v3612 = vmul.f32 %v3594, %v3594
      %v3613 = vmul.f32 %v3596, %v3596
      %v3614 = vadd.f32 %v3598, %v3606
      %v3615 = vadd.f32 %v3599, %v3607
      %v3616 = vadd.f32 %v3600, %v3608
      %v3617 = vadd.f32 %v3601, %v3609
      %v3618 = vadd.f32 %v3602, %v3610
      %v3619 = vadd.f32 %v3603, %v3611
      %v3620 = vadd.f32 %v3604, %v3612
      %v3621 = vadd.f32 %v3605, %v3613
      %v3622 = vrsqrt.pop %v3614
      %v3623 = vmul.f32 %v3614, %v3622
      %vm3624 = vcmp.eq.f32.partialorder %v3614, inf
      %v3625 = vsel %vm3624, %v3614, %v3623
      %vm3626 = vcmp.eq.f32.partialorder %v3614, 0.0
      %v3627 = vand.u32 %v3614, 2147483648
      %v3628 = vsel %vm3626, %v3627, %v3625
      %v3629 = vrsqrt.pop %v3615
      %v3630 = vmul.f32 %v3615, %v3629
      %vm3631 = vcmp.eq.f32.partialorder %v3615, inf
      %v3632 = vsel %vm3631, %v3615, %v3630
      %vm3633 = vcmp.eq.f32.partialorder %v3615, 0.0
      %v3634 = vand.u32 %v3615, 2147483648
      %v3635 = vsel %vm3633, %v3634, %v3632
      %v3636 = vrsqrt.pop %v3616
      %v3637 = vmul.f32 %v3616, %v3636
      %vm3638 = vcmp.eq.f32.partialorder %v3616, inf
      %v3639 = vsel %vm3638, %v3616, %v3637
      %vm3640 = vcmp.eq.f32.partialorder %v3616, 0.0
      %v3641 = vand.u32 %v3616, 2147483648
      %v3642 = vsel %vm3640, %v3641, %v3639
      %v3643 = vrsqrt.pop %v3617
      %v3644 = vmul.f32 %v3617, %v3643
      %vm3645 = vcmp.eq.f32.partialorder %v3617, inf
      %v3646 = vsel %vm3645, %v3617, %v3644
      %vm3647 = vcmp.eq.f32.partialorder %v3617, 0.0
      %v3648 = vand.u32 %v3617, 2147483648
      %v3649 = vsel %vm3647, %v3648, %v3646
      %v3650 = vrsqrt.pop %v3618
      %v3651 = vmul.f32 %v3618, %v3650
      %vm3652 = vcmp.eq.f32.partialorder %v3618, inf
      %v3653 = vsel %vm3652, %v3618, %v3651
      %vm3654 = vcmp.eq.f32.partialorder %v3618, 0.0
      %v3655 = vand.u32 %v3618, 2147483648
      %v3656 = vsel %vm3654, %v3655, %v3653
      %v3657 = vrsqrt.pop %v3619
      %v3658 = vmul.f32 %v3619, %v3657
      %vm3659 = vcmp.eq.f32.partialorder %v3619, inf
      %v3660 = vsel %vm3659, %v3619, %v3658
      %vm3661 = vcmp.eq.f32.partialorder %v3619, 0.0
      %v3662 = vand.u32 %v3619, 2147483648
      %v3663 = vsel %vm3661, %v3662, %v3660
      %v3664 = vrsqrt.pop %v3620
      %v3665 = vmul.f32 %v3620, %v3664
      %vm3666 = vcmp.eq.f32.partialorder %v3620, inf
      %v3667 = vsel %vm3666, %v3620, %v3665
      %vm3668 = vcmp.eq.f32.partialorder %v3620, 0.0
      %v3669 = vand.u32 %v3620, 2147483648
      %v3670 = vsel %vm3668, %v3669, %v3667
      %v3671 = vrsqrt.pop %v3621
      %v3672 = vmul.f32 %v3621, %v3671
      %vm3673 = vcmp.eq.f32.partialorder %v3621, inf
      %v3674 = vsel %vm3673, %v3621, %v3672
      %vm3675 = vcmp.eq.f32.partialorder %v3621, 0.0
      %v3676 = vand.u32 %v3621, 2147483648
      %v3677 = vsel %vm3675, %v3676, %v3674
      %v3678 = vpack.c.bf16 %v3656, %v3628
      %v3679 = vpack.c.bf16 %v3663, %v3635
      %v3680 = vpack.c.bf16 %v3670, %v3642
      %v3681 = vpack.c.bf16 %v3677, %v3649
      %v3682 = vld [vmem:[%s2] sm:$0xf]
      %v3683 = vld [vmem:[%s2 + $0x4] sm:$0xf]
      %v3684 = vld [vmem:[%s2 + $0x8] sm:$0xf]
      %v3685 = vld [vmem:[%s2 + $0xc] sm:$0xf]
      %v3686 = vld [vmem:[%s2 + $0x10] sm:$0xf]
      %v3687 = vld [vmem:[%s2 + $0x14] sm:$0xf]
      %v3688 = vld [vmem:[%s2 + $0x18] sm:$0xf]
      %v3689 = vld [vmem:[%s2 + $0x1c] sm:$0xf]
      %v3690 = vld [vmem:[%s2 + $0x20] sm:$0xf]
      %v3691 = vld [vmem:[%s2 + $0x24] sm:$0xf]
      %v3692 = vld [vmem:[%s2 + $0x28] sm:$0xf]
      %v3693 = vld [vmem:[%s2 + $0x2c] sm:$0xf]
      %v3694 = vld [vmem:[%s2 + $0x30] sm:$0xf]
      %v3695 = vld [vmem:[%s2 + $0x34] sm:$0xf]
      %v3696 = vld [vmem:[%s2 + $0x38] sm:$0xf]
      %v3697 = vld [vmem:[%s2 + $0x3c] sm:$0xf]
      %v3698 = vld [vmem:[%s2 + $0x40] sm:$0xf]
      %v3699 = vld [vmem:[%s2 + $0x44] sm:$0xf]
      %v3700 = vld [vmem:[%s2 + $0x48] sm:$0xf]
      %v3701 = vld [vmem:[%s2 + $0x4c] sm:$0xf]
      %v3702 = vld [vmem:[%s2 + $0x50] sm:$0xf]
      %v3703 = vld [vmem:[%s2 + $0x54] sm:$0xf]
      %v3704 = vld [vmem:[%s2 + $0x58] sm:$0xf]
      %v3705 = vld [vmem:[%s2 + $0x5c] sm:$0xf]
      %v3706 = vld [vmem:[%s2 + $0x60] sm:$0xf]
      %v3707 = vld [vmem:[%s2 + $0x64] sm:$0xf]
      %v3708 = vld [vmem:[%s2 + $0x68] sm:$0xf]
      %v3709 = vld [vmem:[%s2 + $0x6c] sm:$0xf]
      %v3710 = vld [vmem:[%s2 + $0x70] sm:$0xf]
      %v3711 = vld [vmem:[%s2 + $0x74] sm:$0xf]
      %v3712 = vld [vmem:[%s2 + $0x78] sm:$0xf]
      %v3713 = vld [vmem:[%s2 + $0x7c] sm:$0xf]
      %v3714 = vld [vmem:[%s2 + $0x80] sm:$0xf]
      %v3715 = vld [vmem:[%s2 + $0x84] sm:$0xf]
      %v3716 = vld [vmem:[%s2 + $0x88] sm:$0xf]
      %v3717 = vld [vmem:[%s2 + $0x8c] sm:$0xf]
      %v3718 = vld [vmem:[%s2 + $0x90] sm:$0xf]
      %v3719 = vld [vmem:[%s2 + $0x94] sm:$0xf]
      %v3720 = vld [vmem:[%s2 + $0x98] sm:$0xf]
      %v3721 = vld [vmem:[%s2 + $0x9c] sm:$0xf]
      %v3722 = vld [vmem:[%s2 + $0xa0] sm:$0xf]
      %v3723 = vld [vmem:[%s2 + $0xa4] sm:$0xf]
      %v3724 = vld [vmem:[%s2 + $0xa8] sm:$0xf]
      %v3725 = vld [vmem:[%s2 + $0xac] sm:$0xf]
      %v3726 = vld [vmem:[%s2 + $0xb0] sm:$0xf]
      %v3727 = vld [vmem:[%s2 + $0xb4] sm:$0xf]
      %v3728 = vld [vmem:[%s2 + $0xb8] sm:$0xf]
      %v3729 = vld [vmem:[%s2 + $0xbc] sm:$0xf]
      %v3730 = vld [vmem:[%s2 + $0xc0] sm:$0xf]
      %v3731 = vld [vmem:[%s2 + $0xc4] sm:$0xf]
      %v3732 = vld [vmem:[%s2 + $0xc8] sm:$0xf]
      %v3733 = vld [vmem:[%s2 + $0xcc] sm:$0xf]
      %v3734 = vld [vmem:[%s2 + $0xd0] sm:$0xf]
      %v3735 = vld [vmem:[%s2 + $0xd4] sm:$0xf]
      %v3736 = vld [vmem:[%s2 + $0xd8] sm:$0xf]
      %v3737 = vld [vmem:[%s2 + $0xdc] sm:$0xf]
      %v3738 = vld [vmem:[%s2 + $0xe0] sm:$0xf]
      %v3739 = vld [vmem:[%s2 + $0xe4] sm:$0xf]
      %v3740 = vld [vmem:[%s2 + $0xe8] sm:$0xf]
      %v3741 = vld [vmem:[%s2 + $0xec] sm:$0xf]
      %v3742 = vld [vmem:[%s2 + $0xf0] sm:$0xf]
      %v3743 = vld [vmem:[%s2 + $0xf4] sm:$0xf]
      %v3744 = vld [vmem:[%s2 + $0xf8] sm:$0xf]
      %v3745 = vld [vmem:[%s2 + $0xfc] sm:$0xf]
      %v3810 = vunpack.c.l.b16 %v3682
      %v3811 = vunpack.c.l.b16 %v3683
      %v3812 = vunpack.c.l.b16 %v3684
      %v3813 = vunpack.c.l.b16 %v3685
      %v3814 = vunpack.c.l.b16 %v3686
      %v3815 = vunpack.c.l.b16 %v3687
      %v3816 = vunpack.c.l.b16 %v3688
      %v3817 = vunpack.c.l.b16 %v3689
      %v3818 = vunpack.c.l.b16 %v3690
      %v3819 = vunpack.c.l.b16 %v3691
      %v3820 = vunpack.c.l.b16 %v3692
      %v3821 = vunpack.c.l.b16 %v3693
      %v3822 = vunpack.c.l.b16 %v3694
      %v3823 = vunpack.c.l.b16 %v3695
      %v3824 = vunpack.c.l.b16 %v3696
      %v3825 = vunpack.c.l.b16 %v3697
      %v3826 = vunpack.c.l.b16 %v3698
      %v3827 = vunpack.c.l.b16 %v3699
      %v3828 = vunpack.c.l.b16 %v3700
      %v3829 = vunpack.c.l.b16 %v3701
      %v3830 = vunpack.c.l.b16 %v3702
      %v3831 = vunpack.c.l.b16 %v3703
      %v3832 = vunpack.c.l.b16 %v3704
      %v3833 = vunpack.c.l.b16 %v3705
      %v3834 = vunpack.c.l.b16 %v3706
      %v3835 = vunpack.c.l.b16 %v3707
      %v3836 = vunpack.c.l.b16 %v3708
      %v3837 = vunpack.c.l.b16 %v3709
      %v3838 = vunpack.c.l.b16 %v3710
      %v3839 = vunpack.c.l.b16 %v3711
      %v3840 = vunpack.c.l.b16 %v3712
      %v3841 = vunpack.c.l.b16 %v3713
      %v3842 = vunpack.c.l.b16 %v3714
      %v3843 = vunpack.c.l.b16 %v3715
      %v3844 = vunpack.c.l.b16 %v3716
      %v3845 = vunpack.c.l.b16 %v3717
      %v3846 = vunpack.c.l.b16 %v3718
      %v3847 = vunpack.c.l.b16 %v3719
      %v3848 = vunpack.c.l.b16 %v3720
      %v3849 = vunpack.c.l.b16 %v3721
      %v3850 = vunpack.c.l.b16 %v3722
      %v3851 = vunpack.c.l.b16 %v3723
      %v3852 = vunpack.c.l.b16 %v3724
      %v3853 = vunpack.c.l.b16 %v3725
      %v3854 = vunpack.c.l.b16 %v3726
      %v3855 = vunpack.c.l.b16 %v3727
      %v3856 = vunpack.c.l.b16 %v3728
      %v3857 = vunpack.c.l.b16 %v3729
      %v3858 = vunpack.c.l.b16 %v3730
      %v3859 = vunpack.c.l.b16 %v3731
      %v3860 = vunpack.c.l.b16 %v3732
      %v3861 = vunpack.c.l.b16 %v3733
      %v3862 = vunpack.c.l.b16 %v3734
      %v3863 = vunpack.c.l.b16 %v3735
      %v3864 = vunpack.c.l.b16 %v3736
      %v3865 = vunpack.c.l.b16 %v3737
      %v3866 = vunpack.c.l.b16 %v3738
      %v3867 = vunpack.c.l.b16 %v3739
      %v3868 = vunpack.c.l.b16 %v3740
      %v3869 = vunpack.c.l.b16 %v3741
      %v3870 = vunpack.c.l.b16 %v3742
      %v3871 = vunpack.c.l.b16 %v3743
      %v3872 = vunpack.c.l.b16 %v3744
      %v3873 = vunpack.c.l.b16 %v3745
      %v3874 = vpack.c.b16 %v3811, %v3810
      %v3875 = vpack.c.b16 %v3813, %v3812
      %v3876 = vpack.c.b16 %v3815, %v3814
      %v3877 = vpack.c.b16 %v3817, %v3816
      %v3878 = vpack.c.b16 %v3819, %v3818
      %v3879 = vpack.c.b16 %v3821, %v3820
      %v3880 = vpack.c.b16 %v3823, %v3822
      %v3881 = vpack.c.b16 %v3825, %v3824
      %v3882 = vpack.c.b16 %v3827, %v3826
      %v3883 = vpack.c.b16 %v3829, %v3828
      %v3884 = vpack.c.b16 %v3831, %v3830
      %v3885 = vpack.c.b16 %v3833, %v3832
      %v3886 = vpack.c.b16 %v3835, %v3834
      %v3887 = vpack.c.b16 %v3837, %v3836
      %v3888 = vpack.c.b16 %v3839, %v3838
      %v3889 = vpack.c.b16 %v3841, %v3840
      %v3890 = vpack.c.b16 %v3843, %v3842
      %v3891 = vpack.c.b16 %v3845, %v3844
      %v3892 = vpack.c.b16 %v3847, %v3846
      %v3893 = vpack.c.b16 %v3849, %v3848
      %v3894 = vpack.c.b16 %v3851, %v3850
      %v3895 = vpack.c.b16 %v3853, %v3852
      %v3896 = vpack.c.b16 %v3855, %v3854
      %v3897 = vpack.c.b16 %v3857, %v3856
      %v3898 = vpack.c.b16 %v3859, %v3858
      %v3899 = vpack.c.b16 %v3861, %v3860
      %v3900 = vpack.c.b16 %v3863, %v3862
      %v3901 = vpack.c.b16 %v3865, %v3864
      %v3902 = vpack.c.b16 %v3867, %v3866
      %v3903 = vpack.c.b16 %v3869, %v3868
      %v3904 = vpack.c.b16 %v3871, %v3870
      %v3905 = vpack.c.b16 %v3873, %v3872
      %3938 = vmatprep.subr.bf16.mxu0 0
      %3939 = vmatpush1.bf16.msra.mxu0 %v3874
      %3940 = vmatprep.subr.bf16.mxu0 0
      %3941 = vmatpush1.bf16.msra.mxu0 %v3875
      %3942 = vmatprep.subr.bf16.mxu0 0
      %3943 = vmatpush1.bf16.msra.mxu0 %v3876
      %3944 = vmatprep.subr.bf16.mxu0 0
      %3945 = vmatpush1.bf16.msra.mxu0 %v3877
      %3946 = vmatprep.subr.bf16.mxu0 0
      %3947 = vmatpush1.bf16.msra.mxu0 %v3878
      %3948 = vmatprep.subr.bf16.mxu0 0
      %3949 = vmatpush1.bf16.msra.mxu0 %v3879
      %3950 = vmatprep.subr.bf16.mxu0 0
      %3951 = vmatpush1.bf16.msra.mxu0 %v3880
      %3952 = vmatprep.subr.bf16.mxu0 0
      %3953 = vmatpush1.bf16.msra.mxu0 %v3881
      %3954 = vmatprep.subr.bf16.mxu0 0
      %3955 = vmatpush1.bf16.msra.mxu0 %v3882
      %3956 = vmatprep.subr.bf16.mxu0 0
      %3957 = vmatpush1.bf16.msra.mxu0 %v3883
      %3958 = vmatprep.subr.bf16.mxu0 0
      %3959 = vmatpush1.bf16.msra.mxu0 %v3884
      %3960 = vmatprep.subr.bf16.mxu0 0
      %3961 = vmatpush1.bf16.msra.mxu0 %v3885
      %3962 = vmatprep.subr.bf16.mxu0 0
      %3963 = vmatpush1.bf16.msra.mxu0 %v3886
      %3964 = vmatprep.subr.bf16.mxu0 0
      %3965 = vmatpush1.bf16.msra.mxu0 %v3887
      %3966 = vmatprep.subr.bf16.mxu0 0
      %3967 = vmatpush1.bf16.msra.mxu0 %v3888
      %3968 = vmatprep.subr.bf16.mxu0 0
      %3969 = vmatpush1.bf16.msra.mxu0 %v3889
      %3970 = vmatprep.mubr.bf16.mxu0 %v3679
      %3971 = vmatmul.mubr.bf16.gmra.mrb[0].mxu0 %v3678
      %v3972 = vpop.f32.mrb[0].mxu0
      %v3973 = vadd.f32 0.0, %v3972
      %v3974 = vpop.f32.mrb[0].mxu0
      %v3975 = vpop.f32.mrb[0].mxu0
      %v3976 = vadd.f32 0.0, %v3975
      %v3977 = vpop.f32.mrb[0].mxu0
      %3978 = vdwg.mxu0
      %3979 = vmatprep.subr.bf16.mxu0 0
      %3980 = vmatpush1.bf16.msra.mxu0 %v3890
      %3981 = vmatprep.subr.bf16.mxu0 0
      %3982 = vmatpush1.bf16.msra.mxu0 %v3891
      %3983 = vmatprep.subr.bf16.mxu0 0
      %3984 = vmatpush1.bf16.msra.mxu0 %v3892
      %3985 = vmatprep.subr.bf16.mxu0 0
      %3986 = vmatpush1.bf16.msra.mxu0 %v3893
      %3987 = vmatprep.subr.bf16.mxu0 0
      %3988 = vmatpush1.bf16.msra.mxu0 %v3894
      %3989 = vmatprep.subr.bf16.mxu0 0
      %3990 = vmatpush1.bf16.msra.mxu0 %v3895
      %3991 = vmatprep.subr.bf16.mxu0 0
      %3992 = vmatpush1.bf16.msra.mxu0 %v3896
      %3993 = vmatprep.subr.bf16.mxu0 0
      %3994 = vmatpush1.bf16.msra.mxu0 %v3897
      %3995 = vmatprep.subr.bf16.mxu0 0
      %3996 = vmatpush1.bf16.msra.mxu0 %v3898
      %3997 = vmatprep.subr.bf16.mxu0 0
      %3998 = vmatpush1.bf16.msra.mxu0 %v3899
      %3999 = vmatprep.subr.bf16.mxu0 0
      %4000 = vmatpush1.bf16.msra.mxu0 %v3900
      %4001 = vmatprep.subr.bf16.mxu0 0
      %4002 = vmatpush1.bf16.msra.mxu0 %v3901
      %4003 = vmatprep.subr.bf16.mxu0 0
      %4004 = vmatpush1.bf16.msra.mxu0 %v3902
      %4005 = vmatprep.subr.bf16.mxu0 0
      %4006 = vmatpush1.bf16.msra.mxu0 %v3903
      %4007 = vmatprep.subr.bf16.mxu0 0
      %4008 = vmatpush1.bf16.msra.mxu0 %v3904
      %4009 = vmatprep.subr.bf16.mxu0 0
      %4010 = vmatpush1.bf16.msra.mxu0 %v3905
      %4011 = vmatprep.mubr.bf16.mxu0 %v3681
      %4012 = vmatmul.mubr.bf16.gmra.mrb[0].mxu0 %v3680
      %v4013 = vpop.f32.mrb[0].mxu0
      %v4014 = vadd.f32 %v3973, %v4013
      %v4015 = vpop.f32.mrb[0].mxu0
      %v4016 = vpop.f32.mrb[0].mxu0
      %v4017 = vadd.f32 %v3976, %v4016
      %v4018 = vpop.f32.mrb[0].mxu0
      %4019 = vdwg.mxu0
      %v4020 = vmax.f32 %v4014, 9.9999e-06
      %v4021 = vmax.f32 %v4017, 9.9999e-06
      %v4022 = vlog2.pop %v4020
      %v4023 = vmul.f32 %v4022, 0.6931472
      %v4024 = vlog2.pop %v4021
      %v4025 = vmul.f32 %v4024, 0.6931472
      %v4026 = vmul.f32 %v4023, 0.6948712
      %v4027 = vmul.f32 %v4025, 0.6948712
      %v4028 = vadd.f32 %v4026, 2.4
      %v4029 = vadd.f32 %v4027, 2.4
      %v4030 = vmax.f32 %v4028, -4.0
      %v4031 = vmax.f32 %v4029, -4.0
      %v4032 = vmin.f32 %v4030, 4.0
      %v4033 = vmin.f32 %v4031, 4.0
      %4034 = vst [vmem:[%s175] sm:$0xff] %v4032
      %4035 = vst [vmem:[%s175 + $0x8] sm:$0xff] %v4033
      %s4036 = smul.u32 2, %s14
      %p4037 = scmp.lt.s32.totalorder %s4036, 3
      %s4038 = scalar_select %p4037, %s4036, 3
      %s4039 = smul.addr %s4038, 8
      %s4040 = scalar_lea.vmem %s3, %s4039
      // Predicated region
      $region33: #{_get_mel_spectrogram_impl.1} parent=31 // pred_check
        %p4041 = pneg %p100
      $region34: #{_get_mel_spectrogram_impl.1} parent=31 // pred_check_branch
        %4043 = sbr.rel (%p4041) target = $region36
      $region35: #{_get_mel_spectrogram_impl.1} parent=31 // pred_region
        %s4044 = smul.u32 2, %s14
      $region36: #{_get_mel_spectrogram_impl.1} parent=31 // pred_fallthru
        _
    $region32: #{_get_mel_spectrogram_impl.1} parent=5 // pred_fallthru
      _
    %p4045 = scmp.le.s32.totalorder 2, %s9
    // Predicated region
    $region37: #{_get_mel_spectrogram_impl.1} parent=5 // pred_check
      %p4046 = pneg %p4045
    $region38: #{_get_mel_spectrogram_impl.1} parent=5 // pred_check_branch
      %4048 = sbr.rel (%p4046) target = $region40
    $region39: #{_get_mel_spectrogram_impl.1} parent=5 // pred_region
      %s4049 = ssub.s32 %s9, 2
      // Predicated region
      $region41: #{_get_mel_spectrogram_impl.1} parent=39 // pred_check
        %p4050 = pneg %p106
      $region42: #{_get_mel_spectrogram_impl.1} parent=39 // pred_check_branch
        %4052 = sbr.rel (%p4050) target = $region44
      $region43: #{_get_mel_spectrogram_impl.1} parent=39 // pred_region
        %s4053 = smul.u32 2, %s15
        %p4054 = scmp.lt.s32.totalorder %s4053, 3
        %s4055 = scalar_select %p4054, %s4053, 3
        %s4056 = smul.addr %s4055, 8
        %s4057 = scalar_lea.vmem %s3, %s4056
      $region44: #{_get_mel_spectrogram_impl.1} parent=39 // pred_fallthru
        _
    $region40: #{_get_mel_spectrogram_impl.1} parent=5 // pred_fallthru
      _
  $region6: #{_get_mel_spectrogram_impl.1} parent=0 // loop_footer
    %s13 = sadd.s32 1, %s9
  $region7: #{_get_mel_spectrogram_impl.1} parent=0 // loop_footer_branch
    %8 = sbr.rel target = $region3
  $region8: #{_get_mel_spectrogram_impl.1} parent=0 // loop_exit
    _

</llo_original>
